<compile_context>
chip_gen: v7x
topology: tpu7x:2x2x1
jax: 0.10.0
libtpu: 0.0.40
codegen_flags: <defaults>
</compile_context>

<pallas_src>
import jax
import jax.numpy as jnp
from jax.experimental import pallas as pl
from jax.experimental.pallas import tpu as pltpu

IN_DIM = 48 * 48   # 2304
H1 = 512
H2 = 64
OUT_DIM = 7
W3_PAD = 128       # layer-3 weight padded to a lane-dense 128-wide MXU tile


def _round_up(x, m):
    return ((x + m - 1) // m) * m


def _select_batch_tile(B):
    """Small B: round up to the sublane multiple (8).
    Large B: multiple of 256 (fills the MXU M dim), capped at 512 for VMEM,
    and <= B//2 so the parallel batch axis keeps >= 2 steps (both v7x TCs busy)."""
    if B <= 256:
        return _round_up(B, 8)
    half = (B // 2) // 256 * 256
    return max(256, min(512, half))


def mlp_kernel(x_ref, w1_ref, b1_ref, w2_ref, b2_ref, w3_ref, b3_ref, o_ref):
    # x arrives f32 straight from HBM; cast to bf16 in VMEM (no extra HBM pass).
    x = x_ref[...].astype(jnp.bfloat16)
    # Layer 1: (TB, 2304)bf16 @ (2304, 512)bf16 -> f32, + bias, ReLU.  (~97% of FLOPs)
    h1 = jnp.dot(x, w1_ref[...], preferred_element_type=jnp.float32)
    h1 = jnp.maximum(h1 + b1_ref[...], 0.0)
    # Layer 2: (TB, 512)bf16 @ (512, 64)bf16 -> f32, + bias, ReLU.
    h2 = jnp.dot(h1.astype(jnp.bfloat16), w2_ref[...],
                 preferred_element_type=jnp.float32)
    h2 = jnp.maximum(h2 + b2_ref[...], 0.0)
    # Layer 3: (TB, 64)bf16 @ (64, 128)bf16 -> f32; keep only the 7 real columns.
    h3 = jnp.dot(h2.astype(jnp.bfloat16), w3_ref[...],
                 preferred_element_type=jnp.float32)
    o_ref[...] = (h3[:, :OUT_DIM] + b3_ref[...]).astype(o_ref.dtype)


def prepare_params(params):
    """One-time parameter prep (hoisted out of the forward): bf16 weight casts and
    lane-dense zero-padding of the layer-3 weight. Biases stay f32."""
    w1, b1, w2, b2, w3, b3 = params
    w1b = w1.astype(jnp.bfloat16)
    w2b = w2.astype(jnp.bfloat16)
    w3b = jnp.pad(w3, ((0, 0), (0, W3_PAD - OUT_DIM))).astype(jnp.bfloat16)
    return (w1b, b1, w2b, b2, w3b, b3)


def emojify_forward(x, prepped_params, *, batch_tile=None):
    """x: (B, 1, 48, 48) float32 NCHW. Returns (B, 7) float32 logits."""
    w1b, b1, w2b, b2, w3b, b3 = prepped_params
    B = x.shape[0]

    # Same semantics as torch .view(B, -1); stays f32, no bf16 copy pass.
    x_flat = x.reshape(B, -1)

    TB = _select_batch_tile(B) if batch_tile is None else batch_tile
    grid = (pl.cdiv(B, TB),)           # partial tail tile is masked; no jnp.pad of x
    const = lambda i: (0, 0)           # same block every step -> VMEM-resident weights

    return pl.pallas_call(
        mlp_kernel,
        out_shape=jax.ShapeDtypeStruct((B, OUT_DIM), jnp.float32),
        grid=grid,
        in_specs=[
            pl.BlockSpec((TB, IN_DIM), lambda i: (i, 0)),   # x tile (pipelined, f32)
            pl.BlockSpec((IN_DIM, H1), const),              # w1 (bf16)
            pl.BlockSpec((1, H1), const),                   # b1 (f32)
            pl.BlockSpec((H1, H2), const),                  # w2 (bf16)
            pl.BlockSpec((1, H2), const),                   # b2 (f32)
            pl.BlockSpec((H2, W3_PAD), const),              # w3 (bf16, 128-wide)
            pl.BlockSpec((1, OUT_DIM), const),              # b3 (f32, 7-wide)
        ],
        out_specs=pl.BlockSpec((TB, OUT_DIM), lambda i: (i, 0)),
        compiler_params=pltpu.CompilerParams(
            dimension_semantics=("parallel",),
            vmem_limit_bytes=32 << 20,
        ),
    )(x_flat, w1b, b1, w2b, b2, w3b, b3)


def init_params(key):
    """Deterministic synthetic params, PyTorch Linear-style uniform init.
    Weights are returned already transposed to (in, out), all f32."""
    ks = jax.random.split(key, 6)

    def lin(kw, kb, fan_in, fan_out):
        bound = 1.0 / jnp.sqrt(fan_in)
        w = jax.random.uniform(kw, (fan_in, fan_out), jnp.float32, -bound, bound)
        b = jax.random.uniform(kb, (1, fan_out), jnp.float32, -bound, bound)
        return w, b

    w1, b1 = lin(ks[0], ks[1], IN_DIM, H1)
    w2, b2 = lin(ks[2], ks[3], H1, H2)
    w3, b3 = lin(ks[4], ks[5], H2, OUT_DIM)
    return (w1, b1, w2, b2, w3, b3)


if __name__ == "__main__":
    key = jax.random.PRNGKey(0)
    k_in, k_p = jax.random.split(key)

    B = 8
    x = jax.random.normal(k_in, (B, 1, 48, 48), jnp.float32)  # NCHW, like torch
    params = init_params(k_p)
    prepped = prepare_params(params)                          # one-time prep

    fwd = jax.jit(lambda xx: emojify_forward(xx, prepped))
    out = jax.block_until_ready(fwd(x))
    assert out.shape == (B, OUT_DIM)
    assert out.dtype == jnp.float32

    # Pure-JAX reference with the same bf16-weights / f32-accumulate math.
    w1, b1, w2, b2, w3, b3 = params
    xf = x.reshape(B, -1).astype(jnp.bfloat16)
    r1 = jnp.maximum(jnp.dot(xf, w1.astype(jnp.bfloat16),
                             preferred_element_type=jnp.float32) + b1, 0.0)
    r2 = jnp.maximum(jnp.dot(r1.astype(jnp.bfloat16), w2.astype(jnp.bfloat16),
                             preferred_element_type=jnp.float32) + b2, 0.0)
    ref = jnp.dot(r2.astype(jnp.bfloat16), w3.astype(jnp.bfloat16),
                  preferred_element_type=jnp.float32) + b3
    assert jnp.allclose(out, ref, atol=2e-3, rtol=2e-3)

    # Sanity: close to the full-f32 PyTorch math as well (bf16 quantization noise).
    f1 = jnp.maximum(x.reshape(B, -1) @ w1 + b1, 0.0)
    f2 = jnp.maximum(f1 @ w2 + b2, 0.0)
    f3 = f2 @ w3 + b3
    assert jnp.max(jnp.abs(out - f3)) < 0.1

    print("KERNEL_OK")
</pallas_src>

<mosaic_0001>
module attributes {stable_mosaic.version = 11 : i64} {
  func.func @mlp_kernel(%arg0: i32, %arg1: memref<8x2304xf32, #tpu.memory_space<vmem>>, %arg2: memref<2304x512xbf16, #tpu.memory_space<vmem>>, %arg3: memref<1x512xf32, #tpu.memory_space<vmem>>, %arg4: memref<512x64xbf16, #tpu.memory_space<vmem>>, %arg5: memref<1x64xf32, #tpu.memory_space<vmem>>, %arg6: memref<64x128xbf16, #tpu.memory_space<vmem>>, %arg7: memref<1x7xf32, #tpu.memory_space<vmem>>, %arg8: memref<8x7xf32, #tpu.memory_space<vmem>>) attributes {dimension_semantics = [#tpu.dimension_semantics<parallel>], iteration_bounds = array<i64: 1>, scalar_prefetch = 0 : i64, scratch_operands = 0 : i64, tpu.core_type = #tpu.core_type<tc>, window_params = [{transform_indices = @transform_0, window_bounds = array<i64: 8, 2304>}, {pipeline_mode = #tpu.pipeline_mode<synchronous>, transform_indices = @transform_1, window_bounds = array<i64: 2304, 512>}, {pipeline_mode = #tpu.pipeline_mode<synchronous>, transform_indices = @transform_2, window_bounds = array<i64: 1, 512>}, {pipeline_mode = #tpu.pipeline_mode<synchronous>, transform_indices = @transform_3, window_bounds = array<i64: 512, 64>}, {pipeline_mode = #tpu.pipeline_mode<synchronous>, transform_indices = @transform_4, window_bounds = array<i64: 1, 64>}, {pipeline_mode = #tpu.pipeline_mode<synchronous>, transform_indices = @transform_5, window_bounds = array<i64: 64, 128>}, {pipeline_mode = #tpu.pipeline_mode<synchronous>, transform_indices = @transform_6, window_bounds = array<i64: 1, 7>}, {transform_indices = @transform_7, window_bounds = array<i64: 8, 7>}]} {
    %c0 = arith.constant 0 : index
    %c0_0 = arith.constant 0 : index
    %0 = vector.load %arg1[%c0, %c0_0] : memref<8x2304xf32, #tpu.memory_space<vmem>>, vector<8x2304xf32>
    %1 = arith.truncf %0 : vector<8x2304xf32> to vector<8x2304xbf16>
    %c0_1 = arith.constant 0 : index
    %c0_2 = arith.constant 0 : index
    %2 = vector.load %arg2[%c0_1, %c0_2] : memref<2304x512xbf16, #tpu.memory_space<vmem>>, vector<2304x512xbf16>
    %cst = arith.constant dense<0.000000e+00> : vector<8x512xf32>
    %3 = tpu.matmul %1, %2, %cst {dimension_numbers = #tpu.dot_dimension_numbers<[1], [0], [0], [1], [0, 0, 1, 1], [], []>} : vector<8x2304xbf16>, vector<2304x512xbf16>, vector<8x512xf32> -> vector<8x512xf32>
    %c0_3 = arith.constant 0 : index
    %c0_4 = arith.constant 0 : index
    %4 = vector.load %arg3[%c0_3, %c0_4] : memref<1x512xf32, #tpu.memory_space<vmem>>, vector<1x512xf32>
    %5 = vector.broadcast %4 : vector<1x512xf32> to vector<8x512xf32>
    %6 = arith.addf %3, %5 : vector<8x512xf32>
    %cst_5 = arith.constant 0.000000e+00 : f32
    %7 = vector.broadcast %cst_5 : f32 to vector<8x512xf32>
    %8 = arith.maximumf %6, %7 : vector<8x512xf32>
    %9 = arith.truncf %8 : vector<8x512xf32> to vector<8x512xbf16>
    %c0_6 = arith.constant 0 : index
    %c0_7 = arith.constant 0 : index
    %10 = vector.load %arg4[%c0_6, %c0_7] : memref<512x64xbf16, #tpu.memory_space<vmem>>, vector<512x64xbf16>
    %cst_8 = arith.constant dense<0.000000e+00> : vector<8x64xf32>
    %11 = tpu.matmul %9, %10, %cst_8 {dimension_numbers = #tpu.dot_dimension_numbers<[1], [0], [0], [1], [0, 0, 1, 1], [], []>} : vector<8x512xbf16>, vector<512x64xbf16>, vector<8x64xf32> -> vector<8x64xf32>
    %c0_9 = arith.constant 0 : index
    %c0_10 = arith.constant 0 : index
    %12 = vector.load %arg5[%c0_9, %c0_10] : memref<1x64xf32, #tpu.memory_space<vmem>>, vector<1x64xf32>
    %13 = vector.broadcast %12 : vector<1x64xf32> to vector<8x64xf32>
    %14 = arith.addf %11, %13 : vector<8x64xf32>
    %cst_11 = arith.constant 0.000000e+00 : f32
    %15 = vector.broadcast %cst_11 : f32 to vector<8x64xf32>
    %16 = arith.maximumf %14, %15 : vector<8x64xf32>
    %17 = arith.truncf %16 : vector<8x64xf32> to vector<8x64xbf16>
    %c0_12 = arith.constant 0 : index
    %c0_13 = arith.constant 0 : index
    %18 = vector.load %arg6[%c0_12, %c0_13] : memref<64x128xbf16, #tpu.memory_space<vmem>>, vector<64x128xbf16>
    %cst_14 = arith.constant dense<0.000000e+00> : vector<8x128xf32>
    %19 = tpu.matmul %17, %18, %cst_14 {dimension_numbers = #tpu.dot_dimension_numbers<[1], [0], [0], [1], [0, 0, 1, 1], [], []>} : vector<8x64xbf16>, vector<64x128xbf16>, vector<8x128xf32> -> vector<8x128xf32>
    %20 = vector.extract_strided_slice %19 {offsets = [0, 0], sizes = [8, 7], strides = [1, 1]} : vector<8x128xf32> to vector<8x7xf32>
    %c0_15 = arith.constant 0 : index
    %c0_16 = arith.constant 0 : index
    %21 = vector.load %arg7[%c0_15, %c0_16] : memref<1x7xf32, #tpu.memory_space<vmem>>, vector<1x7xf32>
    %22 = vector.broadcast %21 : vector<1x7xf32> to vector<8x7xf32>
    %23 = arith.addf %20, %22 : vector<8x7xf32>
    %c0_17 = arith.constant 0 : index
    %c0_18 = arith.constant 0 : index
    %24 = vector.load %arg8[%c0_17, %c0_18] : memref<8x7xf32, #tpu.memory_space<vmem>>, vector<8x7xf32>
    tpu.vector_store %arg8[%c0_17, %c0_18], %23 {strides = array<i32>} : memref<8x7xf32, #tpu.memory_space<vmem>>, vector<8x7xf32>,
    return
  }
  func.func @transform_0(%arg0: i32) -> (i32, i32) {
    %c0_i32 = arith.constant 0 : i32
    %c0_i32_0 = arith.constant 0 : i32
    return %arg0, %c0_i32 : i32, i32
  }
  func.func @transform_1(%arg0: i32) -> (i32, i32) {
    %c0_i32 = arith.constant 0 : i32
    %c0_i32_0 = arith.constant 0 : i32
    %c0_i32_1 = arith.constant 0 : i32
    return %c0_i32, %c0_i32_0 : i32, i32
  }
  func.func @transform_2(%arg0: i32) -> (i32, i32) {
    %c0_i32 = arith.constant 0 : i32
    %c0_i32_0 = arith.constant 0 : i32
    %c0_i32_1 = arith.constant 0 : i32
    return %c0_i32, %c0_i32_0 : i32, i32
  }
  func.func @transform_3(%arg0: i32) -> (i32, i32) {
    %c0_i32 = arith.constant 0 : i32
    %c0_i32_0 = arith.constant 0 : i32
    %c0_i32_1 = arith.constant 0 : i32
    return %c0_i32, %c0_i32_0 : i32, i32
  }
  func.func @transform_4(%arg0: i32) -> (i32, i32) {
    %c0_i32 = arith.constant 0 : i32
    %c0_i32_0 = arith.constant 0 : i32
    %c0_i32_1 = arith.constant 0 : i32
    return %c0_i32, %c0_i32_0 : i32, i32
  }
  func.func @transform_5(%arg0: i32) -> (i32, i32) {
    %c0_i32 = arith.constant 0 : i32
    %c0_i32_0 = arith.constant 0 : i32
    %c0_i32_1 = arith.constant 0 : i32
    return %c0_i32, %c0_i32_0 : i32, i32
  }
  func.func @transform_6(%arg0: i32) -> (i32, i32) {
    %c0_i32 = arith.constant 0 : i32
    %c0_i32_0 = arith.constant 0 : i32
    %c0_i32_1 = arith.constant 0 : i32
    return %c0_i32, %c0_i32_0 : i32, i32
  }
  func.func @transform_7(%arg0: i32) -> (i32, i32) {
    %c0_i32 = arith.constant 0 : i32
    %c0_i32_0 = arith.constant 0 : i32
    return %arg0, %c0_i32 : i32, i32
  }
}

</mosaic_0001>

<llo_original>
// kernel: _lambda_.1
$region0: #{_lambda_.1}
  #allocation0 [shape = 'u32[]', space=smem, size = 0x4, offset = 0x4, fixed_abs, tag = 'smem constant byte address 0x4 - core index']
  #allocation1 [shape = 'u32[144,128]{1,0:T(1,128)}', space=vmem, size = 0x12000, scoped, tag = 'internal scratch']
  %s0 = inlined_call_operand.vmem [shape: f32[8,2304], index: 0, kind: input, shape index: {}]
  %s1 = inlined_call_operand.vmem [shape: bf16[2304,512], index: 1, kind: input, shape index: {}]
  %s2 = inlined_call_operand.vmem [shape: f32[1,512], index: 2, kind: input, shape index: {}]
  %s3 = inlined_call_operand.vmem [shape: bf16[512,64], index: 3, kind: input, shape index: {}]
  %s4 = inlined_call_operand.vmem [shape: f32[1,64], index: 4, kind: input, shape index: {}]
  %s5 = inlined_call_operand.vmem [shape: bf16[64,128], index: 5, kind: input, shape index: {}]
  %s6 = inlined_call_operand.vmem [shape: f32[1,7], index: 6, kind: input, shape index: {}]
  %s7 = inlined_call_operand.hbm [shape: f32[8,7], index: 7, kind: output, shape index: {}]
  %s8 = sld [smem:[#allocation0]]
  $region38: #{_lambda_.1} parent=0
    _
  %s10 = ssub.s32 1, %s8
  %s11 = scalar_select 0, %s10, %s8
  $region1: #{_lambda_.1} parent=0
    #allocation2 [shape = 'u8[4096]{0}', space=vmem, size = 0x1000, scoped, tag = 'output window, operand 0, single buffered']
    #allocation3 [shape = 's32[1]{0}', space=sflag, size = 0x4, scoped, tag = 'scoped memory for _lambda_.1']
    %12 = vsyncpa [#allocation3], 0
    // Predicated region
    $region2: #{_lambda_.1} parent=1 // pred_check
      _
    $region3: #{_lambda_.1} parent=1 // pred_check_branch
      %14 = sbr.rel (0) target = $region5
    $region4: #{_lambda_.1} parent=1 // pred_region
      _
    $region5: #{_lambda_.1} parent=1 // pred_fallthru
      _
    // Predicated region
    $region6: #{_lambda_.1} parent=1 // pred_check
      _
    $region7: #{_lambda_.1} parent=1 // pred_check_branch
      %16 = sbr.rel (0) target = $region9
    $region8: #{_lambda_.1} parent=1 // pred_region
      _
    $region9: #{_lambda_.1} parent=1 // pred_fallthru
      _
    // Predicated region
    $region10: #{_lambda_.1} parent=1 // pred_check
      _
    $region11: #{_lambda_.1} parent=1 // pred_check_branch
      %18 = sbr.rel (0) target = $region13
    $region12: #{_lambda_.1} parent=1 // pred_region
      _
    $region13: #{_lambda_.1} parent=1 // pred_fallthru
      _
    // Predicated region
    $region14: #{_lambda_.1} parent=1 // pred_check
      _
    $region15: #{_lambda_.1} parent=1 // pred_check_branch
      %20 = sbr.rel (0) target = $region17
    $region16: #{_lambda_.1} parent=1 // pred_region
      _
    $region17: #{_lambda_.1} parent=1 // pred_fallthru
      _
    // Predicated region
    $region18: #{_lambda_.1} parent=1 // pred_check
      _
    $region19: #{_lambda_.1} parent=1 // pred_check_branch
      %22 = sbr.rel (0) target = $region21
    $region20: #{_lambda_.1} parent=1 // pred_region
      _
    $region21: #{_lambda_.1} parent=1 // pred_fallthru
      _
    // Predicated region
    $region22: #{_lambda_.1} parent=1 // pred_check
      _
    $region23: #{_lambda_.1} parent=1 // pred_check_branch
      %24 = sbr.rel (0) target = $region25
    $region24: #{_lambda_.1} parent=1 // pred_region
      _
    $region25: #{_lambda_.1} parent=1 // pred_fallthru
      _
    // Predicated region
    $region26: #{_lambda_.1} parent=1 // pred_check
      _
    $region27: #{_lambda_.1} parent=1 // pred_check_branch
      %26 = sbr.rel (0) target = $region29
    $region28: #{_lambda_.1} parent=1 // pred_region
      _
    $region29: #{_lambda_.1} parent=1 // pred_fallthru
      _
    %v28 = vld [vmem:[%s0] sm:$0xff]
    %v29 = vld [vmem:[%s0 + $0x8] sm:$0xff]
    %v30 = vld [vmem:[%s0 + $0x10] sm:$0xff]
    %v31 = vld [vmem:[%s0 + $0x18] sm:$0xff]
    %v32 = vld [vmem:[%s0 + $0x20] sm:$0xff]
    %v33 = vld [vmem:[%s0 + $0x28] sm:$0xff]
    %v34 = vld [vmem:[%s0 + $0x30] sm:$0xff]
    %v35 = vld [vmem:[%s0 + $0x38] sm:$0xff]
    %v36 = vld [vmem:[%s0 + $0x40] sm:$0xff]
    %v37 = vld [vmem:[%s0 + $0x48] sm:$0xff]
    %v38 = vld [vmem:[%s0 + $0x50] sm:$0xff]
    %v39 = vld [vmem:[%s0 + $0x58] sm:$0xff]
    %v40 = vld [vmem:[%s0 + $0x60] sm:$0xff]
    %v41 = vld [vmem:[%s0 + $0x68] sm:$0xff]
    %v42 = vld [vmem:[%s0 + $0x70] sm:$0xff]
    %v43 = vld [vmem:[%s0 + $0x78] sm:$0xff]
    %v44 = vld [vmem:[%s0 + $0x80] sm:$0xff]
    %v45 = vld [vmem:[%s0 + $0x88] sm:$0xff]
    %v46 = vpack.c.bf16 %v28, %v28
    %v47 = vpack.c.bf16 %v29, %v29
    %v48 = vpack.c.bf16 %v30, %v30
    %v49 = vpack.c.bf16 %v31, %v31
    %v50 = vpack.c.bf16 %v32, %v32
    %v51 = vpack.c.bf16 %v33, %v33
    %v52 = vpack.c.bf16 %v34, %v34
    %v53 = vpack.c.bf16 %v35, %v35
    %v54 = vpack.c.bf16 %v36, %v36
    %v55 = vpack.c.bf16 %v37, %v37
    %v56 = vpack.c.bf16 %v38, %v38
    %v57 = vpack.c.bf16 %v39, %v39
    %v58 = vpack.c.bf16 %v40, %v40
    %v59 = vpack.c.bf16 %v41, %v41
    %v60 = vpack.c.bf16 %v42, %v42
    %v61 = vpack.c.bf16 %v43, %v43
    %v62 = vpack.c.bf16 %v44, %v44
    %v63 = vpack.c.bf16 %v45, %v45
    %v64 = vld [vmem:[%s1] sm:$0xff]
    %v65 = vld [vmem:[%s1 + $0x8] sm:$0xff]
    %v66 = vld [vmem:[%s1 + $0x10] sm:$0xff]
    %v67 = vld [vmem:[%s1 + $0x18] sm:$0xff]
    %v68 = vld [vmem:[%s1 + $0x20] sm:$0xff]
    %v69 = vld [vmem:[%s1 + $0x28] sm:$0xff]
    %v70 = vld [vmem:[%s1 + $0x30] sm:$0xff]
    %v71 = vld [vmem:[%s1 + $0x38] sm:$0xff]
    %v72 = vld [vmem:[%s1 + $0x40] sm:$0xff]
    %v73 = vld [vmem:[%s1 + $0x48] sm:$0xff]
    %v74 = vld [vmem:[%s1 + $0x50] sm:$0xff]
    %v75 = vld [vmem:[%s1 + $0x58] sm:$0xff]
    %v76 = vld [vmem:[%s1 + $0x60] sm:$0xff]
    %v77 = vld [vmem:[%s1 + $0x68] sm:$0xff]
    %v78 = vld [vmem:[%s1 + $0x70] sm:$0xff]
    %v79 = vld [vmem:[%s1 + $0x78] sm:$0xff]
    %v80 = vld [vmem:[%s1 + $0x80] sm:$0xff]
    %v81 = vld [vmem:[%s1 + $0x88] sm:$0xff]
    %v82 = vld [vmem:[%s1 + $0x90] sm:$0xff]
    %v83 = vld [vmem:[%s1 + $0x98] sm:$0xff]
    %v84 = vld [vmem:[%s1 + $0xa0] sm:$0xff]
    %v85 = vld [vmem:[%s1 + $0xa8] sm:$0xff]
    %v86 = vld [vmem:[%s1 + $0xb0] sm:$0xff]
    %v87 = vld [vmem:[%s1 + $0xb8] sm:$0xff]
    %v88 = vld [vmem:[%s1 + $0xc0] sm:$0xff]
    %v89 = vld [vmem:[%s1 + $0xc8] sm:$0xff]
    %v90 = vld [vmem:[%s1 + $0xd0] sm:$0xff]
    %v91 = vld [vmem:[%s1 + $0xd8] sm:$0xff]
    %v92 = vld [vmem:[%s1 + $0xe0] sm:$0xff]
    %v93 = vld [vmem:[%s1 + $0xe8] sm:$0xff]
    %v94 = vld [vmem:[%s1 + $0xf0] sm:$0xff]
    %v95 = vld [vmem:[%s1 + $0xf8] sm:$0xff]
    %v96 = vld [vmem:[%s1 + $0x100] sm:$0xff]
    %v97 = vld [vmem:[%s1 + $0x108] sm:$0xff]
    %v98 = vld [vmem:[%s1 + $0x110] sm:$0xff]
    %v99 = vld [vmem:[%s1 + $0x118] sm:$0xff]
    %v100 = vld [vmem:[%s1 + $0x120] sm:$0xff]
    %v101 = vld [vmem:[%s1 + $0x128] sm:$0xff]
    %v102 = vld [vmem:[%s1 + $0x130] sm:$0xff]
    %v103 = vld [vmem:[%s1 + $0x138] sm:$0xff]
    %v104 = vld [vmem:[%s1 + $0x140] sm:$0xff]
    %v105 = vld [vmem:[%s1 + $0x148] sm:$0xff]
    %v106 = vld [vmem:[%s1 + $0x150] sm:$0xff]
    %v107 = vld [vmem:[%s1 + $0x158] sm:$0xff]
    %v108 = vld [vmem:[%s1 + $0x160] sm:$0xff]
    %v109 = vld [vmem:[%s1 + $0x168] sm:$0xff]
    %v110 = vld [vmem:[%s1 + $0x170] sm:$0xff]
    %v111 = vld [vmem:[%s1 + $0x178] sm:$0xff]
    %v112 = vld [vmem:[%s1 + $0x180] sm:$0xff]
    %v113 = vld [vmem:[%s1 + $0x188] sm:$0xff]
    %v114 = vld [vmem:[%s1 + $0x190] sm:$0xff]
    %v115 = vld [vmem:[%s1 + $0x198] sm:$0xff]
    %v116 = vld [vmem:[%s1 + $0x1a0] sm:$0xff]
    %v117 = vld [vmem:[%s1 + $0x1a8] sm:$0xff]
    %v118 = vld [vmem:[%s1 + $0x1b0] sm:$0xff]
    %v119 = vld [vmem:[%s1 + $0x1b8] sm:$0xff]
    %v120 = vld [vmem:[%s1 + $0x1c0] sm:$0xff]
    %v121 = vld [vmem:[%s1 + $0x1c8] sm:$0xff]
    %v122 = vld [vmem:[%s1 + $0x1d0] sm:$0xff]
    %v123 = vld [vmem:[%s1 + $0x1d8] sm:$0xff]
    %v124 = vld [vmem:[%s1 + $0x1e0] sm:$0xff]
    %v125 = vld [vmem:[%s1 + $0x1e8] sm:$0xff]
    %v126 = vld [vmem:[%s1 + $0x1f0] sm:$0xff]
    %v127 = vld [vmem:[%s1 + $0x1f8] sm:$0xff]
    %v128 = vld [vmem:[%s1 + $0x200] sm:$0xff]
    %v129 = vld [vmem:[%s1 + $0x208] sm:$0xff]
    %v130 = vld [vmem:[%s1 + $0x210] sm:$0xff]
    %v131 = vld [vmem:[%s1 + $0x218] sm:$0xff]
    %v132 = vld [vmem:[%s1 + $0x220] sm:$0xff]
    %v133 = vld [vmem:[%s1 + $0x228] sm:$0xff]
    %v134 = vld [vmem:[%s1 + $0x230] sm:$0xff]
    %v135 = vld [vmem:[%s1 + $0x238] sm:$0xff]
    %v136 = vld [vmem:[%s1 + $0x240] sm:$0xff]
    %v137 = vld [vmem:[%s1 + $0x248] sm:$0xff]
    %v138 = vld [vmem:[%s1 + $0x250] sm:$0xff]
    %v139 = vld [vmem:[%s1 + $0x258] sm:$0xff]
    %v140 = vld [vmem:[%s1 + $0x260] sm:$0xff]
    %v141 = vld [vmem:[%s1 + $0x268] sm:$0xff]
    %v142 = vld [vmem:[%s1 + $0x270] sm:$0xff]
    %v143 = vld [vmem:[%s1 + $0x278] sm:$0xff]
    %v144 = vld [vmem:[%s1 + $0x280] sm:$0xff]
    %v145 = vld [vmem:[%s1 + $0x288] sm:$0xff]
    %v146 = vld [vmem:[%s1 + $0x290] sm:$0xff]
    %v147 = vld [vmem:[%s1 + $0x298] sm:$0xff]
    %v148 = vld [vmem:[%s1 + $0x2a0] sm:$0xff]
    %v149 = vld [vmem:[%s1 + $0x2a8] sm:$0xff]
    %v150 = vld [vmem:[%s1 + $0x2b0] sm:$0xff]
    %v151 = vld [vmem:[%s1 + $0x2b8] sm:$0xff]
    %v152 = vld [vmem:[%s1 + $0x2c0] sm:$0xff]
    %v153 = vld [vmem:[%s1 + $0x2c8] sm:$0xff]
    %v154 = vld [vmem:[%s1 + $0x2d0] sm:$0xff]
    %v155 = vld [vmem:[%s1 + $0x2d8] sm:$0xff]
    %v156 = vld [vmem:[%s1 + $0x2e0] sm:$0xff]
    %v157 = vld [vmem:[%s1 + $0x2e8] sm:$0xff]
    %v158 = vld [vmem:[%s1 + $0x2f0] sm:$0xff]
    %v159 = vld [vmem:[%s1 + $0x2f8] sm:$0xff]
    %v160 = vld [vmem:[%s1 + $0x300] sm:$0xff]
    %v161 = vld [vmem:[%s1 + $0x308] sm:$0xff]
    %v162 = vld [vmem:[%s1 + $0x310] sm:$0xff]
    %v163 = vld [vmem:[%s1 + $0x318] sm:$0xff]
    %v164 = vld [vmem:[%s1 + $0x320] sm:$0xff]
    %v165 = vld [vmem:[%s1 + $0x328] sm:$0xff]
    %v166 = vld [vmem:[%s1 + $0x330] sm:$0xff]
    %v167 = vld [vmem:[%s1 + $0x338] sm:$0xff]
    %v168 = vld [vmem:[%s1 + $0x340] sm:$0xff]
    %v169 = vld [vmem:[%s1 + $0x348] sm:$0xff]
    %v170 = vld [vmem:[%s1 + $0x350] sm:$0xff]
    %v171 = vld [vmem:[%s1 + $0x358] sm:$0xff]
    %v172 = vld [vmem:[%s1 + $0x360] sm:$0xff]
    %v173 = vld [vmem:[%s1 + $0x368] sm:$0xff]
    %v174 = vld [vmem:[%s1 + $0x370] sm:$0xff]
    %v175 = vld [vmem:[%s1 + $0x378] sm:$0xff]
    %v176 = vld [vmem:[%s1 + $0x380] sm:$0xff]
    %v177 = vld [vmem:[%s1 + $0x388] sm:$0xff]
    %v178 = vld [vmem:[%s1 + $0x390] sm:$0xff]
    %v179 = vld [vmem:[%s1 + $0x398] sm:$0xff]
    %v180 = vld [vmem:[%s1 + $0x3a0] sm:$0xff]
    %v181 = vld [vmem:[%s1 + $0x3a8] sm:$0xff]
    %v182 = vld [vmem:[%s1 + $0x3b0] sm:$0xff]
    %v183 = vld [vmem:[%s1 + $0x3b8] sm:$0xff]
    %v184 = vld [vmem:[%s1 + $0x3c0] sm:$0xff]
    %v185 = vld [vmem:[%s1 + $0x3c8] sm:$0xff]
    %v186 = vld [vmem:[%s1 + $0x3d0] sm:$0xff]
    %v187 = vld [vmem:[%s1 + $0x3d8] sm:$0xff]
    %v188 = vld [vmem:[%s1 + $0x3e0] sm:$0xff]
    %v189 = vld [vmem:[%s1 + $0x3e8] sm:$0xff]
    %v190 = vld [vmem:[%s1 + $0x3f0] sm:$0xff]
    %v191 = vld [vmem:[%s1 + $0x3f8] sm:$0xff]
    %v192 = vld [vmem:[%s1 + $0x400] sm:$0xff]
    %v193 = vld [vmem:[%s1 + $0x408] sm:$0xff]
    %v194 = vld [vmem:[%s1 + $0x410] sm:$0xff]
    %v195 = vld [vmem:[%s1 + $0x418] sm:$0xff]
    %v196 = vld [vmem:[%s1 + $0x420] sm:$0xff]
    %v197 = vld [vmem:[%s1 + $0x428] sm:$0xff]
    %v198 = vld [vmem:[%s1 + $0x430] sm:$0xff]
    %v199 = vld [vmem:[%s1 + $0x438] sm:$0xff]
    %v200 = vld [vmem:[%s1 + $0x440] sm:$0xff]
    %v201 = vld [vmem:[%s1 + $0x448] sm:$0xff]
    %v202 = vld [vmem:[%s1 + $0x450] sm:$0xff]
    %v203 = vld [vmem:[%s1 + $0x458] sm:$0xff]
    %v204 = vld [vmem:[%s1 + $0x460] sm:$0xff]
    %v205 = vld [vmem:[%s1 + $0x468] sm:$0xff]
    %v206 = vld [vmem:[%s1 + $0x470] sm:$0xff]
    %v207 = vld [vmem:[%s1 + $0x478] sm:$0xff]
    %v208 = vld [vmem:[%s1 + $0x480] sm:$0xff]
    %v209 = vld [vmem:[%s1 + $0x488] sm:$0xff]
    %v210 = vld [vmem:[%s1 + $0x490] sm:$0xff]
    %v211 = vld [vmem:[%s1 + $0x498] sm:$0xff]
    %v212 = vld [vmem:[%s1 + $0x4a0] sm:$0xff]
    %v213 = vld [vmem:[%s1 + $0x4a8] sm:$0xff]
    %v214 = vld [vmem:[%s1 + $0x4b0] sm:$0xff]
    %v215 = vld [vmem:[%s1 + $0x4b8] sm:$0xff]
    %v216 = vld [vmem:[%s1 + $0x4c0] sm:$0xff]
    %v217 = vld [vmem:[%s1 + $0x4c8] sm:$0xff]
    %v218 = vld [vmem:[%s1 + $0x4d0] sm:$0xff]
    %v219 = vld [vmem:[%s1 + $0x4d8] sm:$0xff]
    %v220 = vld [vmem:[%s1 + $0x4e0] sm:$0xff]
    %v221 = vld [vmem:[%s1 + $0x4e8] sm:$0xff]
    %v222 = vld [vmem:[%s1 + $0x4f0] sm:$0xff]
    %v223 = vld [vmem:[%s1 + $0x4f8] sm:$0xff]
    %v224 = vld [vmem:[%s1 + $0x500] sm:$0xff]
    %v225 = vld [vmem:[%s1 + $0x508] sm:$0xff]
    %v226 = vld [vmem:[%s1 + $0x510] sm:$0xff]
    %v227 = vld [vmem:[%s1 + $0x518] sm:$0xff]
    %v228 = vld [vmem:[%s1 + $0x520] sm:$0xff]
    %v229 = vld [vmem:[%s1 + $0x528] sm:$0xff]
    %v230 = vld [vmem:[%s1 + $0x530] sm:$0xff]
    %v231 = vld [vmem:[%s1 + $0x538] sm:$0xff]
    %v232 = vld [vmem:[%s1 + $0x540] sm:$0xff]
    %v233 = vld [vmem:[%s1 + $0x548] sm:$0xff]
    %v234 = vld [vmem:[%s1 + $0x550] sm:$0xff]
    %v235 = vld [vmem:[%s1 + $0x558] sm:$0xff]
    %v236 = vld [vmem:[%s1 + $0x560] sm:$0xff]
    %v237 = vld [vmem:[%s1 + $0x568] sm:$0xff]
    %v238 = vld [vmem:[%s1 + $0x570] sm:$0xff]
    %v239 = vld [vmem:[%s1 + $0x578] sm:$0xff]
    %v240 = vld [vmem:[%s1 + $0x580] sm:$0xff]
    %v241 = vld [vmem:[%s1 + $0x588] sm:$0xff]
    %v242 = vld [vmem:[%s1 + $0x590] sm:$0xff]
    %v243 = vld [vmem:[%s1 + $0x598] sm:$0xff]
    %v244 = vld [vmem:[%s1 + $0x5a0] sm:$0xff]
    %v245 = vld [vmem:[%s1 + $0x5a8] sm:$0xff]
    %v246 = vld [vmem:[%s1 + $0x5b0] sm:$0xff]
    %v247 = vld [vmem:[%s1 + $0x5b8] sm:$0xff]
    %v248 = vld [vmem:[%s1 + $0x5c0] sm:$0xff]
    %v249 = vld [vmem:[%s1 + $0x5c8] sm:$0xff]
    %v250 = vld [vmem:[%s1 + $0x5d0] sm:$0xff]
    %v251 = vld [vmem:[%s1 + $0x5d8] sm:$0xff]
    %v252 = vld [vmem:[%s1 + $0x5e0] sm:$0xff]
    %v253 = vld [vmem:[%s1 + $0x5e8] sm:$0xff]
    %v254 = vld [vmem:[%s1 + $0x5f0] sm:$0xff]
    %v255 = vld [vmem:[%s1 + $0x5f8] sm:$0xff]
    %v256 = vld [vmem:[%s1 + $0x600] sm:$0xff]
    %v257 = vld [vmem:[%s1 + $0x608] sm:$0xff]
    %v258 = vld [vmem:[%s1 + $0x610] sm:$0xff]
    %v259 = vld [vmem:[%s1 + $0x618] sm:$0xff]
    %v260 = vld [vmem:[%s1 + $0x620] sm:$0xff]
    %v261 = vld [vmem:[%s1 + $0x628] sm:$0xff]
    %v262 = vld [vmem:[%s1 + $0x630] sm:$0xff]
    %v263 = vld [vmem:[%s1 + $0x638] sm:$0xff]
    %v264 = vld [vmem:[%s1 + $0x640] sm:$0xff]
    %v265 = vld [vmem:[%s1 + $0x648] sm:$0xff]
    %v266 = vld [vmem:[%s1 + $0x650] sm:$0xff]
    %v267 = vld [vmem:[%s1 + $0x658] sm:$0xff]
    %v268 = vld [vmem:[%s1 + $0x660] sm:$0xff]
    %v269 = vld [vmem:[%s1 + $0x668] sm:$0xff]
    %v270 = vld [vmem:[%s1 + $0x670] sm:$0xff]
    %v271 = vld [vmem:[%s1 + $0x678] sm:$0xff]
    %v272 = vld [vmem:[%s1 + $0x680] sm:$0xff]
    %v273 = vld [vmem:[%s1 + $0x688] sm:$0xff]
    %v274 = vld [vmem:[%s1 + $0x690] sm:$0xff]
    %v275 = vld [vmem:[%s1 + $0x698] sm:$0xff]
    %v276 = vld [vmem:[%s1 + $0x6a0] sm:$0xff]
    %v277 = vld [vmem:[%s1 + $0x6a8] sm:$0xff]
    %v278 = vld [vmem:[%s1 + $0x6b0] sm:$0xff]
    %v279 = vld [vmem:[%s1 + $0x6b8] sm:$0xff]
    %v280 = vld [vmem:[%s1 + $0x6c0] sm:$0xff]
    %v281 = vld [vmem:[%s1 + $0x6c8] sm:$0xff]
    %v282 = vld [vmem:[%s1 + $0x6d0] sm:$0xff]
    %v283 = vld [vmem:[%s1 + $0x6d8] sm:$0xff]
    %v284 = vld [vmem:[%s1 + $0x6e0] sm:$0xff]
    %v285 = vld [vmem:[%s1 + $0x6e8] sm:$0xff]
    %v286 = vld [vmem:[%s1 + $0x6f0] sm:$0xff]
    %v287 = vld [vmem:[%s1 + $0x6f8] sm:$0xff]
    %v288 = vld [vmem:[%s1 + $0x700] sm:$0xff]
    %v289 = vld [vmem:[%s1 + $0x708] sm:$0xff]
    %v290 = vld [vmem:[%s1 + $0x710] sm:$0xff]
    %v291 = vld [vmem:[%s1 + $0x718] sm:$0xff]
    %v292 = vld [vmem:[%s1 + $0x720] sm:$0xff]
    %v293 = vld [vmem:[%s1 + $0x728] sm:$0xff]
    %v294 = vld [vmem:[%s1 + $0x730] sm:$0xff]
    %v295 = vld [vmem:[%s1 + $0x738] sm:$0xff]
    %v296 = vld [vmem:[%s1 + $0x740] sm:$0xff]
    %v297 = vld [vmem:[%s1 + $0x748] sm:$0xff]
    %v298 = vld [vmem:[%s1 + $0x750] sm:$0xff]
    %v299 = vld [vmem:[%s1 + $0x758] sm:$0xff]
    %v300 = vld [vmem:[%s1 + $0x760] sm:$0xff]
    %v301 = vld [vmem:[%s1 + $0x768] sm:$0xff]
    %v302 = vld [vmem:[%s1 + $0x770] sm:$0xff]
    %v303 = vld [vmem:[%s1 + $0x778] sm:$0xff]
    %v304 = vld [vmem:[%s1 + $0x780] sm:$0xff]
    %v305 = vld [vmem:[%s1 + $0x788] sm:$0xff]
    %v306 = vld [vmem:[%s1 + $0x790] sm:$0xff]
    %v307 = vld [vmem:[%s1 + $0x798] sm:$0xff]
    %v308 = vld [vmem:[%s1 + $0x7a0] sm:$0xff]
    %v309 = vld [vmem:[%s1 + $0x7a8] sm:$0xff]
    %v310 = vld [vmem:[%s1 + $0x7b0] sm:$0xff]
    %v311 = vld [vmem:[%s1 + $0x7b8] sm:$0xff]
    %v312 = vld [vmem:[%s1 + $0x7c0] sm:$0xff]
    %v313 = vld [vmem:[%s1 + $0x7c8] sm:$0xff]
    %v314 = vld [vmem:[%s1 + $0x7d0] sm:$0xff]
    %v315 = vld [vmem:[%s1 + $0x7d8] sm:$0xff]
    %v316 = vld [vmem:[%s1 + $0x7e0] sm:$0xff]
    %v317 = vld [vmem:[%s1 + $0x7e8] sm:$0xff]
    %v318 = vld [vmem:[%s1 + $0x7f0] sm:$0xff]
    %v319 = vld [vmem:[%s1 + $0x7f8] sm:$0xff]
    %v320 = vld [vmem:[%s1 + $0x800] sm:$0xff]
    %v321 = vld [vmem:[%s1 + $0x808] sm:$0xff]
    %v322 = vld [vmem:[%s1 + $0x810] sm:$0xff]
    %v323 = vld [vmem:[%s1 + $0x818] sm:$0xff]
    %v324 = vld [vmem:[%s1 + $0x820] sm:$0xff]
    %v325 = vld [vmem:[%s1 + $0x828] sm:$0xff]
    %v326 = vld [vmem:[%s1 + $0x830] sm:$0xff]
    %v327 = vld [vmem:[%s1 + $0x838] sm:$0xff]
    %v328 = vld [vmem:[%s1 + $0x840] sm:$0xff]
    %v329 = vld [vmem:[%s1 + $0x848] sm:$0xff]
    %v330 = vld [vmem:[%s1 + $0x850] sm:$0xff]
    %v331 = vld [vmem:[%s1 + $0x858] sm:$0xff]
    %v332 = vld [vmem:[%s1 + $0x860] sm:$0xff]
    %v333 = vld [vmem:[%s1 + $0x868] sm:$0xff]
    %v334 = vld [vmem:[%s1 + $0x870] sm:$0xff]
    %v335 = vld [vmem:[%s1 + $0x878] sm:$0xff]
    %v336 = vld [vmem:[%s1 + $0x880] sm:$0xff]
    %v337 = vld [vmem:[%s1 + $0x888] sm:$0xff]
    %v338 = vld [vmem:[%s1 + $0x890] sm:$0xff]
    %v339 = vld [vmem:[%s1 + $0x898] sm:$0xff]
    %v340 = vld [vmem:[%s1 + $0x8a0] sm:$0xff]
    %v341 = vld [vmem:[%s1 + $0x8a8] sm:$0xff]
    %v342 = vld [vmem:[%s1 + $0x8b0] sm:$0xff]
    %v343 = vld [vmem:[%s1 + $0x8b8] sm:$0xff]
    %v344 = vld [vmem:[%s1 + $0x8c0] sm:$0xff]
    %v345 = vld [vmem:[%s1 + $0x8c8] sm:$0xff]
    %v346 = vld [vmem:[%s1 + $0x8d0] sm:$0xff]
    %v347 = vld [vmem:[%s1 + $0x8d8] sm:$0xff]
    %v348 = vld [vmem:[%s1 + $0x8e0] sm:$0xff]
    %v349 = vld [vmem:[%s1 + $0x8e8] sm:$0xff]
    %v350 = vld [vmem:[%s1 + $0x8f0] sm:$0xff]
    %v351 = vld [vmem:[%s1 + $0x8f8] sm:$0xff]
    %v352 = vld [vmem:[%s1 + $0x900] sm:$0xff]
    %v353 = vld [vmem:[%s1 + $0x908] sm:$0xff]
    %v354 = vld [vmem:[%s1 + $0x910] sm:$0xff]
    %v355 = vld [vmem:[%s1 + $0x918] sm:$0xff]
    %v356 = vld [vmem:[%s1 + $0x920] sm:$0xff]
    %v357 = vld [vmem:[%s1 + $0x928] sm:$0xff]
    %v358 = vld [vmem:[%s1 + $0x930] sm:$0xff]
    %v359 = vld [vmem:[%s1 + $0x938] sm:$0xff]
    %v360 = vld [vmem:[%s1 + $0x940] sm:$0xff]
    %v361 = vld [vmem:[%s1 + $0x948] sm:$0xff]
    %v362 = vld [vmem:[%s1 + $0x950] sm:$0xff]
    %v363 = vld [vmem:[%s1 + $0x958] sm:$0xff]
    %v364 = vld [vmem:[%s1 + $0x960] sm:$0xff]
    %v365 = vld [vmem:[%s1 + $0x968] sm:$0xff]
    %v366 = vld [vmem:[%s1 + $0x970] sm:$0xff]
    %v367 = vld [vmem:[%s1 + $0x978] sm:$0xff]
    %v368 = vld [vmem:[%s1 + $0x980] sm:$0xff]
    %v369 = vld [vmem:[%s1 + $0x988] sm:$0xff]
    %v370 = vld [vmem:[%s1 + $0x990] sm:$0xff]
    %v371 = vld [vmem:[%s1 + $0x998] sm:$0xff]
    %v372 = vld [vmem:[%s1 + $0x9a0] sm:$0xff]
    %v373 = vld [vmem:[%s1 + $0x9a8] sm:$0xff]
    %v374 = vld [vmem:[%s1 + $0x9b0] sm:$0xff]
    %v375 = vld [vmem:[%s1 + $0x9b8] sm:$0xff]
    %v376 = vld [vmem:[%s1 + $0x9c0] sm:$0xff]
    %v377 = vld [vmem:[%s1 + $0x9c8] sm:$0xff]
    %v378 = vld [vmem:[%s1 + $0x9d0] sm:$0xff]
    %v379 = vld [vmem:[%s1 + $0x9d8] sm:$0xff]
    %v380 = vld [vmem:[%s1 + $0x9e0] sm:$0xff]
    %v381 = vld [vmem:[%s1 + $0x9e8] sm:$0xff]
    %v382 = vld [vmem:[%s1 + $0x9f0] sm:$0xff]
    %v383 = vld [vmem:[%s1 + $0x9f8] sm:$0xff]
    %v384 = vld [vmem:[%s1 + $0xa00] sm:$0xff]
    %v385 = vld [vmem:[%s1 + $0xa08] sm:$0xff]
    %v386 = vld [vmem:[%s1 + $0xa10] sm:$0xff]
    %v387 = vld [vmem:[%s1 + $0xa18] sm:$0xff]
    %v388 = vld [vmem:[%s1 + $0xa20] sm:$0xff]
    %v389 = vld [vmem:[%s1 + $0xa28] sm:$0xff]
    %v390 = vld [vmem:[%s1 + $0xa30] sm:$0xff]
    %v391 = vld [vmem:[%s1 + $0xa38] sm:$0xff]
    %v392 = vld [vmem:[%s1 + $0xa40] sm:$0xff]
    %v393 = vld [vmem:[%s1 + $0xa48] sm:$0xff]
    %v394 = vld [vmem:[%s1 + $0xa50] sm:$0xff]
    %v395 = vld [vmem:[%s1 + $0xa58] sm:$0xff]
    %v396 = vld [vmem:[%s1 + $0xa60] sm:$0xff]
    %v397 = vld [vmem:[%s1 + $0xa68] sm:$0xff]
    %v398 = vld [vmem:[%s1 + $0xa70] sm:$0xff]
    %v399 = vld [vmem:[%s1 + $0xa78] sm:$0xff]
    %v400 = vld [vmem:[%s1 + $0xa80] sm:$0xff]
    %v401 = vld [vmem:[%s1 + $0xa88] sm:$0xff]
    %v402 = vld [vmem:[%s1 + $0xa90] sm:$0xff]
    %v403 = vld [vmem:[%s1 + $0xa98] sm:$0xff]
    %v404 = vld [vmem:[%s1 + $0xaa0] sm:$0xff]
    %v405 = vld [vmem:[%s1 + $0xaa8] sm:$0xff]
    %v406 = vld [vmem:[%s1 + $0xab0] sm:$0xff]
    %v407 = vld [vmem:[%s1 + $0xab8] sm:$0xff]
    %v408 = vld [vmem:[%s1 + $0xac0] sm:$0xff]
    %v409 = vld [vmem:[%s1 + $0xac8] sm:$0xff]
    %v410 = vld [vmem:[%s1 + $0xad0] sm:$0xff]
    %v411 = vld [vmem:[%s1 + $0xad8] sm:$0xff]
    %v412 = vld [vmem:[%s1 + $0xae0] sm:$0xff]
    %v413 = vld [vmem:[%s1 + $0xae8] sm:$0xff]
    %v414 = vld [vmem:[%s1 + $0xaf0] sm:$0xff]
    %v415 = vld [vmem:[%s1 + $0xaf8] sm:$0xff]
    %v416 = vld [vmem:[%s1 + $0xb00] sm:$0xff]
    %v417 = vld [vmem:[%s1 + $0xb08] sm:$0xff]
    %v418 = vld [vmem:[%s1 + $0xb10] sm:$0xff]
    %v419 = vld [vmem:[%s1 + $0xb18] sm:$0xff]
    %v420 = vld [vmem:[%s1 + $0xb20] sm:$0xff]
    %v421 = vld [vmem:[%s1 + $0xb28] sm:$0xff]
    %v422 = vld [vmem:[%s1 + $0xb30] sm:$0xff]
    %v423 = vld [vmem:[%s1 + $0xb38] sm:$0xff]
    %v424 = vld [vmem:[%s1 + $0xb40] sm:$0xff]
    %v425 = vld [vmem:[%s1 + $0xb48] sm:$0xff]
    %v426 = vld [vmem:[%s1 + $0xb50] sm:$0xff]
    %v427 = vld [vmem:[%s1 + $0xb58] sm:$0xff]
    %v428 = vld [vmem:[%s1 + $0xb60] sm:$0xff]
    %v429 = vld [vmem:[%s1 + $0xb68] sm:$0xff]
    %v430 = vld [vmem:[%s1 + $0xb70] sm:$0xff]
    %v431 = vld [vmem:[%s1 + $0xb78] sm:$0xff]
    %v432 = vld [vmem:[%s1 + $0xb80] sm:$0xff]
    %v433 = vld [vmem:[%s1 + $0xb88] sm:$0xff]
    %v434 = vld [vmem:[%s1 + $0xb90] sm:$0xff]
    %v435 = vld [vmem:[%s1 + $0xb98] sm:$0xff]
    %v436 = vld [vmem:[%s1 + $0xba0] sm:$0xff]
    %v437 = vld [vmem:[%s1 + $0xba8] sm:$0xff]
    %v438 = vld [vmem:[%s1 + $0xbb0] sm:$0xff]
    %v439 = vld [vmem:[%s1 + $0xbb8] sm:$0xff]
    %v440 = vld [vmem:[%s1 + $0xbc0] sm:$0xff]
    %v441 = vld [vmem:[%s1 + $0xbc8] sm:$0xff]
    %v442 = vld [vmem:[%s1 + $0xbd0] sm:$0xff]
    %v443 = vld [vmem:[%s1 + $0xbd8] sm:$0xff]
    %v444 = vld [vmem:[%s1 + $0xbe0] sm:$0xff]
    %v445 = vld [vmem:[%s1 + $0xbe8] sm:$0xff]
    %v446 = vld [vmem:[%s1 + $0xbf0] sm:$0xff]
    %v447 = vld [vmem:[%s1 + $0xbf8] sm:$0xff]
    %v448 = vld [vmem:[%s1 + $0xc00] sm:$0xff]
    %v449 = vld [vmem:[%s1 + $0xc08] sm:$0xff]
    %v450 = vld [vmem:[%s1 + $0xc10] sm:$0xff]
    %v451 = vld [vmem:[%s1 + $0xc18] sm:$0xff]
    %v452 = vld [vmem:[%s1 + $0xc20] sm:$0xff]
    %v453 = vld [vmem:[%s1 + $0xc28] sm:$0xff]
    %v454 = vld [vmem:[%s1 + $0xc30] sm:$0xff]
    %v455 = vld [vmem:[%s1 + $0xc38] sm:$0xff]
    %v456 = vld [vmem:[%s1 + $0xc40] sm:$0xff]
    %v457 = vld [vmem:[%s1 + $0xc48] sm:$0xff]
    %v458 = vld [vmem:[%s1 + $0xc50] sm:$0xff]
    %v459 = vld [vmem:[%s1 + $0xc58] sm:$0xff]
    %v460 = vld [vmem:[%s1 + $0xc60] sm:$0xff]
    %v461 = vld [vmem:[%s1 + $0xc68] sm:$0xff]
    %v462 = vld [vmem:[%s1 + $0xc70] sm:$0xff]
    %v463 = vld [vmem:[%s1 + $0xc78] sm:$0xff]
    %v464 = vld [vmem:[%s1 + $0xc80] sm:$0xff]
    %v465 = vld [vmem:[%s1 + $0xc88] sm:$0xff]
    %v466 = vld [vmem:[%s1 + $0xc90] sm:$0xff]
    %v467 = vld [vmem:[%s1 + $0xc98] sm:$0xff]
    %v468 = vld [vmem:[%s1 + $0xca0] sm:$0xff]
    %v469 = vld [vmem:[%s1 + $0xca8] sm:$0xff]
    %v470 = vld [vmem:[%s1 + $0xcb0] sm:$0xff]
    %v471 = vld [vmem:[%s1 + $0xcb8] sm:$0xff]
    %v472 = vld [vmem:[%s1 + $0xcc0] sm:$0xff]
    %v473 = vld [vmem:[%s1 + $0xcc8] sm:$0xff]
    %v474 = vld [vmem:[%s1 + $0xcd0] sm:$0xff]
    %v475 = vld [vmem:[%s1 + $0xcd8] sm:$0xff]
    %v476 = vld [vmem:[%s1 + $0xce0] sm:$0xff]
    %v477 = vld [vmem:[%s1 + $0xce8] sm:$0xff]
    %v478 = vld [vmem:[%s1 + $0xcf0] sm:$0xff]
    %v479 = vld [vmem:[%s1 + $0xcf8] sm:$0xff]
    %v480 = vld [vmem:[%s1 + $0xd00] sm:$0xff]
    %v481 = vld [vmem:[%s1 + $0xd08] sm:$0xff]
    %v482 = vld [vmem:[%s1 + $0xd10] sm:$0xff]
    %v483 = vld [vmem:[%s1 + $0xd18] sm:$0xff]
    %v484 = vld [vmem:[%s1 + $0xd20] sm:$0xff]
    %v485 = vld [vmem:[%s1 + $0xd28] sm:$0xff]
    %v486 = vld [vmem:[%s1 + $0xd30] sm:$0xff]
    %v487 = vld [vmem:[%s1 + $0xd38] sm:$0xff]
    %v488 = vld [vmem:[%s1 + $0xd40] sm:$0xff]
    %v489 = vld [vmem:[%s1 + $0xd48] sm:$0xff]
    %v490 = vld [vmem:[%s1 + $0xd50] sm:$0xff]
    %v491 = vld [vmem:[%s1 + $0xd58] sm:$0xff]
    %v492 = vld [vmem:[%s1 + $0xd60] sm:$0xff]
    %v493 = vld [vmem:[%s1 + $0xd68] sm:$0xff]
    %v494 = vld [vmem:[%s1 + $0xd70] sm:$0xff]
    %v495 = vld [vmem:[%s1 + $0xd78] sm:$0xff]
    %v496 = vld [vmem:[%s1 + $0xd80] sm:$0xff]
    %v497 = vld [vmem:[%s1 + $0xd88] sm:$0xff]
    %v498 = vld [vmem:[%s1 + $0xd90] sm:$0xff]
    %v499 = vld [vmem:[%s1 + $0xd98] sm:$0xff]
    %v500 = vld [vmem:[%s1 + $0xda0] sm:$0xff]
    %v501 = vld [vmem:[%s1 + $0xda8] sm:$0xff]
    %v502 = vld [vmem:[%s1 + $0xdb0] sm:$0xff]
    %v503 = vld [vmem:[%s1 + $0xdb8] sm:$0xff]
    %v504 = vld [vmem:[%s1 + $0xdc0] sm:$0xff]
    %v505 = vld [vmem:[%s1 + $0xdc8] sm:$0xff]
    %v506 = vld [vmem:[%s1 + $0xdd0] sm:$0xff]
    %v507 = vld [vmem:[%s1 + $0xdd8] sm:$0xff]
    %v508 = vld [vmem:[%s1 + $0xde0] sm:$0xff]
    %v509 = vld [vmem:[%s1 + $0xde8] sm:$0xff]
    %v510 = vld [vmem:[%s1 + $0xdf0] sm:$0xff]
    %v511 = vld [vmem:[%s1 + $0xdf8] sm:$0xff]
    %v512 = vld [vmem:[%s1 + $0xe00] sm:$0xff]
    %v513 = vld [vmem:[%s1 + $0xe08] sm:$0xff]
    %v514 = vld [vmem:[%s1 + $0xe10] sm:$0xff]
    %v515 = vld [vmem:[%s1 + $0xe18] sm:$0xff]
    %v516 = vld [vmem:[%s1 + $0xe20] sm:$0xff]
    %v517 = vld [vmem:[%s1 + $0xe28] sm:$0xff]
    %v518 = vld [vmem:[%s1 + $0xe30] sm:$0xff]
    %v519 = vld [vmem:[%s1 + $0xe38] sm:$0xff]
    %v520 = vld [vmem:[%s1 + $0xe40] sm:$0xff]
    %v521 = vld [vmem:[%s1 + $0xe48] sm:$0xff]
    %v522 = vld [vmem:[%s1 + $0xe50] sm:$0xff]
    %v523 = vld [vmem:[%s1 + $0xe58] sm:$0xff]
    %v524 = vld [vmem:[%s1 + $0xe60] sm:$0xff]
    %v525 = vld [vmem:[%s1 + $0xe68] sm:$0xff]
    %v526 = vld [vmem:[%s1 + $0xe70] sm:$0xff]
    %v527 = vld [vmem:[%s1 + $0xe78] sm:$0xff]
    %v528 = vld [vmem:[%s1 + $0xe80] sm:$0xff]
    %v529 = vld [vmem:[%s1 + $0xe88] sm:$0xff]
    %v530 = vld [vmem:[%s1 + $0xe90] sm:$0xff]
    %v531 = vld [vmem:[%s1 + $0xe98] sm:$0xff]
    %v532 = vld [vmem:[%s1 + $0xea0] sm:$0xff]
    %v533 = vld [vmem:[%s1 + $0xea8] sm:$0xff]
    %v534 = vld [vmem:[%s1 + $0xeb0] sm:$0xff]
    %v535 = vld [vmem:[%s1 + $0xeb8] sm:$0xff]
    %v536 = vld [vmem:[%s1 + $0xec0] sm:$0xff]
    %v537 = vld [vmem:[%s1 + $0xec8] sm:$0xff]
    %v538 = vld [vmem:[%s1 + $0xed0] sm:$0xff]
    %v539 = vld [vmem:[%s1 + $0xed8] sm:$0xff]
    %v540 = vld [vmem:[%s1 + $0xee0] sm:$0xff]
    %v541 = vld [vmem:[%s1 + $0xee8] sm:$0xff]
    %v542 = vld [vmem:[%s1 + $0xef0] sm:$0xff]
    %v543 = vld [vmem:[%s1 + $0xef8] sm:$0xff]
    %v544 = vld [vmem:[%s1 + $0xf00] sm:$0xff]
    %v545 = vld [vmem:[%s1 + $0xf08] sm:$0xff]
    %v546 = vld [vmem:[%s1 + $0xf10] sm:$0xff]
    %v547 = vld [vmem:[%s1 + $0xf18] sm:$0xff]
    %v548 = vld [vmem:[%s1 + $0xf20] sm:$0xff]
    %v549 = vld [vmem:[%s1 + $0xf28] sm:$0xff]
    %v550 = vld [vmem:[%s1 + $0xf30] sm:$0xff]
    %v551 = vld [vmem:[%s1 + $0xf38] sm:$0xff]
    %v552 = vld [vmem:[%s1 + $0xf40] sm:$0xff]
    %v553 = vld [vmem:[%s1 + $0xf48] sm:$0xff]
    %v554 = vld [vmem:[%s1 + $0xf50] sm:$0xff]
    %v555 = vld [vmem:[%s1 + $0xf58] sm:$0xff]
    %v556 = vld [vmem:[%s1 + $0xf60] sm:$0xff]
    %v557 = vld [vmem:[%s1 + $0xf68] sm:$0xff]
    %v558 = vld [vmem:[%s1 + $0xf70] sm:$0xff]
    %v559 = vld [vmem:[%s1 + $0xf78] sm:$0xff]
    %v560 = vld [vmem:[%s1 + $0xf80] sm:$0xff]
    %v561 = vld [vmem:[%s1 + $0xf88] sm:$0xff]
    %v562 = vld [vmem:[%s1 + $0xf90] sm:$0xff]
    %v563 = vld [vmem:[%s1 + $0xf98] sm:$0xff]
    %v564 = vld [vmem:[%s1 + $0xfa0] sm:$0xff]
    %v565 = vld [vmem:[%s1 + $0xfa8] sm:$0xff]
    %v566 = vld [vmem:[%s1 + $0xfb0] sm:$0xff]
    %v567 = vld [vmem:[%s1 + $0xfb8] sm:$0xff]
    %v568 = vld [vmem:[%s1 + $0xfc0] sm:$0xff]
    %v569 = vld [vmem:[%s1 + $0xfc8] sm:$0xff]
    %v570 = vld [vmem:[%s1 + $0xfd0] sm:$0xff]
    %v571 = vld [vmem:[%s1 + $0xfd8] sm:$0xff]
    %v572 = vld [vmem:[%s1 + $0xfe0] sm:$0xff]
    %v573 = vld [vmem:[%s1 + $0xfe8] sm:$0xff]
    %v574 = vld [vmem:[%s1 + $0xff0] sm:$0xff]
    %v575 = vld [vmem:[%s1 + $0xff8] sm:$0xff]
    %v576 = vld [vmem:[%s1 + $0x1000] sm:$0xff]
    %v577 = vld [vmem:[%s1 + $0x1008] sm:$0xff]
    %v578 = vld [vmem:[%s1 + $0x1010] sm:$0xff]
    %v579 = vld [vmem:[%s1 + $0x1018] sm:$0xff]
    %v580 = vld [vmem:[%s1 + $0x1020] sm:$0xff]
    %v581 = vld [vmem:[%s1 + $0x1028] sm:$0xff]
    %v582 = vld [vmem:[%s1 + $0x1030] sm:$0xff]
    %v583 = vld [vmem:[%s1 + $0x1038] sm:$0xff]
    %v584 = vld [vmem:[%s1 + $0x1040] sm:$0xff]
    %v585 = vld [vmem:[%s1 + $0x1048] sm:$0xff]
    %v586 = vld [vmem:[%s1 + $0x1050] sm:$0xff]
    %v587 = vld [vmem:[%s1 + $0x1058] sm:$0xff]
    %v588 = vld [vmem:[%s1 + $0x1060] sm:$0xff]
    %v589 = vld [vmem:[%s1 + $0x1068] sm:$0xff]
    %v590 = vld [vmem:[%s1 + $0x1070] sm:$0xff]
    %v591 = vld [vmem:[%s1 + $0x1078] sm:$0xff]
    %v592 = vld [vmem:[%s1 + $0x1080] sm:$0xff]
    %v593 = vld [vmem:[%s1 + $0x1088] sm:$0xff]
    %v594 = vld [vmem:[%s1 + $0x1090] sm:$0xff]
    %v595 = vld [vmem:[%s1 + $0x1098] sm:$0xff]
    %v596 = vld [vmem:[%s1 + $0x10a0] sm:$0xff]
    %v597 = vld [vmem:[%s1 + $0x10a8] sm:$0xff]
    %v598 = vld [vmem:[%s1 + $0x10b0] sm:$0xff]
    %v599 = vld [vmem:[%s1 + $0x10b8] sm:$0xff]
    %v600 = vld [vmem:[%s1 + $0x10c0] sm:$0xff]
    %v601 = vld [vmem:[%s1 + $0x10c8] sm:$0xff]
    %v602 = vld [vmem:[%s1 + $0x10d0] sm:$0xff]
    %v603 = vld [vmem:[%s1 + $0x10d8] sm:$0xff]
    %v604 = vld [vmem:[%s1 + $0x10e0] sm:$0xff]
    %v605 = vld [vmem:[%s1 + $0x10e8] sm:$0xff]
    %v606 = vld [vmem:[%s1 + $0x10f0] sm:$0xff]
    %v607 = vld [vmem:[%s1 + $0x10f8] sm:$0xff]
    %v608 = vld [vmem:[%s1 + $0x1100] sm:$0xff]
    %v609 = vld [vmem:[%s1 + $0x1108] sm:$0xff]
    %v610 = vld [vmem:[%s1 + $0x1110] sm:$0xff]
    %v611 = vld [vmem:[%s1 + $0x1118] sm:$0xff]
    %v612 = vld [vmem:[%s1 + $0x1120] sm:$0xff]
    %v613 = vld [vmem:[%s1 + $0x1128] sm:$0xff]
    %v614 = vld [vmem:[%s1 + $0x1130] sm:$0xff]
    %v615 = vld [vmem:[%s1 + $0x1138] sm:$0xff]
    %v616 = vld [vmem:[%s1 + $0x1140] sm:$0xff]
    %v617 = vld [vmem:[%s1 + $0x1148] sm:$0xff]
    %v618 = vld [vmem:[%s1 + $0x1150] sm:$0xff]
    %v619 = vld [vmem:[%s1 + $0x1158] sm:$0xff]
    %v620 = vld [vmem:[%s1 + $0x1160] sm:$0xff]
    %v621 = vld [vmem:[%s1 + $0x1168] sm:$0xff]
    %v622 = vld [vmem:[%s1 + $0x1170] sm:$0xff]
    %v623 = vld [vmem:[%s1 + $0x1178] sm:$0xff]
    %v624 = vld [vmem:[%s1 + $0x1180] sm:$0xff]
    %v625 = vld [vmem:[%s1 + $0x1188] sm:$0xff]
    %v626 = vld [vmem:[%s1 + $0x1190] sm:$0xff]
    %v627 = vld [vmem:[%s1 + $0x1198] sm:$0xff]
    %v628 = vld [vmem:[%s1 + $0x11a0] sm:$0xff]
    %v629 = vld [vmem:[%s1 + $0x11a8] sm:$0xff]
    %v630 = vld [vmem:[%s1 + $0x11b0] sm:$0xff]
    %v631 = vld [vmem:[%s1 + $0x11b8] sm:$0xff]
    %v632 = vld [vmem:[%s1 + $0x11c0] sm:$0xff]
    %v633 = vld [vmem:[%s1 + $0x11c8] sm:$0xff]
    %v634 = vld [vmem:[%s1 + $0x11d0] sm:$0xff]
    %v635 = vld [vmem:[%s1 + $0x11d8] sm:$0xff]
    %v636 = vld [vmem:[%s1 + $0x11e0] sm:$0xff]
    %v637 = vld [vmem:[%s1 + $0x11e8] sm:$0xff]
    %v638 = vld [vmem:[%s1 + $0x11f0] sm:$0xff]
    %v639 = vld [vmem:[%s1 + $0x11f8] sm:$0xff]
    %v640 = vld [vmem:[%s2] sm:$0xf]
    %v642 = vlaneseq
    %v643 = vshrl.u32 %v642, 7
    %v644 = vsub.s32 0, %v643
    %v645 = vrot.slane %v640, %v644
    %v646 = vlaneseq
    %v647 = vshrl.u32 %v646, 7
    %v648 = vsub.s32 1, %v647
    %v649 = vrot.slane %v640, %v648
    %v650 = vlaneseq
    %v651 = vshrl.u32 %v650, 7
    %v652 = vsub.s32 2, %v651
    %v653 = vrot.slane %v640, %v652
    %v654 = vlaneseq
    %v655 = vshrl.u32 %v654, 7
    %v656 = vsub.s32 3, %v655
    %v657 = vrot.slane %v640, %v656
    %v1238 = vunpack.c.l.b16 %v64
    %v1239 = vunpack.c.h.b16 %v64
    %v1240 = vunpack.c.l.b16 %v65
    %v1241 = vunpack.c.h.b16 %v65
    %v1242 = vunpack.c.l.b16 %v66
    %v1243 = vunpack.c.h.b16 %v66
    %v1244 = vunpack.c.l.b16 %v67
    %v1245 = vunpack.c.h.b16 %v67
    %v1246 = vunpack.c.l.b16 %v68
    %v1247 = vunpack.c.h.b16 %v68
    %v1248 = vunpack.c.l.b16 %v69
    %v1249 = vunpack.c.h.b16 %v69
    %v1250 = vunpack.c.l.b16 %v70
    %v1251 = vunpack.c.h.b16 %v70
    %v1252 = vunpack.c.l.b16 %v71
    %v1253 = vunpack.c.h.b16 %v71
    %v1254 = vunpack.c.l.b16 %v72
    %v1255 = vunpack.c.h.b16 %v72
    %v1256 = vunpack.c.l.b16 %v73
    %v1257 = vunpack.c.h.b16 %v73
    %v1258 = vunpack.c.l.b16 %v74
    %v1259 = vunpack.c.h.b16 %v74
    %v1260 = vunpack.c.l.b16 %v75
    %v1261 = vunpack.c.h.b16 %v75
    %v1262 = vunpack.c.l.b16 %v76
    %v1263 = vunpack.c.h.b16 %v76
    %v1264 = vunpack.c.l.b16 %v77
    %v1265 = vunpack.c.h.b16 %v77
    %v1266 = vunpack.c.l.b16 %v78
    %v1267 = vunpack.c.h.b16 %v78
    %v1268 = vunpack.c.l.b16 %v79
    %v1269 = vunpack.c.h.b16 %v79
    %v1270 = vunpack.c.l.b16 %v80
    %v1271 = vunpack.c.h.b16 %v80
    %v1272 = vunpack.c.l.b16 %v81
    %v1273 = vunpack.c.h.b16 %v81
    %v1274 = vunpack.c.l.b16 %v82
    %v1275 = vunpack.c.h.b16 %v82
    %v1276 = vunpack.c.l.b16 %v83
    %v1277 = vunpack.c.h.b16 %v83
    %v1278 = vunpack.c.l.b16 %v84
    %v1279 = vunpack.c.h.b16 %v84
    %v1280 = vunpack.c.l.b16 %v85
    %v1281 = vunpack.c.h.b16 %v85
    %v1282 = vunpack.c.l.b16 %v86
    %v1283 = vunpack.c.h.b16 %v86
    %v1284 = vunpack.c.l.b16 %v87
    %v1285 = vunpack.c.h.b16 %v87
    %v1286 = vunpack.c.l.b16 %v88
    %v1287 = vunpack.c.h.b16 %v88
    %v1288 = vunpack.c.l.b16 %v89
    %v1289 = vunpack.c.h.b16 %v89
    %v1290 = vunpack.c.l.b16 %v90
    %v1291 = vunpack.c.h.b16 %v90
    %v1292 = vunpack.c.l.b16 %v91
    %v1293 = vunpack.c.h.b16 %v91
    %v1294 = vunpack.c.l.b16 %v92
    %v1295 = vunpack.c.h.b16 %v92
    %v1296 = vunpack.c.l.b16 %v93
    %v1297 = vunpack.c.h.b16 %v93
    %v1298 = vunpack.c.l.b16 %v94
    %v1299 = vunpack.c.h.b16 %v94
    %v1300 = vunpack.c.l.b16 %v95
    %v1301 = vunpack.c.h.b16 %v95
    %v1302 = vunpack.c.l.b16 %v96
    %v1303 = vunpack.c.h.b16 %v96
    %v1304 = vunpack.c.l.b16 %v97
    %v1305 = vunpack.c.h.b16 %v97
    %v1306 = vunpack.c.l.b16 %v98
    %v1307 = vunpack.c.h.b16 %v98
    %v1308 = vunpack.c.l.b16 %v99
    %v1309 = vunpack.c.h.b16 %v99
    %v1310 = vunpack.c.l.b16 %v100
    %v1311 = vunpack.c.h.b16 %v100
    %v1312 = vunpack.c.l.b16 %v101
    %v1313 = vunpack.c.h.b16 %v101
    %v1314 = vunpack.c.l.b16 %v102
    %v1315 = vunpack.c.h.b16 %v102
    %v1316 = vunpack.c.l.b16 %v103
    %v1317 = vunpack.c.h.b16 %v103
    %v1318 = vunpack.c.l.b16 %v104
    %v1319 = vunpack.c.h.b16 %v104
    %v1320 = vunpack.c.l.b16 %v105
    %v1321 = vunpack.c.h.b16 %v105
    %v1322 = vunpack.c.l.b16 %v106
    %v1323 = vunpack.c.h.b16 %v106
    %v1324 = vunpack.c.l.b16 %v107
    %v1325 = vunpack.c.h.b16 %v107
    %v1326 = vunpack.c.l.b16 %v108
    %v1327 = vunpack.c.h.b16 %v108
    %v1328 = vunpack.c.l.b16 %v109
    %v1329 = vunpack.c.h.b16 %v109
    %v1330 = vunpack.c.l.b16 %v110
    %v1331 = vunpack.c.h.b16 %v110
    %v1332 = vunpack.c.l.b16 %v111
    %v1333 = vunpack.c.h.b16 %v111
    %v1334 = vunpack.c.l.b16 %v112
    %v1335 = vunpack.c.h.b16 %v112
    %v1336 = vunpack.c.l.b16 %v113
    %v1337 = vunpack.c.h.b16 %v113
    %v1338 = vunpack.c.l.b16 %v114
    %v1339 = vunpack.c.h.b16 %v114
    %v1340 = vunpack.c.l.b16 %v115
    %v1341 = vunpack.c.h.b16 %v115
    %v1342 = vunpack.c.l.b16 %v116
    %v1343 = vunpack.c.h.b16 %v116
    %v1344 = vunpack.c.l.b16 %v117
    %v1345 = vunpack.c.h.b16 %v117
    %v1346 = vunpack.c.l.b16 %v118
    %v1347 = vunpack.c.h.b16 %v118
    %v1348 = vunpack.c.l.b16 %v119
    %v1349 = vunpack.c.h.b16 %v119
    %v1350 = vunpack.c.l.b16 %v120
    %v1351 = vunpack.c.h.b16 %v120
    %v1352 = vunpack.c.l.b16 %v121
    %v1353 = vunpack.c.h.b16 %v121
    %v1354 = vunpack.c.l.b16 %v122
    %v1355 = vunpack.c.h.b16 %v122
    %v1356 = vunpack.c.l.b16 %v123
    %v1357 = vunpack.c.h.b16 %v123
    %v1358 = vunpack.c.l.b16 %v124
    %v1359 = vunpack.c.h.b16 %v124
    %v1360 = vunpack.c.l.b16 %v125
    %v1361 = vunpack.c.h.b16 %v125
    %v1362 = vunpack.c.l.b16 %v126
    %v1363 = vunpack.c.h.b16 %v126
    %v1364 = vunpack.c.l.b16 %v127
    %v1365 = vunpack.c.h.b16 %v127
    %v1366 = vunpack.c.l.b16 %v128
    %v1367 = vunpack.c.h.b16 %v128
    %v1368 = vunpack.c.l.b16 %v129
    %v1369 = vunpack.c.h.b16 %v129
    %v1370 = vunpack.c.l.b16 %v130
    %v1371 = vunpack.c.h.b16 %v130
    %v1372 = vunpack.c.l.b16 %v131
    %v1373 = vunpack.c.h.b16 %v131
    %v1374 = vunpack.c.l.b16 %v132
    %v1375 = vunpack.c.h.b16 %v132
    %v1376 = vunpack.c.l.b16 %v133
    %v1377 = vunpack.c.h.b16 %v133
    %v1378 = vunpack.c.l.b16 %v134
    %v1379 = vunpack.c.h.b16 %v134
    %v1380 = vunpack.c.l.b16 %v135
    %v1381 = vunpack.c.h.b16 %v135
    %v1382 = vunpack.c.l.b16 %v136
    %v1383 = vunpack.c.h.b16 %v136
    %v1384 = vunpack.c.l.b16 %v137
    %v1385 = vunpack.c.h.b16 %v137
    %v1386 = vunpack.c.l.b16 %v138
    %v1387 = vunpack.c.h.b16 %v138
    %v1388 = vunpack.c.l.b16 %v139
    %v1389 = vunpack.c.h.b16 %v139
    %v1390 = vunpack.c.l.b16 %v140
    %v1391 = vunpack.c.h.b16 %v140
    %v1392 = vunpack.c.l.b16 %v141
    %v1393 = vunpack.c.h.b16 %v141
    %v1394 = vunpack.c.l.b16 %v142
    %v1395 = vunpack.c.h.b16 %v142
    %v1396 = vunpack.c.l.b16 %v143
    %v1397 = vunpack.c.h.b16 %v143
    %v1398 = vunpack.c.l.b16 %v144
    %v1399 = vunpack.c.h.b16 %v144
    %v1400 = vunpack.c.l.b16 %v145
    %v1401 = vunpack.c.h.b16 %v145
    %v1402 = vunpack.c.l.b16 %v146
    %v1403 = vunpack.c.h.b16 %v146
    %v1404 = vunpack.c.l.b16 %v147
    %v1405 = vunpack.c.h.b16 %v147
    %v1406 = vunpack.c.l.b16 %v148
    %v1407 = vunpack.c.h.b16 %v148
    %v1408 = vunpack.c.l.b16 %v149
    %v1409 = vunpack.c.h.b16 %v149
    %v1410 = vunpack.c.l.b16 %v150
    %v1411 = vunpack.c.h.b16 %v150
    %v1412 = vunpack.c.l.b16 %v151
    %v1413 = vunpack.c.h.b16 %v151
    %v1414 = vunpack.c.l.b16 %v152
    %v1415 = vunpack.c.h.b16 %v152
    %v1416 = vunpack.c.l.b16 %v153
    %v1417 = vunpack.c.h.b16 %v153
    %v1418 = vunpack.c.l.b16 %v154
    %v1419 = vunpack.c.h.b16 %v154
    %v1420 = vunpack.c.l.b16 %v155
    %v1421 = vunpack.c.h.b16 %v155
    %v1422 = vunpack.c.l.b16 %v156
    %v1423 = vunpack.c.h.b16 %v156
    %v1424 = vunpack.c.l.b16 %v157
    %v1425 = vunpack.c.h.b16 %v157
    %v1426 = vunpack.c.l.b16 %v158
    %v1427 = vunpack.c.h.b16 %v158
    %v1428 = vunpack.c.l.b16 %v159
    %v1429 = vunpack.c.h.b16 %v159
    %v1430 = vunpack.c.l.b16 %v160
    %v1431 = vunpack.c.h.b16 %v160
    %v1432 = vunpack.c.l.b16 %v161
    %v1433 = vunpack.c.h.b16 %v161
    %v1434 = vunpack.c.l.b16 %v162
    %v1435 = vunpack.c.h.b16 %v162
    %v1436 = vunpack.c.l.b16 %v163
    %v1437 = vunpack.c.h.b16 %v163
    %v1438 = vunpack.c.l.b16 %v164
    %v1439 = vunpack.c.h.b16 %v164
    %v1440 = vunpack.c.l.b16 %v165
    %v1441 = vunpack.c.h.b16 %v165
    %v1442 = vunpack.c.l.b16 %v166
    %v1443 = vunpack.c.h.b16 %v166
    %v1444 = vunpack.c.l.b16 %v167
    %v1445 = vunpack.c.h.b16 %v167
    %v1446 = vunpack.c.l.b16 %v168
    %v1447 = vunpack.c.h.b16 %v168
    %v1448 = vunpack.c.l.b16 %v169
    %v1449 = vunpack.c.h.b16 %v169
    %v1450 = vunpack.c.l.b16 %v170
    %v1451 = vunpack.c.h.b16 %v170
    %v1452 = vunpack.c.l.b16 %v171
    %v1453 = vunpack.c.h.b16 %v171
    %v1454 = vunpack.c.l.b16 %v172
    %v1455 = vunpack.c.h.b16 %v172
    %v1456 = vunpack.c.l.b16 %v173
    %v1457 = vunpack.c.h.b16 %v173
    %v1458 = vunpack.c.l.b16 %v174
    %v1459 = vunpack.c.h.b16 %v174
    %v1460 = vunpack.c.l.b16 %v175
    %v1461 = vunpack.c.h.b16 %v175
    %v1462 = vunpack.c.l.b16 %v176
    %v1463 = vunpack.c.h.b16 %v176
    %v1464 = vunpack.c.l.b16 %v177
    %v1465 = vunpack.c.h.b16 %v177
    %v1466 = vunpack.c.l.b16 %v178
    %v1467 = vunpack.c.h.b16 %v178
    %v1468 = vunpack.c.l.b16 %v179
    %v1469 = vunpack.c.h.b16 %v179
    %v1470 = vunpack.c.l.b16 %v180
    %v1471 = vunpack.c.h.b16 %v180
    %v1472 = vunpack.c.l.b16 %v181
    %v1473 = vunpack.c.h.b16 %v181
    %v1474 = vunpack.c.l.b16 %v182
    %v1475 = vunpack.c.h.b16 %v182
    %v1476 = vunpack.c.l.b16 %v183
    %v1477 = vunpack.c.h.b16 %v183
    %v1478 = vunpack.c.l.b16 %v184
    %v1479 = vunpack.c.h.b16 %v184
    %v1480 = vunpack.c.l.b16 %v185
    %v1481 = vunpack.c.h.b16 %v185
    %v1482 = vunpack.c.l.b16 %v186
    %v1483 = vunpack.c.h.b16 %v186
    %v1484 = vunpack.c.l.b16 %v187
    %v1485 = vunpack.c.h.b16 %v187
    %v1486 = vunpack.c.l.b16 %v188
    %v1487 = vunpack.c.h.b16 %v188
    %v1488 = vunpack.c.l.b16 %v189
    %v1489 = vunpack.c.h.b16 %v189
    %v1490 = vunpack.c.l.b16 %v190
    %v1491 = vunpack.c.h.b16 %v190
    %v1492 = vunpack.c.l.b16 %v191
    %v1493 = vunpack.c.h.b16 %v191
    %v1494 = vunpack.c.l.b16 %v192
    %v1495 = vunpack.c.h.b16 %v192
    %v1496 = vunpack.c.l.b16 %v193
    %v1497 = vunpack.c.h.b16 %v193
    %v1498 = vunpack.c.l.b16 %v194
    %v1499 = vunpack.c.h.b16 %v194
    %v1500 = vunpack.c.l.b16 %v195
    %v1501 = vunpack.c.h.b16 %v195
    %v1502 = vunpack.c.l.b16 %v196
    %v1503 = vunpack.c.h.b16 %v196
    %v1504 = vunpack.c.l.b16 %v197
    %v1505 = vunpack.c.h.b16 %v197
    %v1506 = vunpack.c.l.b16 %v198
    %v1507 = vunpack.c.h.b16 %v198
    %v1508 = vunpack.c.l.b16 %v199
    %v1509 = vunpack.c.h.b16 %v199
    %v1510 = vunpack.c.l.b16 %v200
    %v1511 = vunpack.c.h.b16 %v200
    %v1512 = vunpack.c.l.b16 %v201
    %v1513 = vunpack.c.h.b16 %v201
    %v1514 = vunpack.c.l.b16 %v202
    %v1515 = vunpack.c.h.b16 %v202
    %v1516 = vunpack.c.l.b16 %v203
    %v1517 = vunpack.c.h.b16 %v203
    %v1518 = vunpack.c.l.b16 %v204
    %v1519 = vunpack.c.h.b16 %v204
    %v1520 = vunpack.c.l.b16 %v205
    %v1521 = vunpack.c.h.b16 %v205
    %v1522 = vunpack.c.l.b16 %v206
    %v1523 = vunpack.c.h.b16 %v206
    %v1524 = vunpack.c.l.b16 %v207
    %v1525 = vunpack.c.h.b16 %v207
    %v1526 = vunpack.c.l.b16 %v208
    %v1527 = vunpack.c.h.b16 %v208
    %v1528 = vunpack.c.l.b16 %v209
    %v1529 = vunpack.c.h.b16 %v209
    %v1530 = vunpack.c.l.b16 %v210
    %v1531 = vunpack.c.h.b16 %v210
    %v1532 = vunpack.c.l.b16 %v211
    %v1533 = vunpack.c.h.b16 %v211
    %v1534 = vunpack.c.l.b16 %v212
    %v1535 = vunpack.c.h.b16 %v212
    %v1536 = vunpack.c.l.b16 %v213
    %v1537 = vunpack.c.h.b16 %v213
    %v1538 = vunpack.c.l.b16 %v214
    %v1539 = vunpack.c.h.b16 %v214
    %v1540 = vunpack.c.l.b16 %v215
    %v1541 = vunpack.c.h.b16 %v215
    %v1542 = vunpack.c.l.b16 %v216
    %v1543 = vunpack.c.h.b16 %v216
    %v1544 = vunpack.c.l.b16 %v217
    %v1545 = vunpack.c.h.b16 %v217
    %v1546 = vunpack.c.l.b16 %v218
    %v1547 = vunpack.c.h.b16 %v218
    %v1548 = vunpack.c.l.b16 %v219
    %v1549 = vunpack.c.h.b16 %v219
    %v1550 = vunpack.c.l.b16 %v220
    %v1551 = vunpack.c.h.b16 %v220
    %v1552 = vunpack.c.l.b16 %v221
    %v1553 = vunpack.c.h.b16 %v221
    %v1554 = vunpack.c.l.b16 %v222
    %v1555 = vunpack.c.h.b16 %v222
    %v1556 = vunpack.c.l.b16 %v223
    %v1557 = vunpack.c.h.b16 %v223
    %v1558 = vunpack.c.l.b16 %v224
    %v1559 = vunpack.c.h.b16 %v224
    %v1560 = vunpack.c.l.b16 %v225
    %v1561 = vunpack.c.h.b16 %v225
    %v1562 = vunpack.c.l.b16 %v226
    %v1563 = vunpack.c.h.b16 %v226
    %v1564 = vunpack.c.l.b16 %v227
    %v1565 = vunpack.c.h.b16 %v227
    %v1566 = vunpack.c.l.b16 %v228
    %v1567 = vunpack.c.h.b16 %v228
    %v1568 = vunpack.c.l.b16 %v229
    %v1569 = vunpack.c.h.b16 %v229
    %v1570 = vunpack.c.l.b16 %v230
    %v1571 = vunpack.c.h.b16 %v230
    %v1572 = vunpack.c.l.b16 %v231
    %v1573 = vunpack.c.h.b16 %v231
    %v1574 = vunpack.c.l.b16 %v232
    %v1575 = vunpack.c.h.b16 %v232
    %v1576 = vunpack.c.l.b16 %v233
    %v1577 = vunpack.c.h.b16 %v233
    %v1578 = vunpack.c.l.b16 %v234
    %v1579 = vunpack.c.h.b16 %v234
    %v1580 = vunpack.c.l.b16 %v235
    %v1581 = vunpack.c.h.b16 %v235
    %v1582 = vunpack.c.l.b16 %v236
    %v1583 = vunpack.c.h.b16 %v236
    %v1584 = vunpack.c.l.b16 %v237
    %v1585 = vunpack.c.h.b16 %v237
    %v1586 = vunpack.c.l.b16 %v238
    %v1587 = vunpack.c.h.b16 %v238
    %v1588 = vunpack.c.l.b16 %v239
    %v1589 = vunpack.c.h.b16 %v239
    %v1590 = vunpack.c.l.b16 %v240
    %v1591 = vunpack.c.h.b16 %v240
    %v1592 = vunpack.c.l.b16 %v241
    %v1593 = vunpack.c.h.b16 %v241
    %v1594 = vunpack.c.l.b16 %v242
    %v1595 = vunpack.c.h.b16 %v242
    %v1596 = vunpack.c.l.b16 %v243
    %v1597 = vunpack.c.h.b16 %v243
    %v1598 = vunpack.c.l.b16 %v244
    %v1599 = vunpack.c.h.b16 %v244
    %v1600 = vunpack.c.l.b16 %v245
    %v1601 = vunpack.c.h.b16 %v245
    %v1602 = vunpack.c.l.b16 %v246
    %v1603 = vunpack.c.h.b16 %v246
    %v1604 = vunpack.c.l.b16 %v247
    %v1605 = vunpack.c.h.b16 %v247
    %v1606 = vunpack.c.l.b16 %v248
    %v1607 = vunpack.c.h.b16 %v248
    %v1608 = vunpack.c.l.b16 %v249
    %v1609 = vunpack.c.h.b16 %v249
    %v1610 = vunpack.c.l.b16 %v250
    %v1611 = vunpack.c.h.b16 %v250
    %v1612 = vunpack.c.l.b16 %v251
    %v1613 = vunpack.c.h.b16 %v251
    %v1614 = vunpack.c.l.b16 %v252
    %v1615 = vunpack.c.h.b16 %v252
    %v1616 = vunpack.c.l.b16 %v253
    %v1617 = vunpack.c.h.b16 %v253
    %v1618 = vunpack.c.l.b16 %v254
    %v1619 = vunpack.c.h.b16 %v254
    %v1620 = vunpack.c.l.b16 %v255
    %v1621 = vunpack.c.h.b16 %v255
    %v1622 = vunpack.c.l.b16 %v256
    %v1623 = vunpack.c.h.b16 %v256
    %v1624 = vunpack.c.l.b16 %v257
    %v1625 = vunpack.c.h.b16 %v257
    %v1626 = vunpack.c.l.b16 %v258
    %v1627 = vunpack.c.h.b16 %v258
    %v1628 = vunpack.c.l.b16 %v259
    %v1629 = vunpack.c.h.b16 %v259
    %v1630 = vunpack.c.l.b16 %v260
    %v1631 = vunpack.c.h.b16 %v260
    %v1632 = vunpack.c.l.b16 %v261
    %v1633 = vunpack.c.h.b16 %v261
    %v1634 = vunpack.c.l.b16 %v262
    %v1635 = vunpack.c.h.b16 %v262
    %v1636 = vunpack.c.l.b16 %v263
    %v1637 = vunpack.c.h.b16 %v263
    %v1638 = vunpack.c.l.b16 %v264
    %v1639 = vunpack.c.h.b16 %v264
    %v1640 = vunpack.c.l.b16 %v265
    %v1641 = vunpack.c.h.b16 %v265
    %v1642 = vunpack.c.l.b16 %v266
    %v1643 = vunpack.c.h.b16 %v266
    %v1644 = vunpack.c.l.b16 %v267
    %v1645 = vunpack.c.h.b16 %v267
    %v1646 = vunpack.c.l.b16 %v268
    %v1647 = vunpack.c.h.b16 %v268
    %v1648 = vunpack.c.l.b16 %v269
    %v1649 = vunpack.c.h.b16 %v269
    %v1650 = vunpack.c.l.b16 %v270
    %v1651 = vunpack.c.h.b16 %v270
    %v1652 = vunpack.c.l.b16 %v271
    %v1653 = vunpack.c.h.b16 %v271
    %v1654 = vunpack.c.l.b16 %v272
    %v1655 = vunpack.c.h.b16 %v272
    %v1656 = vunpack.c.l.b16 %v273
    %v1657 = vunpack.c.h.b16 %v273
    %v1658 = vunpack.c.l.b16 %v274
    %v1659 = vunpack.c.h.b16 %v274
    %v1660 = vunpack.c.l.b16 %v275
    %v1661 = vunpack.c.h.b16 %v275
    %v1662 = vunpack.c.l.b16 %v276
    %v1663 = vunpack.c.h.b16 %v276
    %v1664 = vunpack.c.l.b16 %v277
    %v1665 = vunpack.c.h.b16 %v277
    %v1666 = vunpack.c.l.b16 %v278
    %v1667 = vunpack.c.h.b16 %v278
    %v1668 = vunpack.c.l.b16 %v279
    %v1669 = vunpack.c.h.b16 %v279
    %v1670 = vunpack.c.l.b16 %v280
    %v1671 = vunpack.c.h.b16 %v280
    %v1672 = vunpack.c.l.b16 %v281
    %v1673 = vunpack.c.h.b16 %v281
    %v1674 = vunpack.c.l.b16 %v282
    %v1675 = vunpack.c.h.b16 %v282
    %v1676 = vunpack.c.l.b16 %v283
    %v1677 = vunpack.c.h.b16 %v283
    %v1678 = vunpack.c.l.b16 %v284
    %v1679 = vunpack.c.h.b16 %v284
    %v1680 = vunpack.c.l.b16 %v285
    %v1681 = vunpack.c.h.b16 %v285
    %v1682 = vunpack.c.l.b16 %v286
    %v1683 = vunpack.c.h.b16 %v286
    %v1684 = vunpack.c.l.b16 %v287
    %v1685 = vunpack.c.h.b16 %v287
    %v1686 = vunpack.c.l.b16 %v288
    %v1687 = vunpack.c.h.b16 %v288
    %v1688 = vunpack.c.l.b16 %v289
    %v1689 = vunpack.c.h.b16 %v289
    %v1690 = vunpack.c.l.b16 %v290
    %v1691 = vunpack.c.h.b16 %v290
    %v1692 = vunpack.c.l.b16 %v291
    %v1693 = vunpack.c.h.b16 %v291
    %v1694 = vunpack.c.l.b16 %v292
    %v1695 = vunpack.c.h.b16 %v292
    %v1696 = vunpack.c.l.b16 %v293
    %v1697 = vunpack.c.h.b16 %v293
    %v1698 = vunpack.c.l.b16 %v294
    %v1699 = vunpack.c.h.b16 %v294
    %v1700 = vunpack.c.l.b16 %v295
    %v1701 = vunpack.c.h.b16 %v295
    %v1702 = vunpack.c.l.b16 %v296
    %v1703 = vunpack.c.h.b16 %v296
    %v1704 = vunpack.c.l.b16 %v297
    %v1705 = vunpack.c.h.b16 %v297
    %v1706 = vunpack.c.l.b16 %v298
    %v1707 = vunpack.c.h.b16 %v298
    %v1708 = vunpack.c.l.b16 %v299
    %v1709 = vunpack.c.h.b16 %v299
    %v1710 = vunpack.c.l.b16 %v300
    %v1711 = vunpack.c.h.b16 %v300
    %v1712 = vunpack.c.l.b16 %v301
    %v1713 = vunpack.c.h.b16 %v301
    %v1714 = vunpack.c.l.b16 %v302
    %v1715 = vunpack.c.h.b16 %v302
    %v1716 = vunpack.c.l.b16 %v303
    %v1717 = vunpack.c.h.b16 %v303
    %v1718 = vunpack.c.l.b16 %v304
    %v1719 = vunpack.c.h.b16 %v304
    %v1720 = vunpack.c.l.b16 %v305
    %v1721 = vunpack.c.h.b16 %v305
    %v1722 = vunpack.c.l.b16 %v306
    %v1723 = vunpack.c.h.b16 %v306
    %v1724 = vunpack.c.l.b16 %v307
    %v1725 = vunpack.c.h.b16 %v307
    %v1726 = vunpack.c.l.b16 %v308
    %v1727 = vunpack.c.h.b16 %v308
    %v1728 = vunpack.c.l.b16 %v309
    %v1729 = vunpack.c.h.b16 %v309
    %v1730 = vunpack.c.l.b16 %v310
    %v1731 = vunpack.c.h.b16 %v310
    %v1732 = vunpack.c.l.b16 %v311
    %v1733 = vunpack.c.h.b16 %v311
    %v1734 = vunpack.c.l.b16 %v312
    %v1735 = vunpack.c.h.b16 %v312
    %v1736 = vunpack.c.l.b16 %v313
    %v1737 = vunpack.c.h.b16 %v313
    %v1738 = vunpack.c.l.b16 %v314
    %v1739 = vunpack.c.h.b16 %v314
    %v1740 = vunpack.c.l.b16 %v315
    %v1741 = vunpack.c.h.b16 %v315
    %v1742 = vunpack.c.l.b16 %v316
    %v1743 = vunpack.c.h.b16 %v316
    %v1744 = vunpack.c.l.b16 %v317
    %v1745 = vunpack.c.h.b16 %v317
    %v1746 = vunpack.c.l.b16 %v318
    %v1747 = vunpack.c.h.b16 %v318
    %v1748 = vunpack.c.l.b16 %v319
    %v1749 = vunpack.c.h.b16 %v319
    %v1750 = vunpack.c.l.b16 %v320
    %v1751 = vunpack.c.h.b16 %v320
    %v1752 = vunpack.c.l.b16 %v321
    %v1753 = vunpack.c.h.b16 %v321
    %v1754 = vunpack.c.l.b16 %v322
    %v1755 = vunpack.c.h.b16 %v322
    %v1756 = vunpack.c.l.b16 %v323
    %v1757 = vunpack.c.h.b16 %v323
    %v1758 = vunpack.c.l.b16 %v324
    %v1759 = vunpack.c.h.b16 %v324
    %v1760 = vunpack.c.l.b16 %v325
    %v1761 = vunpack.c.h.b16 %v325
    %v1762 = vunpack.c.l.b16 %v326
    %v1763 = vunpack.c.h.b16 %v326
    %v1764 = vunpack.c.l.b16 %v327
    %v1765 = vunpack.c.h.b16 %v327
    %v1766 = vunpack.c.l.b16 %v328
    %v1767 = vunpack.c.h.b16 %v328
    %v1768 = vunpack.c.l.b16 %v329
    %v1769 = vunpack.c.h.b16 %v329
    %v1770 = vunpack.c.l.b16 %v330
    %v1771 = vunpack.c.h.b16 %v330
    %v1772 = vunpack.c.l.b16 %v331
    %v1773 = vunpack.c.h.b16 %v331
    %v1774 = vunpack.c.l.b16 %v332
    %v1775 = vunpack.c.h.b16 %v332
    %v1776 = vunpack.c.l.b16 %v333
    %v1777 = vunpack.c.h.b16 %v333
    %v1778 = vunpack.c.l.b16 %v334
    %v1779 = vunpack.c.h.b16 %v334
    %v1780 = vunpack.c.l.b16 %v335
    %v1781 = vunpack.c.h.b16 %v335
    %v1782 = vunpack.c.l.b16 %v336
    %v1783 = vunpack.c.h.b16 %v336
    %v1784 = vunpack.c.l.b16 %v337
    %v1785 = vunpack.c.h.b16 %v337
    %v1786 = vunpack.c.l.b16 %v338
    %v1787 = vunpack.c.h.b16 %v338
    %v1788 = vunpack.c.l.b16 %v339
    %v1789 = vunpack.c.h.b16 %v339
    %v1790 = vunpack.c.l.b16 %v340
    %v1791 = vunpack.c.h.b16 %v340
    %v1792 = vunpack.c.l.b16 %v341
    %v1793 = vunpack.c.h.b16 %v341
    %v1794 = vunpack.c.l.b16 %v342
    %v1795 = vunpack.c.h.b16 %v342
    %v1796 = vunpack.c.l.b16 %v343
    %v1797 = vunpack.c.h.b16 %v343
    %v1798 = vunpack.c.l.b16 %v344
    %v1799 = vunpack.c.h.b16 %v344
    %v1800 = vunpack.c.l.b16 %v345
    %v1801 = vunpack.c.h.b16 %v345
    %v1802 = vunpack.c.l.b16 %v346
    %v1803 = vunpack.c.h.b16 %v346
    %v1804 = vunpack.c.l.b16 %v347
    %v1805 = vunpack.c.h.b16 %v347
    %v1806 = vunpack.c.l.b16 %v348
    %v1807 = vunpack.c.h.b16 %v348
    %v1808 = vunpack.c.l.b16 %v349
    %v1809 = vunpack.c.h.b16 %v349
    %v1810 = vunpack.c.l.b16 %v350
    %v1811 = vunpack.c.h.b16 %v350
    %v1812 = vunpack.c.l.b16 %v351
    %v1813 = vunpack.c.h.b16 %v351
    %v1814 = vunpack.c.l.b16 %v352
    %v1815 = vunpack.c.h.b16 %v352
    %v1816 = vunpack.c.l.b16 %v353
    %v1817 = vunpack.c.h.b16 %v353
    %v1818 = vunpack.c.l.b16 %v354
    %v1819 = vunpack.c.h.b16 %v354
    %v1820 = vunpack.c.l.b16 %v355
    %v1821 = vunpack.c.h.b16 %v355
    %v1822 = vunpack.c.l.b16 %v356
    %v1823 = vunpack.c.h.b16 %v356
    %v1824 = vunpack.c.l.b16 %v357
    %v1825 = vunpack.c.h.b16 %v357
    %v1826 = vunpack.c.l.b16 %v358
    %v1827 = vunpack.c.h.b16 %v358
    %v1828 = vunpack.c.l.b16 %v359
    %v1829 = vunpack.c.h.b16 %v359
    %v1830 = vunpack.c.l.b16 %v360
    %v1831 = vunpack.c.h.b16 %v360
    %v1832 = vunpack.c.l.b16 %v361
    %v1833 = vunpack.c.h.b16 %v361
    %v1834 = vunpack.c.l.b16 %v362
    %v1835 = vunpack.c.h.b16 %v362
    %v1836 = vunpack.c.l.b16 %v363
    %v1837 = vunpack.c.h.b16 %v363
    %v1838 = vunpack.c.l.b16 %v364
    %v1839 = vunpack.c.h.b16 %v364
    %v1840 = vunpack.c.l.b16 %v365
    %v1841 = vunpack.c.h.b16 %v365
    %v1842 = vunpack.c.l.b16 %v366
    %v1843 = vunpack.c.h.b16 %v366
    %v1844 = vunpack.c.l.b16 %v367
    %v1845 = vunpack.c.h.b16 %v367
    %v1846 = vunpack.c.l.b16 %v368
    %v1847 = vunpack.c.h.b16 %v368
    %v1848 = vunpack.c.l.b16 %v369
    %v1849 = vunpack.c.h.b16 %v369
    %v1850 = vunpack.c.l.b16 %v370
    %v1851 = vunpack.c.h.b16 %v370
    %v1852 = vunpack.c.l.b16 %v371
    %v1853 = vunpack.c.h.b16 %v371
    %v1854 = vunpack.c.l.b16 %v372
    %v1855 = vunpack.c.h.b16 %v372
    %v1856 = vunpack.c.l.b16 %v373
    %v1857 = vunpack.c.h.b16 %v373
    %v1858 = vunpack.c.l.b16 %v374
    %v1859 = vunpack.c.h.b16 %v374
    %v1860 = vunpack.c.l.b16 %v375
    %v1861 = vunpack.c.h.b16 %v375
    %v1862 = vunpack.c.l.b16 %v376
    %v1863 = vunpack.c.h.b16 %v376
    %v1864 = vunpack.c.l.b16 %v377
    %v1865 = vunpack.c.h.b16 %v377
    %v1866 = vunpack.c.l.b16 %v378
    %v1867 = vunpack.c.h.b16 %v378
    %v1868 = vunpack.c.l.b16 %v379
    %v1869 = vunpack.c.h.b16 %v379
    %v1870 = vunpack.c.l.b16 %v380
    %v1871 = vunpack.c.h.b16 %v380
    %v1872 = vunpack.c.l.b16 %v381
    %v1873 = vunpack.c.h.b16 %v381
    %v1874 = vunpack.c.l.b16 %v382
    %v1875 = vunpack.c.h.b16 %v382
    %v1876 = vunpack.c.l.b16 %v383
    %v1877 = vunpack.c.h.b16 %v383
    %v1878 = vunpack.c.l.b16 %v384
    %v1879 = vunpack.c.h.b16 %v384
    %v1880 = vunpack.c.l.b16 %v385
    %v1881 = vunpack.c.h.b16 %v385
    %v1882 = vunpack.c.l.b16 %v386
    %v1883 = vunpack.c.h.b16 %v386
    %v1884 = vunpack.c.l.b16 %v387
    %v1885 = vunpack.c.h.b16 %v387
    %v1886 = vunpack.c.l.b16 %v388
    %v1887 = vunpack.c.h.b16 %v388
    %v1888 = vunpack.c.l.b16 %v389
    %v1889 = vunpack.c.h.b16 %v389
    %v1890 = vunpack.c.l.b16 %v390
    %v1891 = vunpack.c.h.b16 %v390
    %v1892 = vunpack.c.l.b16 %v391
    %v1893 = vunpack.c.h.b16 %v391
    %v1894 = vunpack.c.l.b16 %v392
    %v1895 = vunpack.c.h.b16 %v392
    %v1896 = vunpack.c.l.b16 %v393
    %v1897 = vunpack.c.h.b16 %v393
    %v1898 = vunpack.c.l.b16 %v394
    %v1899 = vunpack.c.h.b16 %v394
    %v1900 = vunpack.c.l.b16 %v395
    %v1901 = vunpack.c.h.b16 %v395
    %v1902 = vunpack.c.l.b16 %v396
    %v1903 = vunpack.c.h.b16 %v396
    %v1904 = vunpack.c.l.b16 %v397
    %v1905 = vunpack.c.h.b16 %v397
    %v1906 = vunpack.c.l.b16 %v398
    %v1907 = vunpack.c.h.b16 %v398
    %v1908 = vunpack.c.l.b16 %v399
    %v1909 = vunpack.c.h.b16 %v399
    %v1910 = vunpack.c.l.b16 %v400
    %v1911 = vunpack.c.h.b16 %v400
    %v1912 = vunpack.c.l.b16 %v401
    %v1913 = vunpack.c.h.b16 %v401
    %v1914 = vunpack.c.l.b16 %v402
    %v1915 = vunpack.c.h.b16 %v402
    %v1916 = vunpack.c.l.b16 %v403
    %v1917 = vunpack.c.h.b16 %v403
    %v1918 = vunpack.c.l.b16 %v404
    %v1919 = vunpack.c.h.b16 %v404
    %v1920 = vunpack.c.l.b16 %v405
    %v1921 = vunpack.c.h.b16 %v405
    %v1922 = vunpack.c.l.b16 %v406
    %v1923 = vunpack.c.h.b16 %v406
    %v1924 = vunpack.c.l.b16 %v407
    %v1925 = vunpack.c.h.b16 %v407
    %v1926 = vunpack.c.l.b16 %v408
    %v1927 = vunpack.c.h.b16 %v408
    %v1928 = vunpack.c.l.b16 %v409
    %v1929 = vunpack.c.h.b16 %v409
    %v1930 = vunpack.c.l.b16 %v410
    %v1931 = vunpack.c.h.b16 %v410
    %v1932 = vunpack.c.l.b16 %v411
    %v1933 = vunpack.c.h.b16 %v411
    %v1934 = vunpack.c.l.b16 %v412
    %v1935 = vunpack.c.h.b16 %v412
    %v1936 = vunpack.c.l.b16 %v413
    %v1937 = vunpack.c.h.b16 %v413
    %v1938 = vunpack.c.l.b16 %v414
    %v1939 = vunpack.c.h.b16 %v414
    %v1940 = vunpack.c.l.b16 %v415
    %v1941 = vunpack.c.h.b16 %v415
    %v1942 = vunpack.c.l.b16 %v416
    %v1943 = vunpack.c.h.b16 %v416
    %v1944 = vunpack.c.l.b16 %v417
    %v1945 = vunpack.c.h.b16 %v417
    %v1946 = vunpack.c.l.b16 %v418
    %v1947 = vunpack.c.h.b16 %v418
    %v1948 = vunpack.c.l.b16 %v419
    %v1949 = vunpack.c.h.b16 %v419
    %v1950 = vunpack.c.l.b16 %v420
    %v1951 = vunpack.c.h.b16 %v420
    %v1952 = vunpack.c.l.b16 %v421
    %v1953 = vunpack.c.h.b16 %v421
    %v1954 = vunpack.c.l.b16 %v422
    %v1955 = vunpack.c.h.b16 %v422
    %v1956 = vunpack.c.l.b16 %v423
    %v1957 = vunpack.c.h.b16 %v423
    %v1958 = vunpack.c.l.b16 %v424
    %v1959 = vunpack.c.h.b16 %v424
    %v1960 = vunpack.c.l.b16 %v425
    %v1961 = vunpack.c.h.b16 %v425
    %v1962 = vunpack.c.l.b16 %v426
    %v1963 = vunpack.c.h.b16 %v426
    %v1964 = vunpack.c.l.b16 %v427
    %v1965 = vunpack.c.h.b16 %v427
    %v1966 = vunpack.c.l.b16 %v428
    %v1967 = vunpack.c.h.b16 %v428
    %v1968 = vunpack.c.l.b16 %v429
    %v1969 = vunpack.c.h.b16 %v429
    %v1970 = vunpack.c.l.b16 %v430
    %v1971 = vunpack.c.h.b16 %v430
    %v1972 = vunpack.c.l.b16 %v431
    %v1973 = vunpack.c.h.b16 %v431
    %v1974 = vunpack.c.l.b16 %v432
    %v1975 = vunpack.c.h.b16 %v432
    %v1976 = vunpack.c.l.b16 %v433
    %v1977 = vunpack.c.h.b16 %v433
    %v1978 = vunpack.c.l.b16 %v434
    %v1979 = vunpack.c.h.b16 %v434
    %v1980 = vunpack.c.l.b16 %v435
    %v1981 = vunpack.c.h.b16 %v435
    %v1982 = vunpack.c.l.b16 %v436
    %v1983 = vunpack.c.h.b16 %v436
    %v1984 = vunpack.c.l.b16 %v437
    %v1985 = vunpack.c.h.b16 %v437
    %v1986 = vunpack.c.l.b16 %v438
    %v1987 = vunpack.c.h.b16 %v438
    %v1988 = vunpack.c.l.b16 %v439
    %v1989 = vunpack.c.h.b16 %v439
    %v1990 = vunpack.c.l.b16 %v440
    %v1991 = vunpack.c.h.b16 %v440
    %v1992 = vunpack.c.l.b16 %v441
    %v1993 = vunpack.c.h.b16 %v441
    %v1994 = vunpack.c.l.b16 %v442
    %v1995 = vunpack.c.h.b16 %v442
    %v1996 = vunpack.c.l.b16 %v443
    %v1997 = vunpack.c.h.b16 %v443
    %v1998 = vunpack.c.l.b16 %v444
    %v1999 = vunpack.c.h.b16 %v444
    %v2000 = vunpack.c.l.b16 %v445
    %v2001 = vunpack.c.h.b16 %v445
    %v2002 = vunpack.c.l.b16 %v446
    %v2003 = vunpack.c.h.b16 %v446
    %v2004 = vunpack.c.l.b16 %v447
    %v2005 = vunpack.c.h.b16 %v447
    %v2006 = vunpack.c.l.b16 %v448
    %v2007 = vunpack.c.h.b16 %v448
    %v2008 = vunpack.c.l.b16 %v449
    %v2009 = vunpack.c.h.b16 %v449
    %v2010 = vunpack.c.l.b16 %v450
    %v2011 = vunpack.c.h.b16 %v450
    %v2012 = vunpack.c.l.b16 %v451
    %v2013 = vunpack.c.h.b16 %v451
    %v2014 = vunpack.c.l.b16 %v452
    %v2015 = vunpack.c.h.b16 %v452
    %v2016 = vunpack.c.l.b16 %v453
    %v2017 = vunpack.c.h.b16 %v453
    %v2018 = vunpack.c.l.b16 %v454
    %v2019 = vunpack.c.h.b16 %v454
    %v2020 = vunpack.c.l.b16 %v455
    %v2021 = vunpack.c.h.b16 %v455
    %v2022 = vunpack.c.l.b16 %v456
    %v2023 = vunpack.c.h.b16 %v456
    %v2024 = vunpack.c.l.b16 %v457
    %v2025 = vunpack.c.h.b16 %v457
    %v2026 = vunpack.c.l.b16 %v458
    %v2027 = vunpack.c.h.b16 %v458
    %v2028 = vunpack.c.l.b16 %v459
    %v2029 = vunpack.c.h.b16 %v459
    %v2030 = vunpack.c.l.b16 %v460
    %v2031 = vunpack.c.h.b16 %v460
    %v2032 = vunpack.c.l.b16 %v461
    %v2033 = vunpack.c.h.b16 %v461
    %v2034 = vunpack.c.l.b16 %v462
    %v2035 = vunpack.c.h.b16 %v462
    %v2036 = vunpack.c.l.b16 %v463
    %v2037 = vunpack.c.h.b16 %v463
    %v2038 = vunpack.c.l.b16 %v464
    %v2039 = vunpack.c.h.b16 %v464
    %v2040 = vunpack.c.l.b16 %v465
    %v2041 = vunpack.c.h.b16 %v465
    %v2042 = vunpack.c.l.b16 %v466
    %v2043 = vunpack.c.h.b16 %v466
    %v2044 = vunpack.c.l.b16 %v467
    %v2045 = vunpack.c.h.b16 %v467
    %v2046 = vunpack.c.l.b16 %v468
    %v2047 = vunpack.c.h.b16 %v468
    %v2048 = vunpack.c.l.b16 %v469
    %v2049 = vunpack.c.h.b16 %v469
    %v2050 = vunpack.c.l.b16 %v470
    %v2051 = vunpack.c.h.b16 %v470
    %v2052 = vunpack.c.l.b16 %v471
    %v2053 = vunpack.c.h.b16 %v471
    %v2054 = vunpack.c.l.b16 %v472
    %v2055 = vunpack.c.h.b16 %v472
    %v2056 = vunpack.c.l.b16 %v473
    %v2057 = vunpack.c.h.b16 %v473
    %v2058 = vunpack.c.l.b16 %v474
    %v2059 = vunpack.c.h.b16 %v474
    %v2060 = vunpack.c.l.b16 %v475
    %v2061 = vunpack.c.h.b16 %v475
    %v2062 = vunpack.c.l.b16 %v476
    %v2063 = vunpack.c.h.b16 %v476
    %v2064 = vunpack.c.l.b16 %v477
    %v2065 = vunpack.c.h.b16 %v477
    %v2066 = vunpack.c.l.b16 %v478
    %v2067 = vunpack.c.h.b16 %v478
    %v2068 = vunpack.c.l.b16 %v479
    %v2069 = vunpack.c.h.b16 %v479
    %v2070 = vunpack.c.l.b16 %v480
    %v2071 = vunpack.c.h.b16 %v480
    %v2072 = vunpack.c.l.b16 %v481
    %v2073 = vunpack.c.h.b16 %v481
    %v2074 = vunpack.c.l.b16 %v482
    %v2075 = vunpack.c.h.b16 %v482
    %v2076 = vunpack.c.l.b16 %v483
    %v2077 = vunpack.c.h.b16 %v483
    %v2078 = vunpack.c.l.b16 %v484
    %v2079 = vunpack.c.h.b16 %v484
    %v2080 = vunpack.c.l.b16 %v485
    %v2081 = vunpack.c.h.b16 %v485
    %v2082 = vunpack.c.l.b16 %v486
    %v2083 = vunpack.c.h.b16 %v486
    %v2084 = vunpack.c.l.b16 %v487
    %v2085 = vunpack.c.h.b16 %v487
    %v2086 = vunpack.c.l.b16 %v488
    %v2087 = vunpack.c.h.b16 %v488
    %v2088 = vunpack.c.l.b16 %v489
    %v2089 = vunpack.c.h.b16 %v489
    %v2090 = vunpack.c.l.b16 %v490
    %v2091 = vunpack.c.h.b16 %v490
    %v2092 = vunpack.c.l.b16 %v491
    %v2093 = vunpack.c.h.b16 %v491
    %v2094 = vunpack.c.l.b16 %v492
    %v2095 = vunpack.c.h.b16 %v492
    %v2096 = vunpack.c.l.b16 %v493
    %v2097 = vunpack.c.h.b16 %v493
    %v2098 = vunpack.c.l.b16 %v494
    %v2099 = vunpack.c.h.b16 %v494
    %v2100 = vunpack.c.l.b16 %v495
    %v2101 = vunpack.c.h.b16 %v495
    %v2102 = vunpack.c.l.b16 %v496
    %v2103 = vunpack.c.h.b16 %v496
    %v2104 = vunpack.c.l.b16 %v497
    %v2105 = vunpack.c.h.b16 %v497
    %v2106 = vunpack.c.l.b16 %v498
    %v2107 = vunpack.c.h.b16 %v498
    %v2108 = vunpack.c.l.b16 %v499
    %v2109 = vunpack.c.h.b16 %v499
    %v2110 = vunpack.c.l.b16 %v500
    %v2111 = vunpack.c.h.b16 %v500
    %v2112 = vunpack.c.l.b16 %v501
    %v2113 = vunpack.c.h.b16 %v501
    %v2114 = vunpack.c.l.b16 %v502
    %v2115 = vunpack.c.h.b16 %v502
    %v2116 = vunpack.c.l.b16 %v503
    %v2117 = vunpack.c.h.b16 %v503
    %v2118 = vunpack.c.l.b16 %v504
    %v2119 = vunpack.c.h.b16 %v504
    %v2120 = vunpack.c.l.b16 %v505
    %v2121 = vunpack.c.h.b16 %v505
    %v2122 = vunpack.c.l.b16 %v506
    %v2123 = vunpack.c.h.b16 %v506
    %v2124 = vunpack.c.l.b16 %v507
    %v2125 = vunpack.c.h.b16 %v507
    %v2126 = vunpack.c.l.b16 %v508
    %v2127 = vunpack.c.h.b16 %v508
    %v2128 = vunpack.c.l.b16 %v509
    %v2129 = vunpack.c.h.b16 %v509
    %v2130 = vunpack.c.l.b16 %v510
    %v2131 = vunpack.c.h.b16 %v510
    %v2132 = vunpack.c.l.b16 %v511
    %v2133 = vunpack.c.h.b16 %v511
    %v2134 = vunpack.c.l.b16 %v512
    %v2135 = vunpack.c.h.b16 %v512
    %v2136 = vunpack.c.l.b16 %v513
    %v2137 = vunpack.c.h.b16 %v513
    %v2138 = vunpack.c.l.b16 %v514
    %v2139 = vunpack.c.h.b16 %v514
    %v2140 = vunpack.c.l.b16 %v515
    %v2141 = vunpack.c.h.b16 %v515
    %v2142 = vunpack.c.l.b16 %v516
    %v2143 = vunpack.c.h.b16 %v516
    %v2144 = vunpack.c.l.b16 %v517
    %v2145 = vunpack.c.h.b16 %v517
    %v2146 = vunpack.c.l.b16 %v518
    %v2147 = vunpack.c.h.b16 %v518
    %v2148 = vunpack.c.l.b16 %v519
    %v2149 = vunpack.c.h.b16 %v519
    %v2150 = vunpack.c.l.b16 %v520
    %v2151 = vunpack.c.h.b16 %v520
    %v2152 = vunpack.c.l.b16 %v521
    %v2153 = vunpack.c.h.b16 %v521
    %v2154 = vunpack.c.l.b16 %v522
    %v2155 = vunpack.c.h.b16 %v522
    %v2156 = vunpack.c.l.b16 %v523
    %v2157 = vunpack.c.h.b16 %v523
    %v2158 = vunpack.c.l.b16 %v524
    %v2159 = vunpack.c.h.b16 %v524
    %v2160 = vunpack.c.l.b16 %v525
    %v2161 = vunpack.c.h.b16 %v525
    %v2162 = vunpack.c.l.b16 %v526
    %v2163 = vunpack.c.h.b16 %v526
    %v2164 = vunpack.c.l.b16 %v527
    %v2165 = vunpack.c.h.b16 %v527
    %v2166 = vunpack.c.l.b16 %v528
    %v2167 = vunpack.c.h.b16 %v528
    %v2168 = vunpack.c.l.b16 %v529
    %v2169 = vunpack.c.h.b16 %v529
    %v2170 = vunpack.c.l.b16 %v530
    %v2171 = vunpack.c.h.b16 %v530
    %v2172 = vunpack.c.l.b16 %v531
    %v2173 = vunpack.c.h.b16 %v531
    %v2174 = vunpack.c.l.b16 %v532
    %v2175 = vunpack.c.h.b16 %v532
    %v2176 = vunpack.c.l.b16 %v533
    %v2177 = vunpack.c.h.b16 %v533
    %v2178 = vunpack.c.l.b16 %v534
    %v2179 = vunpack.c.h.b16 %v534
    %v2180 = vunpack.c.l.b16 %v535
    %v2181 = vunpack.c.h.b16 %v535
    %v2182 = vunpack.c.l.b16 %v536
    %v2183 = vunpack.c.h.b16 %v536
    %v2184 = vunpack.c.l.b16 %v537
    %v2185 = vunpack.c.h.b16 %v537
    %v2186 = vunpack.c.l.b16 %v538
    %v2187 = vunpack.c.h.b16 %v538
    %v2188 = vunpack.c.l.b16 %v539
    %v2189 = vunpack.c.h.b16 %v539
    %v2190 = vunpack.c.l.b16 %v540
    %v2191 = vunpack.c.h.b16 %v540
    %v2192 = vunpack.c.l.b16 %v541
    %v2193 = vunpack.c.h.b16 %v541
    %v2194 = vunpack.c.l.b16 %v542
    %v2195 = vunpack.c.h.b16 %v542
    %v2196 = vunpack.c.l.b16 %v543
    %v2197 = vunpack.c.h.b16 %v543
    %v2198 = vunpack.c.l.b16 %v544
    %v2199 = vunpack.c.h.b16 %v544
    %v2200 = vunpack.c.l.b16 %v545
    %v2201 = vunpack.c.h.b16 %v545
    %v2202 = vunpack.c.l.b16 %v546
    %v2203 = vunpack.c.h.b16 %v546
    %v2204 = vunpack.c.l.b16 %v547
    %v2205 = vunpack.c.h.b16 %v547
    %v2206 = vunpack.c.l.b16 %v548
    %v2207 = vunpack.c.h.b16 %v548
    %v2208 = vunpack.c.l.b16 %v549
    %v2209 = vunpack.c.h.b16 %v549
    %v2210 = vunpack.c.l.b16 %v550
    %v2211 = vunpack.c.h.b16 %v550
    %v2212 = vunpack.c.l.b16 %v551
    %v2213 = vunpack.c.h.b16 %v551
    %v2214 = vunpack.c.l.b16 %v552
    %v2215 = vunpack.c.h.b16 %v552
    %v2216 = vunpack.c.l.b16 %v553
    %v2217 = vunpack.c.h.b16 %v553
    %v2218 = vunpack.c.l.b16 %v554
    %v2219 = vunpack.c.h.b16 %v554
    %v2220 = vunpack.c.l.b16 %v555
    %v2221 = vunpack.c.h.b16 %v555
    %v2222 = vunpack.c.l.b16 %v556
    %v2223 = vunpack.c.h.b16 %v556
    %v2224 = vunpack.c.l.b16 %v557
    %v2225 = vunpack.c.h.b16 %v557
    %v2226 = vunpack.c.l.b16 %v558
    %v2227 = vunpack.c.h.b16 %v558
    %v2228 = vunpack.c.l.b16 %v559
    %v2229 = vunpack.c.h.b16 %v559
    %v2230 = vunpack.c.l.b16 %v560
    %v2231 = vunpack.c.h.b16 %v560
    %v2232 = vunpack.c.l.b16 %v561
    %v2233 = vunpack.c.h.b16 %v561
    %v2234 = vunpack.c.l.b16 %v562
    %v2235 = vunpack.c.h.b16 %v562
    %v2236 = vunpack.c.l.b16 %v563
    %v2237 = vunpack.c.h.b16 %v563
    %v2238 = vunpack.c.l.b16 %v564
    %v2239 = vunpack.c.h.b16 %v564
    %v2240 = vunpack.c.l.b16 %v565
    %v2241 = vunpack.c.h.b16 %v565
    %v2242 = vunpack.c.l.b16 %v566
    %v2243 = vunpack.c.h.b16 %v566
    %v2244 = vunpack.c.l.b16 %v567
    %v2245 = vunpack.c.h.b16 %v567
    %v2246 = vunpack.c.l.b16 %v568
    %v2247 = vunpack.c.h.b16 %v568
    %v2248 = vunpack.c.l.b16 %v569
    %v2249 = vunpack.c.h.b16 %v569
    %v2250 = vunpack.c.l.b16 %v570
    %v2251 = vunpack.c.h.b16 %v570
    %v2252 = vunpack.c.l.b16 %v571
    %v2253 = vunpack.c.h.b16 %v571
    %v2254 = vunpack.c.l.b16 %v572
    %v2255 = vunpack.c.h.b16 %v572
    %v2256 = vunpack.c.l.b16 %v573
    %v2257 = vunpack.c.h.b16 %v573
    %v2258 = vunpack.c.l.b16 %v574
    %v2259 = vunpack.c.h.b16 %v574
    %v2260 = vunpack.c.l.b16 %v575
    %v2261 = vunpack.c.h.b16 %v575
    %v2262 = vunpack.c.l.b16 %v576
    %v2263 = vunpack.c.h.b16 %v576
    %v2264 = vunpack.c.l.b16 %v577
    %v2265 = vunpack.c.h.b16 %v577
    %v2266 = vunpack.c.l.b16 %v578
    %v2267 = vunpack.c.h.b16 %v578
    %v2268 = vunpack.c.l.b16 %v579
    %v2269 = vunpack.c.h.b16 %v579
    %v2270 = vunpack.c.l.b16 %v580
    %v2271 = vunpack.c.h.b16 %v580
    %v2272 = vunpack.c.l.b16 %v581
    %v2273 = vunpack.c.h.b16 %v581
    %v2274 = vunpack.c.l.b16 %v582
    %v2275 = vunpack.c.h.b16 %v582
    %v2276 = vunpack.c.l.b16 %v583
    %v2277 = vunpack.c.h.b16 %v583
    %v2278 = vunpack.c.l.b16 %v584
    %v2279 = vunpack.c.h.b16 %v584
    %v2280 = vunpack.c.l.b16 %v585
    %v2281 = vunpack.c.h.b16 %v585
    %v2282 = vunpack.c.l.b16 %v586
    %v2283 = vunpack.c.h.b16 %v586
    %v2284 = vunpack.c.l.b16 %v587
    %v2285 = vunpack.c.h.b16 %v587
    %v2286 = vunpack.c.l.b16 %v588
    %v2287 = vunpack.c.h.b16 %v588
    %v2288 = vunpack.c.l.b16 %v589
    %v2289 = vunpack.c.h.b16 %v589
    %v2290 = vunpack.c.l.b16 %v590
    %v2291 = vunpack.c.h.b16 %v590
    %v2292 = vunpack.c.l.b16 %v591
    %v2293 = vunpack.c.h.b16 %v591
    %v2294 = vunpack.c.l.b16 %v592
    %v2295 = vunpack.c.h.b16 %v592
    %v2296 = vunpack.c.l.b16 %v593
    %v2297 = vunpack.c.h.b16 %v593
    %v2298 = vunpack.c.l.b16 %v594
    %v2299 = vunpack.c.h.b16 %v594
    %v2300 = vunpack.c.l.b16 %v595
    %v2301 = vunpack.c.h.b16 %v595
    %v2302 = vunpack.c.l.b16 %v596
    %v2303 = vunpack.c.h.b16 %v596
    %v2304 = vunpack.c.l.b16 %v597
    %v2305 = vunpack.c.h.b16 %v597
    %v2306 = vunpack.c.l.b16 %v598
    %v2307 = vunpack.c.h.b16 %v598
    %v2308 = vunpack.c.l.b16 %v599
    %v2309 = vunpack.c.h.b16 %v599
    %v2310 = vunpack.c.l.b16 %v600
    %v2311 = vunpack.c.h.b16 %v600
    %v2312 = vunpack.c.l.b16 %v601
    %v2313 = vunpack.c.h.b16 %v601
    %v2314 = vunpack.c.l.b16 %v602
    %v2315 = vunpack.c.h.b16 %v602
    %v2316 = vunpack.c.l.b16 %v603
    %v2317 = vunpack.c.h.b16 %v603
    %v2318 = vunpack.c.l.b16 %v604
    %v2319 = vunpack.c.h.b16 %v604
    %v2320 = vunpack.c.l.b16 %v605
    %v2321 = vunpack.c.h.b16 %v605
    %v2322 = vunpack.c.l.b16 %v606
    %v2323 = vunpack.c.h.b16 %v606
    %v2324 = vunpack.c.l.b16 %v607
    %v2325 = vunpack.c.h.b16 %v607
    %v2326 = vunpack.c.l.b16 %v608
    %v2327 = vunpack.c.h.b16 %v608
    %v2328 = vunpack.c.l.b16 %v609
    %v2329 = vunpack.c.h.b16 %v609
    %v2330 = vunpack.c.l.b16 %v610
    %v2331 = vunpack.c.h.b16 %v610
    %v2332 = vunpack.c.l.b16 %v611
    %v2333 = vunpack.c.h.b16 %v611
    %v2334 = vunpack.c.l.b16 %v612
    %v2335 = vunpack.c.h.b16 %v612
    %v2336 = vunpack.c.l.b16 %v613
    %v2337 = vunpack.c.h.b16 %v613
    %v2338 = vunpack.c.l.b16 %v614
    %v2339 = vunpack.c.h.b16 %v614
    %v2340 = vunpack.c.l.b16 %v615
    %v2341 = vunpack.c.h.b16 %v615
    %v2342 = vunpack.c.l.b16 %v616
    %v2343 = vunpack.c.h.b16 %v616
    %v2344 = vunpack.c.l.b16 %v617
    %v2345 = vunpack.c.h.b16 %v617
    %v2346 = vunpack.c.l.b16 %v618
    %v2347 = vunpack.c.h.b16 %v618
    %v2348 = vunpack.c.l.b16 %v619
    %v2349 = vunpack.c.h.b16 %v619
    %v2350 = vunpack.c.l.b16 %v620
    %v2351 = vunpack.c.h.b16 %v620
    %v2352 = vunpack.c.l.b16 %v621
    %v2353 = vunpack.c.h.b16 %v621
    %v2354 = vunpack.c.l.b16 %v622
    %v2355 = vunpack.c.h.b16 %v622
    %v2356 = vunpack.c.l.b16 %v623
    %v2357 = vunpack.c.h.b16 %v623
    %v2358 = vunpack.c.l.b16 %v624
    %v2359 = vunpack.c.h.b16 %v624
    %v2360 = vunpack.c.l.b16 %v625
    %v2361 = vunpack.c.h.b16 %v625
    %v2362 = vunpack.c.l.b16 %v626
    %v2363 = vunpack.c.h.b16 %v626
    %v2364 = vunpack.c.l.b16 %v627
    %v2365 = vunpack.c.h.b16 %v627
    %v2366 = vunpack.c.l.b16 %v628
    %v2367 = vunpack.c.h.b16 %v628
    %v2368 = vunpack.c.l.b16 %v629
    %v2369 = vunpack.c.h.b16 %v629
    %v2370 = vunpack.c.l.b16 %v630
    %v2371 = vunpack.c.h.b16 %v630
    %v2372 = vunpack.c.l.b16 %v631
    %v2373 = vunpack.c.h.b16 %v631
    %v2374 = vunpack.c.l.b16 %v632
    %v2375 = vunpack.c.h.b16 %v632
    %v2376 = vunpack.c.l.b16 %v633
    %v2377 = vunpack.c.h.b16 %v633
    %v2378 = vunpack.c.l.b16 %v634
    %v2379 = vunpack.c.h.b16 %v634
    %v2380 = vunpack.c.l.b16 %v635
    %v2381 = vunpack.c.h.b16 %v635
    %v2382 = vunpack.c.l.b16 %v636
    %v2383 = vunpack.c.h.b16 %v636
    %v2384 = vunpack.c.l.b16 %v637
    %v2385 = vunpack.c.h.b16 %v637
    %v2386 = vunpack.c.l.b16 %v638
    %v2387 = vunpack.c.h.b16 %v638
    %v2388 = vunpack.c.l.b16 %v639
    %v2389 = vunpack.c.h.b16 %v639
    %v2390 = vpack.c.b16 %v1242, %v1238
    %v2391 = vpack.c.b16 %v1243, %v1239
    %v2392 = vpack.c.b16 %v1244, %v1240
    %v2393 = vpack.c.b16 %v1245, %v1241
    %v2394 = vpack.c.b16 %v1250, %v1246
    %v2395 = vpack.c.b16 %v1251, %v1247
    %v2396 = vpack.c.b16 %v1252, %v1248
    %v2397 = vpack.c.b16 %v1253, %v1249
    %v2398 = vpack.c.b16 %v1258, %v1254
    %v2399 = vpack.c.b16 %v1259, %v1255
    %v2400 = vpack.c.b16 %v1260, %v1256
    %v2401 = vpack.c.b16 %v1261, %v1257
    %v2402 = vpack.c.b16 %v1266, %v1262
    %v2403 = vpack.c.b16 %v1267, %v1263
    %v2404 = vpack.c.b16 %v1268, %v1264
    %v2405 = vpack.c.b16 %v1269, %v1265
    %v2406 = vpack.c.b16 %v1274, %v1270
    %v2407 = vpack.c.b16 %v1275, %v1271
    %v2408 = vpack.c.b16 %v1276, %v1272
    %v2409 = vpack.c.b16 %v1277, %v1273
    %v2410 = vpack.c.b16 %v1282, %v1278
    %v2411 = vpack.c.b16 %v1283, %v1279
    %v2412 = vpack.c.b16 %v1284, %v1280
    %v2413 = vpack.c.b16 %v1285, %v1281
    %v2414 = vpack.c.b16 %v1290, %v1286
    %v2415 = vpack.c.b16 %v1291, %v1287
    %v2416 = vpack.c.b16 %v1292, %v1288
    %v2417 = vpack.c.b16 %v1293, %v1289
    %v2418 = vpack.c.b16 %v1298, %v1294
    %v2419 = vpack.c.b16 %v1299, %v1295
    %v2420 = vpack.c.b16 %v1300, %v1296
    %v2421 = vpack.c.b16 %v1301, %v1297
    %v2422 = vpack.c.b16 %v1306, %v1302
    %v2423 = vpack.c.b16 %v1307, %v1303
    %v2424 = vpack.c.b16 %v1308, %v1304
    %v2425 = vpack.c.b16 %v1309, %v1305
    %v2426 = vpack.c.b16 %v1314, %v1310
    %v2427 = vpack.c.b16 %v1315, %v1311
    %v2428 = vpack.c.b16 %v1316, %v1312
    %v2429 = vpack.c.b16 %v1317, %v1313
    %v2430 = vpack.c.b16 %v1322, %v1318
    %v2431 = vpack.c.b16 %v1323, %v1319
    %v2432 = vpack.c.b16 %v1324, %v1320
    %v2433 = vpack.c.b16 %v1325, %v1321
    %v2434 = vpack.c.b16 %v1330, %v1326
    %v2435 = vpack.c.b16 %v1331, %v1327
    %v2436 = vpack.c.b16 %v1332, %v1328
    %v2437 = vpack.c.b16 %v1333, %v1329
    %v2438 = vpack.c.b16 %v1338, %v1334
    %v2439 = vpack.c.b16 %v1339, %v1335
    %v2440 = vpack.c.b16 %v1340, %v1336
    %v2441 = vpack.c.b16 %v1341, %v1337
    %v2442 = vpack.c.b16 %v1346, %v1342
    %v2443 = vpack.c.b16 %v1347, %v1343
    %v2444 = vpack.c.b16 %v1348, %v1344
    %v2445 = vpack.c.b16 %v1349, %v1345
    %v2446 = vpack.c.b16 %v1354, %v1350
    %v2447 = vpack.c.b16 %v1355, %v1351
    %v2448 = vpack.c.b16 %v1356, %v1352
    %v2449 = vpack.c.b16 %v1357, %v1353
    %v2450 = vpack.c.b16 %v1362, %v1358
    %v2451 = vpack.c.b16 %v1363, %v1359
    %v2452 = vpack.c.b16 %v1364, %v1360
    %v2453 = vpack.c.b16 %v1365, %v1361
    %v2454 = vpack.c.b16 %v1370, %v1366
    %v2455 = vpack.c.b16 %v1371, %v1367
    %v2456 = vpack.c.b16 %v1372, %v1368
    %v2457 = vpack.c.b16 %v1373, %v1369
    %v2458 = vpack.c.b16 %v1378, %v1374
    %v2459 = vpack.c.b16 %v1379, %v1375
    %v2460 = vpack.c.b16 %v1380, %v1376
    %v2461 = vpack.c.b16 %v1381, %v1377
    %v2462 = vpack.c.b16 %v1386, %v1382
    %v2463 = vpack.c.b16 %v1387, %v1383
    %v2464 = vpack.c.b16 %v1388, %v1384
    %v2465 = vpack.c.b16 %v1389, %v1385
    %v2466 = vpack.c.b16 %v1394, %v1390
    %v2467 = vpack.c.b16 %v1395, %v1391
    %v2468 = vpack.c.b16 %v1396, %v1392
    %v2469 = vpack.c.b16 %v1397, %v1393
    %v2470 = vpack.c.b16 %v1402, %v1398
    %v2471 = vpack.c.b16 %v1403, %v1399
    %v2472 = vpack.c.b16 %v1404, %v1400
    %v2473 = vpack.c.b16 %v1405, %v1401
    %v2474 = vpack.c.b16 %v1410, %v1406
    %v2475 = vpack.c.b16 %v1411, %v1407
    %v2476 = vpack.c.b16 %v1412, %v1408
    %v2477 = vpack.c.b16 %v1413, %v1409
    %v2478 = vpack.c.b16 %v1418, %v1414
    %v2479 = vpack.c.b16 %v1419, %v1415
    %v2480 = vpack.c.b16 %v1420, %v1416
    %v2481 = vpack.c.b16 %v1421, %v1417
    %v2482 = vpack.c.b16 %v1426, %v1422
    %v2483 = vpack.c.b16 %v1427, %v1423
    %v2484 = vpack.c.b16 %v1428, %v1424
    %v2485 = vpack.c.b16 %v1429, %v1425
    %v2486 = vpack.c.b16 %v1434, %v1430
    %v2487 = vpack.c.b16 %v1435, %v1431
    %v2488 = vpack.c.b16 %v1436, %v1432
    %v2489 = vpack.c.b16 %v1437, %v1433
    %v2490 = vpack.c.b16 %v1442, %v1438
    %v2491 = vpack.c.b16 %v1443, %v1439
    %v2492 = vpack.c.b16 %v1444, %v1440
    %v2493 = vpack.c.b16 %v1445, %v1441
    %v2494 = vpack.c.b16 %v1450, %v1446
    %v2495 = vpack.c.b16 %v1451, %v1447
    %v2496 = vpack.c.b16 %v1452, %v1448
    %v2497 = vpack.c.b16 %v1453, %v1449
    %v2498 = vpack.c.b16 %v1458, %v1454
    %v2499 = vpack.c.b16 %v1459, %v1455
    %v2500 = vpack.c.b16 %v1460, %v1456
    %v2501 = vpack.c.b16 %v1461, %v1457
    %v2502 = vpack.c.b16 %v1466, %v1462
    %v2503 = vpack.c.b16 %v1467, %v1463
    %v2504 = vpack.c.b16 %v1468, %v1464
    %v2505 = vpack.c.b16 %v1469, %v1465
    %v2506 = vpack.c.b16 %v1474, %v1470
    %v2507 = vpack.c.b16 %v1475, %v1471
    %v2508 = vpack.c.b16 %v1476, %v1472
    %v2509 = vpack.c.b16 %v1477, %v1473
    %v2510 = vpack.c.b16 %v1482, %v1478
    %v2511 = vpack.c.b16 %v1483, %v1479
    %v2512 = vpack.c.b16 %v1484, %v1480
    %v2513 = vpack.c.b16 %v1485, %v1481
    %v2514 = vpack.c.b16 %v1490, %v1486
    %v2515 = vpack.c.b16 %v1491, %v1487
    %v2516 = vpack.c.b16 %v1492, %v1488
    %v2517 = vpack.c.b16 %v1493, %v1489
    %v2518 = vpack.c.b16 %v1498, %v1494
    %v2519 = vpack.c.b16 %v1499, %v1495
    %v2520 = vpack.c.b16 %v1500, %v1496
    %v2521 = vpack.c.b16 %v1501, %v1497
    %v2522 = vpack.c.b16 %v1506, %v1502
    %v2523 = vpack.c.b16 %v1507, %v1503
    %v2524 = vpack.c.b16 %v1508, %v1504
    %v2525 = vpack.c.b16 %v1509, %v1505
    %v2526 = vpack.c.b16 %v1514, %v1510
    %v2527 = vpack.c.b16 %v1515, %v1511
    %v2528 = vpack.c.b16 %v1516, %v1512
    %v2529 = vpack.c.b16 %v1517, %v1513
    %v2530 = vpack.c.b16 %v1522, %v1518
    %v2531 = vpack.c.b16 %v1523, %v1519
    %v2532 = vpack.c.b16 %v1524, %v1520
    %v2533 = vpack.c.b16 %v1525, %v1521
    %v2534 = vpack.c.b16 %v1530, %v1526
    %v2535 = vpack.c.b16 %v1531, %v1527
    %v2536 = vpack.c.b16 %v1532, %v1528
    %v2537 = vpack.c.b16 %v1533, %v1529
    %v2538 = vpack.c.b16 %v1538, %v1534
    %v2539 = vpack.c.b16 %v1539, %v1535
    %v2540 = vpack.c.b16 %v1540, %v1536
    %v2541 = vpack.c.b16 %v1541, %v1537
    %v2542 = vpack.c.b16 %v1546, %v1542
    %v2543 = vpack.c.b16 %v1547, %v1543
    %v2544 = vpack.c.b16 %v1548, %v1544
    %v2545 = vpack.c.b16 %v1549, %v1545
    %v2546 = vpack.c.b16 %v1554, %v1550
    %v2547 = vpack.c.b16 %v1555, %v1551
    %v2548 = vpack.c.b16 %v1556, %v1552
    %v2549 = vpack.c.b16 %v1557, %v1553
    %v2550 = vpack.c.b16 %v1562, %v1558
    %v2551 = vpack.c.b16 %v1563, %v1559
    %v2552 = vpack.c.b16 %v1564, %v1560
    %v2553 = vpack.c.b16 %v1565, %v1561
    %v2554 = vpack.c.b16 %v1570, %v1566
    %v2555 = vpack.c.b16 %v1571, %v1567
    %v2556 = vpack.c.b16 %v1572, %v1568
    %v2557 = vpack.c.b16 %v1573, %v1569
    %v2558 = vpack.c.b16 %v1578, %v1574
    %v2559 = vpack.c.b16 %v1579, %v1575
    %v2560 = vpack.c.b16 %v1580, %v1576
    %v2561 = vpack.c.b16 %v1581, %v1577
    %v2562 = vpack.c.b16 %v1586, %v1582
    %v2563 = vpack.c.b16 %v1587, %v1583
    %v2564 = vpack.c.b16 %v1588, %v1584
    %v2565 = vpack.c.b16 %v1589, %v1585
    %v2566 = vpack.c.b16 %v1594, %v1590
    %v2567 = vpack.c.b16 %v1595, %v1591
    %v2568 = vpack.c.b16 %v1596, %v1592
    %v2569 = vpack.c.b16 %v1597, %v1593
    %v2570 = vpack.c.b16 %v1602, %v1598
    %v2571 = vpack.c.b16 %v1603, %v1599
    %v2572 = vpack.c.b16 %v1604, %v1600
    %v2573 = vpack.c.b16 %v1605, %v1601
    %v2574 = vpack.c.b16 %v1610, %v1606
    %v2575 = vpack.c.b16 %v1611, %v1607
    %v2576 = vpack.c.b16 %v1612, %v1608
    %v2577 = vpack.c.b16 %v1613, %v1609
    %v2578 = vpack.c.b16 %v1618, %v1614
    %v2579 = vpack.c.b16 %v1619, %v1615
    %v2580 = vpack.c.b16 %v1620, %v1616
    %v2581 = vpack.c.b16 %v1621, %v1617
    %v2582 = vpack.c.b16 %v1626, %v1622
    %v2583 = vpack.c.b16 %v1627, %v1623
    %v2584 = vpack.c.b16 %v1628, %v1624
    %v2585 = vpack.c.b16 %v1629, %v1625
    %v2586 = vpack.c.b16 %v1634, %v1630
    %v2587 = vpack.c.b16 %v1635, %v1631
    %v2588 = vpack.c.b16 %v1636, %v1632
    %v2589 = vpack.c.b16 %v1637, %v1633
    %v2590 = vpack.c.b16 %v1642, %v1638
    %v2591 = vpack.c.b16 %v1643, %v1639
    %v2592 = vpack.c.b16 %v1644, %v1640
    %v2593 = vpack.c.b16 %v1645, %v1641
    %v2594 = vpack.c.b16 %v1650, %v1646
    %v2595 = vpack.c.b16 %v1651, %v1647
    %v2596 = vpack.c.b16 %v1652, %v1648
    %v2597 = vpack.c.b16 %v1653, %v1649
    %v2598 = vpack.c.b16 %v1658, %v1654
    %v2599 = vpack.c.b16 %v1659, %v1655
    %v2600 = vpack.c.b16 %v1660, %v1656
    %v2601 = vpack.c.b16 %v1661, %v1657
    %v2602 = vpack.c.b16 %v1666, %v1662
    %v2603 = vpack.c.b16 %v1667, %v1663
    %v2604 = vpack.c.b16 %v1668, %v1664
    %v2605 = vpack.c.b16 %v1669, %v1665
    %v2606 = vpack.c.b16 %v1674, %v1670
    %v2607 = vpack.c.b16 %v1675, %v1671
    %v2608 = vpack.c.b16 %v1676, %v1672
    %v2609 = vpack.c.b16 %v1677, %v1673
    %v2610 = vpack.c.b16 %v1682, %v1678
    %v2611 = vpack.c.b16 %v1683, %v1679
    %v2612 = vpack.c.b16 %v1684, %v1680
    %v2613 = vpack.c.b16 %v1685, %v1681
    %v2614 = vpack.c.b16 %v1690, %v1686
    %v2615 = vpack.c.b16 %v1691, %v1687
    %v2616 = vpack.c.b16 %v1692, %v1688
    %v2617 = vpack.c.b16 %v1693, %v1689
    %v2618 = vpack.c.b16 %v1698, %v1694
    %v2619 = vpack.c.b16 %v1699, %v1695
    %v2620 = vpack.c.b16 %v1700, %v1696
    %v2621 = vpack.c.b16 %v1701, %v1697
    %v2622 = vpack.c.b16 %v1706, %v1702
    %v2623 = vpack.c.b16 %v1707, %v1703
    %v2624 = vpack.c.b16 %v1708, %v1704
    %v2625 = vpack.c.b16 %v1709, %v1705
    %v2626 = vpack.c.b16 %v1714, %v1710
    %v2627 = vpack.c.b16 %v1715, %v1711
    %v2628 = vpack.c.b16 %v1716, %v1712
    %v2629 = vpack.c.b16 %v1717, %v1713
    %v2630 = vpack.c.b16 %v1722, %v1718
    %v2631 = vpack.c.b16 %v1723, %v1719
    %v2632 = vpack.c.b16 %v1724, %v1720
    %v2633 = vpack.c.b16 %v1725, %v1721
    %v2634 = vpack.c.b16 %v1730, %v1726
    %v2635 = vpack.c.b16 %v1731, %v1727
    %v2636 = vpack.c.b16 %v1732, %v1728
    %v2637 = vpack.c.b16 %v1733, %v1729
    %v2638 = vpack.c.b16 %v1738, %v1734
    %v2639 = vpack.c.b16 %v1739, %v1735
    %v2640 = vpack.c.b16 %v1740, %v1736
    %v2641 = vpack.c.b16 %v1741, %v1737
    %v2642 = vpack.c.b16 %v1746, %v1742
    %v2643 = vpack.c.b16 %v1747, %v1743
    %v2644 = vpack.c.b16 %v1748, %v1744
    %v2645 = vpack.c.b16 %v1749, %v1745
    %v2646 = vpack.c.b16 %v1754, %v1750
    %v2647 = vpack.c.b16 %v1755, %v1751
    %v2648 = vpack.c.b16 %v1756, %v1752
    %v2649 = vpack.c.b16 %v1757, %v1753
    %v2650 = vpack.c.b16 %v1762, %v1758
    %v2651 = vpack.c.b16 %v1763, %v1759
    %v2652 = vpack.c.b16 %v1764, %v1760
    %v2653 = vpack.c.b16 %v1765, %v1761
    %v2654 = vpack.c.b16 %v1770, %v1766
    %v2655 = vpack.c.b16 %v1771, %v1767
    %v2656 = vpack.c.b16 %v1772, %v1768
    %v2657 = vpack.c.b16 %v1773, %v1769
    %v2658 = vpack.c.b16 %v1778, %v1774
    %v2659 = vpack.c.b16 %v1779, %v1775
    %v2660 = vpack.c.b16 %v1780, %v1776
    %v2661 = vpack.c.b16 %v1781, %v1777
    %v2662 = vpack.c.b16 %v1786, %v1782
    %v2663 = vpack.c.b16 %v1787, %v1783
    %v2664 = vpack.c.b16 %v1788, %v1784
    %v2665 = vpack.c.b16 %v1789, %v1785
    %v2666 = vpack.c.b16 %v1794, %v1790
    %v2667 = vpack.c.b16 %v1795, %v1791
    %v2668 = vpack.c.b16 %v1796, %v1792
    %v2669 = vpack.c.b16 %v1797, %v1793
    %v2670 = vpack.c.b16 %v1802, %v1798
    %v2671 = vpack.c.b16 %v1803, %v1799
    %v2672 = vpack.c.b16 %v1804, %v1800
    %v2673 = vpack.c.b16 %v1805, %v1801
    %v2674 = vpack.c.b16 %v1810, %v1806
    %v2675 = vpack.c.b16 %v1811, %v1807
    %v2676 = vpack.c.b16 %v1812, %v1808
    %v2677 = vpack.c.b16 %v1813, %v1809
    %v2678 = vpack.c.b16 %v1818, %v1814
    %v2679 = vpack.c.b16 %v1819, %v1815
    %v2680 = vpack.c.b16 %v1820, %v1816
    %v2681 = vpack.c.b16 %v1821, %v1817
    %v2682 = vpack.c.b16 %v1826, %v1822
    %v2683 = vpack.c.b16 %v1827, %v1823
    %v2684 = vpack.c.b16 %v1828, %v1824
    %v2685 = vpack.c.b16 %v1829, %v1825
    %v2686 = vpack.c.b16 %v1834, %v1830
    %v2687 = vpack.c.b16 %v1835, %v1831
    %v2688 = vpack.c.b16 %v1836, %v1832
    %v2689 = vpack.c.b16 %v1837, %v1833
    %v2690 = vpack.c.b16 %v1842, %v1838
    %v2691 = vpack.c.b16 %v1843, %v1839
    %v2692 = vpack.c.b16 %v1844, %v1840
    %v2693 = vpack.c.b16 %v1845, %v1841
    %v2694 = vpack.c.b16 %v1850, %v1846
    %v2695 = vpack.c.b16 %v1851, %v1847
    %v2696 = vpack.c.b16 %v1852, %v1848
    %v2697 = vpack.c.b16 %v1853, %v1849
    %v2698 = vpack.c.b16 %v1858, %v1854
    %v2699 = vpack.c.b16 %v1859, %v1855
    %v2700 = vpack.c.b16 %v1860, %v1856
    %v2701 = vpack.c.b16 %v1861, %v1857
    %v2702 = vpack.c.b16 %v1866, %v1862
    %v2703 = vpack.c.b16 %v1867, %v1863
    %v2704 = vpack.c.b16 %v1868, %v1864
    %v2705 = vpack.c.b16 %v1869, %v1865
    %v2706 = vpack.c.b16 %v1874, %v1870
    %v2707 = vpack.c.b16 %v1875, %v1871
    %v2708 = vpack.c.b16 %v1876, %v1872
    %v2709 = vpack.c.b16 %v1877, %v1873
    %v2710 = vpack.c.b16 %v1882, %v1878
    %v2711 = vpack.c.b16 %v1883, %v1879
    %v2712 = vpack.c.b16 %v1884, %v1880
    %v2713 = vpack.c.b16 %v1885, %v1881
    %v2714 = vpack.c.b16 %v1890, %v1886
    %v2715 = vpack.c.b16 %v1891, %v1887
    %v2716 = vpack.c.b16 %v1892, %v1888
    %v2717 = vpack.c.b16 %v1893, %v1889
    %v2718 = vpack.c.b16 %v1898, %v1894
    %v2719 = vpack.c.b16 %v1899, %v1895
    %v2720 = vpack.c.b16 %v1900, %v1896
    %v2721 = vpack.c.b16 %v1901, %v1897
    %v2722 = vpack.c.b16 %v1906, %v1902
    %v2723 = vpack.c.b16 %v1907, %v1903
    %v2724 = vpack.c.b16 %v1908, %v1904
    %v2725 = vpack.c.b16 %v1909, %v1905
    %v2726 = vpack.c.b16 %v1914, %v1910
    %v2727 = vpack.c.b16 %v1915, %v1911
    %v2728 = vpack.c.b16 %v1916, %v1912
    %v2729 = vpack.c.b16 %v1917, %v1913
    %v2730 = vpack.c.b16 %v1922, %v1918
    %v2731 = vpack.c.b16 %v1923, %v1919
    %v2732 = vpack.c.b16 %v1924, %v1920
    %v2733 = vpack.c.b16 %v1925, %v1921
    %v2734 = vpack.c.b16 %v1930, %v1926
    %v2735 = vpack.c.b16 %v1931, %v1927
    %v2736 = vpack.c.b16 %v1932, %v1928
    %v2737 = vpack.c.b16 %v1933, %v1929
    %v2738 = vpack.c.b16 %v1938, %v1934
    %v2739 = vpack.c.b16 %v1939, %v1935
    %v2740 = vpack.c.b16 %v1940, %v1936
    %v2741 = vpack.c.b16 %v1941, %v1937
    %v2742 = vpack.c.b16 %v1946, %v1942
    %v2743 = vpack.c.b16 %v1947, %v1943
    %v2744 = vpack.c.b16 %v1948, %v1944
    %v2745 = vpack.c.b16 %v1949, %v1945
    %v2746 = vpack.c.b16 %v1954, %v1950
    %v2747 = vpack.c.b16 %v1955, %v1951
    %v2748 = vpack.c.b16 %v1956, %v1952
    %v2749 = vpack.c.b16 %v1957, %v1953
    %v2750 = vpack.c.b16 %v1962, %v1958
    %v2751 = vpack.c.b16 %v1963, %v1959
    %v2752 = vpack.c.b16 %v1964, %v1960
    %v2753 = vpack.c.b16 %v1965, %v1961
    %v2754 = vpack.c.b16 %v1970, %v1966
    %v2755 = vpack.c.b16 %v1971, %v1967
    %v2756 = vpack.c.b16 %v1972, %v1968
    %v2757 = vpack.c.b16 %v1973, %v1969
    %v2758 = vpack.c.b16 %v1978, %v1974
    %v2759 = vpack.c.b16 %v1979, %v1975
    %v2760 = vpack.c.b16 %v1980, %v1976
    %v2761 = vpack.c.b16 %v1981, %v1977
    %v2762 = vpack.c.b16 %v1986, %v1982
    %v2763 = vpack.c.b16 %v1987, %v1983
    %v2764 = vpack.c.b16 %v1988, %v1984
    %v2765 = vpack.c.b16 %v1989, %v1985
    %v2766 = vpack.c.b16 %v1994, %v1990
    %v2767 = vpack.c.b16 %v1995, %v1991
    %v2768 = vpack.c.b16 %v1996, %v1992
    %v2769 = vpack.c.b16 %v1997, %v1993
    %v2770 = vpack.c.b16 %v2002, %v1998
    %v2771 = vpack.c.b16 %v2003, %v1999
    %v2772 = vpack.c.b16 %v2004, %v2000
    %v2773 = vpack.c.b16 %v2005, %v2001
    %v2774 = vpack.c.b16 %v2010, %v2006
    %v2775 = vpack.c.b16 %v2011, %v2007
    %v2776 = vpack.c.b16 %v2012, %v2008
    %v2777 = vpack.c.b16 %v2013, %v2009
    %v2778 = vpack.c.b16 %v2018, %v2014
    %v2779 = vpack.c.b16 %v2019, %v2015
    %v2780 = vpack.c.b16 %v2020, %v2016
    %v2781 = vpack.c.b16 %v2021, %v2017
    %v2782 = vpack.c.b16 %v2026, %v2022
    %v2783 = vpack.c.b16 %v2027, %v2023
    %v2784 = vpack.c.b16 %v2028, %v2024
    %v2785 = vpack.c.b16 %v2029, %v2025
    %v2786 = vpack.c.b16 %v2034, %v2030
    %v2787 = vpack.c.b16 %v2035, %v2031
    %v2788 = vpack.c.b16 %v2036, %v2032
    %v2789 = vpack.c.b16 %v2037, %v2033
    %v2790 = vpack.c.b16 %v2042, %v2038
    %v2791 = vpack.c.b16 %v2043, %v2039
    %v2792 = vpack.c.b16 %v2044, %v2040
    %v2793 = vpack.c.b16 %v2045, %v2041
    %v2794 = vpack.c.b16 %v2050, %v2046
    %v2795 = vpack.c.b16 %v2051, %v2047
    %v2796 = vpack.c.b16 %v2052, %v2048
    %v2797 = vpack.c.b16 %v2053, %v2049
    %v2798 = vpack.c.b16 %v2058, %v2054
    %v2799 = vpack.c.b16 %v2059, %v2055
    %v2800 = vpack.c.b16 %v2060, %v2056
    %v2801 = vpack.c.b16 %v2061, %v2057
    %v2802 = vpack.c.b16 %v2066, %v2062
    %v2803 = vpack.c.b16 %v2067, %v2063
    %v2804 = vpack.c.b16 %v2068, %v2064
    %v2805 = vpack.c.b16 %v2069, %v2065
    %v2806 = vpack.c.b16 %v2074, %v2070
    %v2807 = vpack.c.b16 %v2075, %v2071
    %v2808 = vpack.c.b16 %v2076, %v2072
    %v2809 = vpack.c.b16 %v2077, %v2073
    %v2810 = vpack.c.b16 %v2082, %v2078
    %v2811 = vpack.c.b16 %v2083, %v2079
    %v2812 = vpack.c.b16 %v2084, %v2080
    %v2813 = vpack.c.b16 %v2085, %v2081
    %v2814 = vpack.c.b16 %v2090, %v2086
    %v2815 = vpack.c.b16 %v2091, %v2087
    %v2816 = vpack.c.b16 %v2092, %v2088
    %v2817 = vpack.c.b16 %v2093, %v2089
    %v2818 = vpack.c.b16 %v2098, %v2094
    %v2819 = vpack.c.b16 %v2099, %v2095
    %v2820 = vpack.c.b16 %v2100, %v2096
    %v2821 = vpack.c.b16 %v2101, %v2097
    %v2822 = vpack.c.b16 %v2106, %v2102
    %v2823 = vpack.c.b16 %v2107, %v2103
    %v2824 = vpack.c.b16 %v2108, %v2104
    %v2825 = vpack.c.b16 %v2109, %v2105
    %v2826 = vpack.c.b16 %v2114, %v2110
    %v2827 = vpack.c.b16 %v2115, %v2111
    %v2828 = vpack.c.b16 %v2116, %v2112
    %v2829 = vpack.c.b16 %v2117, %v2113
    %v2830 = vpack.c.b16 %v2122, %v2118
    %v2831 = vpack.c.b16 %v2123, %v2119
    %v2832 = vpack.c.b16 %v2124, %v2120
    %v2833 = vpack.c.b16 %v2125, %v2121
    %v2834 = vpack.c.b16 %v2130, %v2126
    %v2835 = vpack.c.b16 %v2131, %v2127
    %v2836 = vpack.c.b16 %v2132, %v2128
    %v2837 = vpack.c.b16 %v2133, %v2129
    %v2838 = vpack.c.b16 %v2138, %v2134
    %v2839 = vpack.c.b16 %v2139, %v2135
    %v2840 = vpack.c.b16 %v2140, %v2136
    %v2841 = vpack.c.b16 %v2141, %v2137
    %v2842 = vpack.c.b16 %v2146, %v2142
    %v2843 = vpack.c.b16 %v2147, %v2143
    %v2844 = vpack.c.b16 %v2148, %v2144
    %v2845 = vpack.c.b16 %v2149, %v2145
    %v2846 = vpack.c.b16 %v2154, %v2150
    %v2847 = vpack.c.b16 %v2155, %v2151
    %v2848 = vpack.c.b16 %v2156, %v2152
    %v2849 = vpack.c.b16 %v2157, %v2153
    %v2850 = vpack.c.b16 %v2162, %v2158
    %v2851 = vpack.c.b16 %v2163, %v2159
    %v2852 = vpack.c.b16 %v2164, %v2160
    %v2853 = vpack.c.b16 %v2165, %v2161
    %v2854 = vpack.c.b16 %v2170, %v2166
    %v2855 = vpack.c.b16 %v2171, %v2167
    %v2856 = vpack.c.b16 %v2172, %v2168
    %v2857 = vpack.c.b16 %v2173, %v2169
    %v2858 = vpack.c.b16 %v2178, %v2174
    %v2859 = vpack.c.b16 %v2179, %v2175
    %v2860 = vpack.c.b16 %v2180, %v2176
    %v2861 = vpack.c.b16 %v2181, %v2177
    %v2862 = vpack.c.b16 %v2186, %v2182
    %v2863 = vpack.c.b16 %v2187, %v2183
    %v2864 = vpack.c.b16 %v2188, %v2184
    %v2865 = vpack.c.b16 %v2189, %v2185
    %v2866 = vpack.c.b16 %v2194, %v2190
    %v2867 = vpack.c.b16 %v2195, %v2191
    %v2868 = vpack.c.b16 %v2196, %v2192
    %v2869 = vpack.c.b16 %v2197, %v2193
    %v2870 = vpack.c.b16 %v2202, %v2198
    %v2871 = vpack.c.b16 %v2203, %v2199
    %v2872 = vpack.c.b16 %v2204, %v2200
    %v2873 = vpack.c.b16 %v2205, %v2201
    %v2874 = vpack.c.b16 %v2210, %v2206
    %v2875 = vpack.c.b16 %v2211, %v2207
    %v2876 = vpack.c.b16 %v2212, %v2208
    %v2877 = vpack.c.b16 %v2213, %v2209
    %v2878 = vpack.c.b16 %v2218, %v2214
    %v2879 = vpack.c.b16 %v2219, %v2215
    %v2880 = vpack.c.b16 %v2220, %v2216
    %v2881 = vpack.c.b16 %v2221, %v2217
    %v2882 = vpack.c.b16 %v2226, %v2222
    %v2883 = vpack.c.b16 %v2227, %v2223
    %v2884 = vpack.c.b16 %v2228, %v2224
    %v2885 = vpack.c.b16 %v2229, %v2225
    %v2886 = vpack.c.b16 %v2234, %v2230
    %v2887 = vpack.c.b16 %v2235, %v2231
    %v2888 = vpack.c.b16 %v2236, %v2232
    %v2889 = vpack.c.b16 %v2237, %v2233
    %v2890 = vpack.c.b16 %v2242, %v2238
    %v2891 = vpack.c.b16 %v2243, %v2239
    %v2892 = vpack.c.b16 %v2244, %v2240
    %v2893 = vpack.c.b16 %v2245, %v2241
    %v2894 = vpack.c.b16 %v2250, %v2246
    %v2895 = vpack.c.b16 %v2251, %v2247
    %v2896 = vpack.c.b16 %v2252, %v2248
    %v2897 = vpack.c.b16 %v2253, %v2249
    %v2898 = vpack.c.b16 %v2258, %v2254
    %v2899 = vpack.c.b16 %v2259, %v2255
    %v2900 = vpack.c.b16 %v2260, %v2256
    %v2901 = vpack.c.b16 %v2261, %v2257
    %v2902 = vpack.c.b16 %v2266, %v2262
    %v2903 = vpack.c.b16 %v2267, %v2263
    %v2904 = vpack.c.b16 %v2268, %v2264
    %v2905 = vpack.c.b16 %v2269, %v2265
    %v2906 = vpack.c.b16 %v2274, %v2270
    %v2907 = vpack.c.b16 %v2275, %v2271
    %v2908 = vpack.c.b16 %v2276, %v2272
    %v2909 = vpack.c.b16 %v2277, %v2273
    %v2910 = vpack.c.b16 %v2282, %v2278
    %v2911 = vpack.c.b16 %v2283, %v2279
    %v2912 = vpack.c.b16 %v2284, %v2280
    %v2913 = vpack.c.b16 %v2285, %v2281
    %v2914 = vpack.c.b16 %v2290, %v2286
    %v2915 = vpack.c.b16 %v2291, %v2287
    %v2916 = vpack.c.b16 %v2292, %v2288
    %v2917 = vpack.c.b16 %v2293, %v2289
    %v2918 = vpack.c.b16 %v2298, %v2294
    %v2919 = vpack.c.b16 %v2299, %v2295
    %v2920 = vpack.c.b16 %v2300, %v2296
    %v2921 = vpack.c.b16 %v2301, %v2297
    %v2922 = vpack.c.b16 %v2306, %v2302
    %v2923 = vpack.c.b16 %v2307, %v2303
    %v2924 = vpack.c.b16 %v2308, %v2304
    %v2925 = vpack.c.b16 %v2309, %v2305
    %v2926 = vpack.c.b16 %v2314, %v2310
    %v2927 = vpack.c.b16 %v2315, %v2311
    %v2928 = vpack.c.b16 %v2316, %v2312
    %v2929 = vpack.c.b16 %v2317, %v2313
    %v2930 = vpack.c.b16 %v2322, %v2318
    %v2931 = vpack.c.b16 %v2323, %v2319
    %v2932 = vpack.c.b16 %v2324, %v2320
    %v2933 = vpack.c.b16 %v2325, %v2321
    %v2934 = vpack.c.b16 %v2330, %v2326
    %v2935 = vpack.c.b16 %v2331, %v2327
    %v2936 = vpack.c.b16 %v2332, %v2328
    %v2937 = vpack.c.b16 %v2333, %v2329
    %v2938 = vpack.c.b16 %v2338, %v2334
    %v2939 = vpack.c.b16 %v2339, %v2335
    %v2940 = vpack.c.b16 %v2340, %v2336
    %v2941 = vpack.c.b16 %v2341, %v2337
    %v2942 = vpack.c.b16 %v2346, %v2342
    %v2943 = vpack.c.b16 %v2347, %v2343
    %v2944 = vpack.c.b16 %v2348, %v2344
    %v2945 = vpack.c.b16 %v2349, %v2345
    %v2946 = vpack.c.b16 %v2354, %v2350
    %v2947 = vpack.c.b16 %v2355, %v2351
    %v2948 = vpack.c.b16 %v2356, %v2352
    %v2949 = vpack.c.b16 %v2357, %v2353
    %v2950 = vpack.c.b16 %v2362, %v2358
    %v2951 = vpack.c.b16 %v2363, %v2359
    %v2952 = vpack.c.b16 %v2364, %v2360
    %v2953 = vpack.c.b16 %v2365, %v2361
    %v2954 = vpack.c.b16 %v2370, %v2366
    %v2955 = vpack.c.b16 %v2371, %v2367
    %v2956 = vpack.c.b16 %v2372, %v2368
    %v2957 = vpack.c.b16 %v2373, %v2369
    %v2958 = vpack.c.b16 %v2378, %v2374
    %v2959 = vpack.c.b16 %v2379, %v2375
    %v2960 = vpack.c.b16 %v2380, %v2376
    %v2961 = vpack.c.b16 %v2381, %v2377
    %v2962 = vpack.c.b16 %v2386, %v2382
    %v2963 = vpack.c.b16 %v2387, %v2383
    %v2964 = vpack.c.b16 %v2388, %v2384
    %v2965 = vpack.c.b16 %v2389, %v2385
    %3542 = vmatprep.subr.bf16.mxu0 %v2391
    %3543 = vmatpush1.bf16.msra.mxu0 %v2390
    %3544 = vmatprep.subr.bf16.mxu0 %v2395
    %3545 = vmatpush1.bf16.msra.mxu0 %v2394
    %3546 = vmatprep.subr.bf16.mxu0 %v2399
    %3547 = vmatpush1.bf16.msra.mxu0 %v2398
    %3548 = vmatprep.subr.bf16.mxu0 %v2403
    %3549 = vmatpush1.bf16.msra.mxu0 %v2402
    %3550 = vmatprep.subr.bf16.mxu0 %v2407
    %3551 = vmatpush1.bf16.msra.mxu0 %v2406
    %3552 = vmatprep.subr.bf16.mxu0 %v2411
    %3553 = vmatpush1.bf16.msra.mxu0 %v2410
    %3554 = vmatprep.subr.bf16.mxu0 %v2415
    %3555 = vmatpush1.bf16.msra.mxu0 %v2414
    %3556 = vmatprep.subr.bf16.mxu0 %v2419
    %3557 = vmatpush1.bf16.msra.mxu0 %v2418
    %3558 = vmatprep.subr.bf16.mxu0 %v2423
    %3559 = vmatpush1.bf16.msra.mxu0 %v2422
    %3560 = vmatprep.subr.bf16.mxu0 %v2427
    %3561 = vmatpush1.bf16.msra.mxu0 %v2426
    %3562 = vmatprep.subr.bf16.mxu0 %v2431
    %3563 = vmatpush1.bf16.msra.mxu0 %v2430
    %3564 = vmatprep.subr.bf16.mxu0 %v2435
    %3565 = vmatpush1.bf16.msra.mxu0 %v2434
    %3566 = vmatprep.subr.bf16.mxu0 %v2439
    %3567 = vmatpush1.bf16.msra.mxu0 %v2438
    %3568 = vmatprep.subr.bf16.mxu0 %v2443
    %3569 = vmatpush1.bf16.msra.mxu0 %v2442
    %3570 = vmatprep.subr.bf16.mxu0 %v2447
    %3571 = vmatpush1.bf16.msra.mxu0 %v2446
    %3572 = vmatprep.subr.bf16.mxu0 %v2451
    %3573 = vmatpush1.bf16.msra.mxu0 %v2450
    %3574 = vmatprep.mubr.bf16.mxu0 %v47
    %3575 = vmatmul.mubr.bf16.gmra.mrb[0].mxu0 %v46
    %v3576 = vpop.f32.mrb[0].mxu0
    %v3577 = vadd.f32 %v645, %v3576
    %v3578 = vpop.f32.mrb[0].mxu0
    %v3579 = vadd.f32 %v649, %v3578
    %v3580 = vpop.f32.mrb[0].mxu0
    %v3581 = vpop.f32.mrb[0].mxu0
    %3582 = vdwg.mxu0
    %3583 = vmatprep.subr.bf16.mxu0 %v2455
    %3584 = vmatpush1.bf16.msra.mxu0 %v2454
    %3585 = vmatprep.subr.bf16.mxu0 %v2459
    %3586 = vmatpush1.bf16.msra.mxu0 %v2458
    %3587 = vmatprep.subr.bf16.mxu0 %v2463
    %3588 = vmatpush1.bf16.msra.mxu0 %v2462
    %3589 = vmatprep.subr.bf16.mxu0 %v2467
    %3590 = vmatpush1.bf16.msra.mxu0 %v2466
    %3591 = vmatprep.subr.bf16.mxu0 %v2471
    %3592 = vmatpush1.bf16.msra.mxu0 %v2470
    %3593 = vmatprep.subr.bf16.mxu0 %v2475
    %3594 = vmatpush1.bf16.msra.mxu0 %v2474
    %3595 = vmatprep.subr.bf16.mxu0 %v2479
    %3596 = vmatpush1.bf16.msra.mxu0 %v2478
    %3597 = vmatprep.subr.bf16.mxu0 %v2483
    %3598 = vmatpush1.bf16.msra.mxu0 %v2482
    %3599 = vmatprep.subr.bf16.mxu0 %v2487
    %3600 = vmatpush1.bf16.msra.mxu0 %v2486
    %3601 = vmatprep.subr.bf16.mxu0 %v2491
    %3602 = vmatpush1.bf16.msra.mxu0 %v2490
    %3603 = vmatprep.subr.bf16.mxu0 %v2495
    %3604 = vmatpush1.bf16.msra.mxu0 %v2494
    %3605 = vmatprep.subr.bf16.mxu0 %v2499
    %3606 = vmatpush1.bf16.msra.mxu0 %v2498
    %3607 = vmatprep.subr.bf16.mxu0 %v2503
    %3608 = vmatpush1.bf16.msra.mxu0 %v2502
    %3609 = vmatprep.subr.bf16.mxu0 %v2507
    %3610 = vmatpush1.bf16.msra.mxu0 %v2506
    %3611 = vmatprep.subr.bf16.mxu0 %v2511
    %3612 = vmatpush1.bf16.msra.mxu0 %v2510
    %3613 = vmatprep.subr.bf16.mxu0 %v2515
    %3614 = vmatpush1.bf16.msra.mxu0 %v2514
    %3615 = vmatprep.mubr.bf16.mxu0 %v49
    %3616 = vmatmul.mubr.bf16.gmra.mrb[0].mxu0 %v48
    %v3617 = vpop.f32.mrb[0].mxu0
    %v3618 = vadd.f32 %v3577, %v3617
    %v3619 = vpop.f32.mrb[0].mxu0
    %v3620 = vadd.f32 %v3579, %v3619
    %v3621 = vpop.f32.mrb[0].mxu0
    %v3622 = vpop.f32.mrb[0].mxu0
    %3623 = vdwg.mxu0
    %3624 = vmatprep.subr.bf16.mxu0 %v2519
    %3625 = vmatpush1.bf16.msra.mxu0 %v2518
    %3626 = vmatprep.subr.bf16.mxu0 %v2523
    %3627 = vmatpush1.bf16.msra.mxu0 %v2522
    %3628 = vmatprep.subr.bf16.mxu0 %v2527
    %3629 = vmatpush1.bf16.msra.mxu0 %v2526
    %3630 = vmatprep.subr.bf16.mxu0 %v2531
    %3631 = vmatpush1.bf16.msra.mxu0 %v2530
    %3632 = vmatprep.subr.bf16.mxu0 %v2535
    %3633 = vmatpush1.bf16.msra.mxu0 %v2534
    %3634 = vmatprep.subr.bf16.mxu0 %v2539
    %3635 = vmatpush1.bf16.msra.mxu0 %v2538
    %3636 = vmatprep.subr.bf16.mxu0 %v2543
    %3637 = vmatpush1.bf16.msra.mxu0 %v2542
    %3638 = vmatprep.subr.bf16.mxu0 %v2547
    %3639 = vmatpush1.bf16.msra.mxu0 %v2546
    %3640 = vmatprep.subr.bf16.mxu0 %v2551
    %3641 = vmatpush1.bf16.msra.mxu0 %v2550
    %3642 = vmatprep.subr.bf16.mxu0 %v2555
    %3643 = vmatpush1.bf16.msra.mxu0 %v2554
    %3644 = vmatprep.subr.bf16.mxu0 %v2559
    %3645 = vmatpush1.bf16.msra.mxu0 %v2558
    %3646 = vmatprep.subr.bf16.mxu0 %v2563
    %3647 = vmatpush1.bf16.msra.mxu0 %v2562
    %3648 = vmatprep.subr.bf16.mxu0 %v2567
    %3649 = vmatpush1.bf16.msra.mxu0 %v2566
    %3650 = vmatprep.subr.bf16.mxu0 %v2571
    %3651 = vmatpush1.bf16.msra.mxu0 %v2570
    %3652 = vmatprep.subr.bf16.mxu0 %v2575
    %3653 = vmatpush1.bf16.msra.mxu0 %v2574
    %3654 = vmatprep.subr.bf16.mxu0 %v2579
    %3655 = vmatpush1.bf16.msra.mxu0 %v2578
    %3656 = vmatprep.mubr.bf16.mxu0 %v51
    %3657 = vmatmul.mubr.bf16.gmra.mrb[0].mxu0 %v50
    %v3658 = vpop.f32.mrb[0].mxu0
    %v3659 = vadd.f32 %v3618, %v3658
    %v3660 = vpop.f32.mrb[0].mxu0
    %v3661 = vadd.f32 %v3620, %v3660
    %v3662 = vpop.f32.mrb[0].mxu0
    %v3663 = vpop.f32.mrb[0].mxu0
    %3664 = vdwg.mxu0
    %3665 = vmatprep.subr.bf16.mxu0 %v2583
    %3666 = vmatpush1.bf16.msra.mxu0 %v2582
    %3667 = vmatprep.subr.bf16.mxu0 %v2587
    %3668 = vmatpush1.bf16.msra.mxu0 %v2586
    %3669 = vmatprep.subr.bf16.mxu0 %v2591
    %3670 = vmatpush1.bf16.msra.mxu0 %v2590
    %3671 = vmatprep.subr.bf16.mxu0 %v2595
    %3672 = vmatpush1.bf16.msra.mxu0 %v2594
    %3673 = vmatprep.subr.bf16.mxu0 %v2599
    %3674 = vmatpush1.bf16.msra.mxu0 %v2598
    %3675 = vmatprep.subr.bf16.mxu0 %v2603
    %3676 = vmatpush1.bf16.msra.mxu0 %v2602
    %3677 = vmatprep.subr.bf16.mxu0 %v2607
    %3678 = vmatpush1.bf16.msra.mxu0 %v2606
    %3679 = vmatprep.subr.bf16.mxu0 %v2611
    %3680 = vmatpush1.bf16.msra.mxu0 %v2610
    %3681 = vmatprep.subr.bf16.mxu0 %v2615
    %3682 = vmatpush1.bf16.msra.mxu0 %v2614
    %3683 = vmatprep.subr.bf16.mxu0 %v2619
    %3684 = vmatpush1.bf16.msra.mxu0 %v2618
    %3685 = vmatprep.subr.bf16.mxu0 %v2623
    %3686 = vmatpush1.bf16.msra.mxu0 %v2622
    %3687 = vmatprep.subr.bf16.mxu0 %v2627
    %3688 = vmatpush1.bf16.msra.mxu0 %v2626
    %3689 = vmatprep.subr.bf16.mxu0 %v2631
    %3690 = vmatpush1.bf16.msra.mxu0 %v2630
    %3691 = vmatprep.subr.bf16.mxu0 %v2635
    %3692 = vmatpush1.bf16.msra.mxu0 %v2634
    %3693 = vmatprep.subr.bf16.mxu0 %v2639
    %3694 = vmatpush1.bf16.msra.mxu0 %v2638
    %3695 = vmatprep.subr.bf16.mxu0 %v2643
    %3696 = vmatpush1.bf16.msra.mxu0 %v2642
    %3697 = vmatprep.mubr.bf16.mxu0 %v53
    %3698 = vmatmul.mubr.bf16.gmra.mrb[0].mxu0 %v52
    %v3699 = vpop.f32.mrb[0].mxu0
    %v3700 = vadd.f32 %v3659, %v3699
    %v3701 = vpop.f32.mrb[0].mxu0
    %v3702 = vadd.f32 %v3661, %v3701
    %v3703 = vpop.f32.mrb[0].mxu0
    %v3704 = vpop.f32.mrb[0].mxu0
    %3705 = vdwg.mxu0
    %3706 = vmatprep.subr.bf16.mxu0 %v2647
    %3707 = vmatpush1.bf16.msra.mxu0 %v2646
    %3708 = vmatprep.subr.bf16.mxu0 %v2651
    %3709 = vmatpush1.bf16.msra.mxu0 %v2650
    %3710 = vmatprep.subr.bf16.mxu0 %v2655
    %3711 = vmatpush1.bf16.msra.mxu0 %v2654
    %3712 = vmatprep.subr.bf16.mxu0 %v2659
    %3713 = vmatpush1.bf16.msra.mxu0 %v2658
    %3714 = vmatprep.subr.bf16.mxu0 %v2663
    %3715 = vmatpush1.bf16.msra.mxu0 %v2662
    %3716 = vmatprep.subr.bf16.mxu0 %v2667
    %3717 = vmatpush1.bf16.msra.mxu0 %v2666
    %3718 = vmatprep.subr.bf16.mxu0 %v2671
    %3719 = vmatpush1.bf16.msra.mxu0 %v2670
    %3720 = vmatprep.subr.bf16.mxu0 %v2675
    %3721 = vmatpush1.bf16.msra.mxu0 %v2674
    %3722 = vmatprep.subr.bf16.mxu0 %v2679
    %3723 = vmatpush1.bf16.msra.mxu0 %v2678
    %3724 = vmatprep.subr.bf16.mxu0 %v2683
    %3725 = vmatpush1.bf16.msra.mxu0 %v2682
    %3726 = vmatprep.subr.bf16.mxu0 %v2687
    %3727 = vmatpush1.bf16.msra.mxu0 %v2686
    %3728 = vmatprep.subr.bf16.mxu0 %v2691
    %3729 = vmatpush1.bf16.msra.mxu0 %v2690
    %3730 = vmatprep.subr.bf16.mxu0 %v2695
    %3731 = vmatpush1.bf16.msra.mxu0 %v2694
    %3732 = vmatprep.subr.bf16.mxu0 %v2699
    %3733 = vmatpush1.bf16.msra.mxu0 %v2698
    %3734 = vmatprep.subr.bf16.mxu0 %v2703
    %3735 = vmatpush1.bf16.msra.mxu0 %v2702
    %3736 = vmatprep.subr.bf16.mxu0 %v2707
    %3737 = vmatpush1.bf16.msra.mxu0 %v2706
    %3738 = vmatprep.mubr.bf16.mxu0 %v55
    %3739 = vmatmul.mubr.bf16.gmra.mrb[0].mxu0 %v54
    %v3740 = vpop.f32.mrb[0].mxu0
    %v3741 = vadd.f32 %v3700, %v3740
    %v3742 = vpop.f32.mrb[0].mxu0
    %v3743 = vadd.f32 %v3702, %v3742
    %v3744 = vpop.f32.mrb[0].mxu0
    %v3745 = vpop.f32.mrb[0].mxu0
    %3746 = vdwg.mxu0
    %3747 = vmatprep.subr.bf16.mxu0 %v2711
    %3748 = vmatpush1.bf16.msra.mxu0 %v2710
    %3749 = vmatprep.subr.bf16.mxu0 %v2715
    %3750 = vmatpush1.bf16.msra.mxu0 %v2714
    %3751 = vmatprep.subr.bf16.mxu0 %v2719
    %3752 = vmatpush1.bf16.msra.mxu0 %v2718
    %3753 = vmatprep.subr.bf16.mxu0 %v2723
    %3754 = vmatpush1.bf16.msra.mxu0 %v2722
    %3755 = vmatprep.subr.bf16.mxu0 %v2727
    %3756 = vmatpush1.bf16.msra.mxu0 %v2726
    %3757 = vmatprep.subr.bf16.mxu0 %v2731
    %3758 = vmatpush1.bf16.msra.mxu0 %v2730
    %3759 = vmatprep.subr.bf16.mxu0 %v2735
    %3760 = vmatpush1.bf16.msra.mxu0 %v2734
    %3761 = vmatprep.subr.bf16.mxu0 %v2739
    %3762 = vmatpush1.bf16.msra.mxu0 %v2738
    %3763 = vmatprep.subr.bf16.mxu0 %v2743
    %3764 = vmatpush1.bf16.msra.mxu0 %v2742
    %3765 = vmatprep.subr.bf16.mxu0 %v2747
    %3766 = vmatpush1.bf16.msra.mxu0 %v2746
    %3767 = vmatprep.subr.bf16.mxu0 %v2751
    %3768 = vmatpush1.bf16.msra.mxu0 %v2750
    %3769 = vmatprep.subr.bf16.mxu0 %v2755
    %3770 = vmatpush1.bf16.msra.mxu0 %v2754
    %3771 = vmatprep.subr.bf16.mxu0 %v2759
    %3772 = vmatpush1.bf16.msra.mxu0 %v2758
    %3773 = vmatprep.subr.bf16.mxu0 %v2763
    %3774 = vmatpush1.bf16.msra.mxu0 %v2762
    %3775 = vmatprep.subr.bf16.mxu0 %v2767
    %3776 = vmatpush1.bf16.msra.mxu0 %v2766
    %3777 = vmatprep.subr.bf16.mxu0 %v2771
    %3778 = vmatpush1.bf16.msra.mxu0 %v2770
    %3779 = vmatprep.mubr.bf16.mxu0 %v57
    %3780 = vmatmul.mubr.bf16.gmra.mrb[0].mxu0 %v56
    %v3781 = vpop.f32.mrb[0].mxu0
    %v3782 = vadd.f32 %v3741, %v3781
    %v3783 = vpop.f32.mrb[0].mxu0
    %v3784 = vadd.f32 %v3743, %v3783
    %v3785 = vpop.f32.mrb[0].mxu0
    %v3786 = vpop.f32.mrb[0].mxu0
    %3787 = vdwg.mxu0
    %3788 = vmatprep.subr.bf16.mxu0 %v2775
    %3789 = vmatpush1.bf16.msra.mxu0 %v2774
    %3790 = vmatprep.subr.bf16.mxu0 %v2779
    %3791 = vmatpush1.bf16.msra.mxu0 %v2778
    %3792 = vmatprep.subr.bf16.mxu0 %v2783
    %3793 = vmatpush1.bf16.msra.mxu0 %v2782
    %3794 = vmatprep.subr.bf16.mxu0 %v2787
    %3795 = vmatpush1.bf16.msra.mxu0 %v2786
    %3796 = vmatprep.subr.bf16.mxu0 %v2791
    %3797 = vmatpush1.bf16.msra.mxu0 %v2790
    %3798 = vmatprep.subr.bf16.mxu0 %v2795
    %3799 = vmatpush1.bf16.msra.mxu0 %v2794
    %3800 = vmatprep.subr.bf16.mxu0 %v2799
    %3801 = vmatpush1.bf16.msra.mxu0 %v2798
    %3802 = vmatprep.subr.bf16.mxu0 %v2803
    %3803 = vmatpush1.bf16.msra.mxu0 %v2802
    %3804 = vmatprep.subr.bf16.mxu0 %v2807
    %3805 = vmatpush1.bf16.msra.mxu0 %v2806
    %3806 = vmatprep.subr.bf16.mxu0 %v2811
    %3807 = vmatpush1.bf16.msra.mxu0 %v2810
    %3808 = vmatprep.subr.bf16.mxu0 %v2815
    %3809 = vmatpush1.bf16.msra.mxu0 %v2814
    %3810 = vmatprep.subr.bf16.mxu0 %v2819
    %3811 = vmatpush1.bf16.msra.mxu0 %v2818
    %3812 = vmatprep.subr.bf16.mxu0 %v2823
    %3813 = vmatpush1.bf16.msra.mxu0 %v2822
    %3814 = vmatprep.subr.bf16.mxu0 %v2827
    %3815 = vmatpush1.bf16.msra.mxu0 %v2826
    %3816 = vmatprep.subr.bf16.mxu0 %v2831
    %3817 = vmatpush1.bf16.msra.mxu0 %v2830
    %3818 = vmatprep.subr.bf16.mxu0 %v2835
    %3819 = vmatpush1.bf16.msra.mxu0 %v2834
    %3820 = vmatprep.mubr.bf16.mxu0 %v59
    %3821 = vmatmul.mubr.bf16.gmra.mrb[0].mxu0 %v58
    %v3822 = vpop.f32.mrb[0].mxu0
    %v3823 = vadd.f32 %v3782, %v3822
    %v3824 = vpop.f32.mrb[0].mxu0
    %v3825 = vadd.f32 %v3784, %v3824
    %v3826 = vpop.f32.mrb[0].mxu0
    %v3827 = vpop.f32.mrb[0].mxu0
    %3828 = vdwg.mxu0
    %3829 = vmatprep.subr.bf16.mxu0 %v2839
    %3830 = vmatpush1.bf16.msra.mxu0 %v2838
    %3831 = vmatprep.subr.bf16.mxu0 %v2843
    %3832 = vmatpush1.bf16.msra.mxu0 %v2842
    %3833 = vmatprep.subr.bf16.mxu0 %v2847
    %3834 = vmatpush1.bf16.msra.mxu0 %v2846
    %3835 = vmatprep.subr.bf16.mxu0 %v2851
    %3836 = vmatpush1.bf16.msra.mxu0 %v2850
    %3837 = vmatprep.subr.bf16.mxu0 %v2855
    %3838 = vmatpush1.bf16.msra.mxu0 %v2854
    %3839 = vmatprep.subr.bf16.mxu0 %v2859
    %3840 = vmatpush1.bf16.msra.mxu0 %v2858
    %3841 = vmatprep.subr.bf16.mxu0 %v2863
    %3842 = vmatpush1.bf16.msra.mxu0 %v2862
    %3843 = vmatprep.subr.bf16.mxu0 %v2867
    %3844 = vmatpush1.bf16.msra.mxu0 %v2866
    %3845 = vmatprep.subr.bf16.mxu0 %v2871
    %3846 = vmatpush1.bf16.msra.mxu0 %v2870
    %3847 = vmatprep.subr.bf16.mxu0 %v2875
    %3848 = vmatpush1.bf16.msra.mxu0 %v2874
    %3849 = vmatprep.subr.bf16.mxu0 %v2879
    %3850 = vmatpush1.bf16.msra.mxu0 %v2878
    %3851 = vmatprep.subr.bf16.mxu0 %v2883
    %3852 = vmatpush1.bf16.msra.mxu0 %v2882
    %3853 = vmatprep.subr.bf16.mxu0 %v2887
    %3854 = vmatpush1.bf16.msra.mxu0 %v2886
    %3855 = vmatprep.subr.bf16.mxu0 %v2891
    %3856 = vmatpush1.bf16.msra.mxu0 %v2890
    %3857 = vmatprep.subr.bf16.mxu0 %v2895
    %3858 = vmatpush1.bf16.msra.mxu0 %v2894
    %3859 = vmatprep.subr.bf16.mxu0 %v2899
    %3860 = vmatpush1.bf16.msra.mxu0 %v2898
    %3861 = vmatprep.mubr.bf16.mxu0 %v61
    %3862 = vmatmul.mubr.bf16.gmra.mrb[0].mxu0 %v60
    %v3863 = vpop.f32.mrb[0].mxu0
    %v3864 = vadd.f32 %v3823, %v3863
    %v3865 = vpop.f32.mrb[0].mxu0
    %v3866 = vadd.f32 %v3825, %v3865
    %v3867 = vpop.f32.mrb[0].mxu0
    %v3868 = vpop.f32.mrb[0].mxu0
    %3869 = vdwg.mxu0
    %3870 = vmatprep.subr.bf16.mxu0 %v2903
    %3871 = vmatpush1.bf16.msra.mxu0 %v2902
    %3872 = vmatprep.subr.bf16.mxu0 %v2907
    %3873 = vmatpush1.bf16.msra.mxu0 %v2906
    %3874 = vmatprep.subr.bf16.mxu0 %v2911
    %3875 = vmatpush1.bf16.msra.mxu0 %v2910
    %3876 = vmatprep.subr.bf16.mxu0 %v2915
    %3877 = vmatpush1.bf16.msra.mxu0 %v2914
    %3878 = vmatprep.subr.bf16.mxu0 %v2919
    %3879 = vmatpush1.bf16.msra.mxu0 %v2918
    %3880 = vmatprep.subr.bf16.mxu0 %v2923
    %3881 = vmatpush1.bf16.msra.mxu0 %v2922
    %3882 = vmatprep.subr.bf16.mxu0 %v2927
    %3883 = vmatpush1.bf16.msra.mxu0 %v2926
    %3884 = vmatprep.subr.bf16.mxu0 %v2931
    %3885 = vmatpush1.bf16.msra.mxu0 %v2930
    %3886 = vmatprep.subr.bf16.mxu0 %v2935
    %3887 = vmatpush1.bf16.msra.mxu0 %v2934
    %3888 = vmatprep.subr.bf16.mxu0 %v2939
    %3889 = vmatpush1.bf16.msra.mxu0 %v2938
    %3890 = vmatprep.subr.bf16.mxu0 %v2943
    %3891 = vmatpush1.bf16.msra.mxu0 %v2942
    %3892 = vmatprep.subr.bf16.mxu0 %v2947
    %3893 = vmatpush1.bf16.msra.mxu0 %v2946
    %3894 = vmatprep.subr.bf16.mxu0 %v2951
    %3895 = vmatpush1.bf16.msra.mxu0 %v2950
    %3896 = vmatprep.subr.bf16.mxu0 %v2955
    %3897 = vmatpush1.bf16.msra.mxu0 %v2954
    %3898 = vmatprep.subr.bf16.mxu0 %v2959
    %3899 = vmatpush1.bf16.msra.mxu0 %v2958
    %3900 = vmatprep.subr.bf16.mxu0 %v2963
    %3901 = vmatpush1.bf16.msra.mxu0 %v2962
    %3902 = vmatprep.mubr.bf16.mxu0 %v63
    %3903 = vmatmul.mubr.bf16.gmra.mrb[0].mxu0 %v62
    %v3904 = vpop.f32.mrb[0].mxu0
    %v3905 = vadd.f32 %v3864, %v3904
    %v3906 = vpop.f32.mrb[0].mxu0
    %v3907 = vadd.f32 %v3866, %v3906
    %v3908 = vpop.f32.mrb[0].mxu0
    %v3909 = vpop.f32.mrb[0].mxu0
    %3910 = vdwg.mxu0
    %3911 = vmatprep.subr.bf16.mxu0 %v2393
    %3912 = vmatpush1.bf16.msra.mxu0 %v2392
    %3913 = vmatprep.subr.bf16.mxu0 %v2397
    %3914 = vmatpush1.bf16.msra.mxu0 %v2396
    %3915 = vmatprep.subr.bf16.mxu0 %v2401
    %3916 = vmatpush1.bf16.msra.mxu0 %v2400
    %3917 = vmatprep.subr.bf16.mxu0 %v2405
    %3918 = vmatpush1.bf16.msra.mxu0 %v2404
    %3919 = vmatprep.subr.bf16.mxu0 %v2409
    %3920 = vmatpush1.bf16.msra.mxu0 %v2408
    %3921 = vmatprep.subr.bf16.mxu0 %v2413
    %3922 = vmatpush1.bf16.msra.mxu0 %v2412
    %3923 = vmatprep.subr.bf16.mxu0 %v2417
    %3924 = vmatpush1.bf16.msra.mxu0 %v2416
    %3925 = vmatprep.subr.bf16.mxu0 %v2421
    %3926 = vmatpush1.bf16.msra.mxu0 %v2420
    %3927 = vmatprep.subr.bf16.mxu0 %v2425
    %3928 = vmatpush1.bf16.msra.mxu0 %v2424
    %3929 = vmatprep.subr.bf16.mxu0 %v2429
    %3930 = vmatpush1.bf16.msra.mxu0 %v2428
    %3931 = vmatprep.subr.bf16.mxu0 %v2433
    %3932 = vmatpush1.bf16.msra.mxu0 %v2432
    %3933 = vmatprep.subr.bf16.mxu0 %v2437
    %3934 = vmatpush1.bf16.msra.mxu0 %v2436
    %3935 = vmatprep.subr.bf16.mxu0 %v2441
    %3936 = vmatpush1.bf16.msra.mxu0 %v2440
    %3937 = vmatprep.subr.bf16.mxu0 %v2445
    %3938 = vmatpush1.bf16.msra.mxu0 %v2444
    %3939 = vmatprep.subr.bf16.mxu0 %v2449
    %3940 = vmatpush1.bf16.msra.mxu0 %v2448
    %3941 = vmatprep.subr.bf16.mxu0 %v2453
    %3942 = vmatpush1.bf16.msra.mxu0 %v2452
    %3943 = vmatprep.mubr.bf16.mxu0 %v47
    %3944 = vmatmul.mubr.bf16.gmra.mrb[0].mxu0 %v46
    %v3945 = vpop.f32.mrb[0].mxu0
    %v3946 = vadd.f32 %v653, %v3945
    %v3947 = vpop.f32.mrb[0].mxu0
    %v3948 = vadd.f32 %v657, %v3947
    %v3949 = vpop.f32.mrb[0].mxu0
    %v3950 = vpop.f32.mrb[0].mxu0
    %3951 = vdwg.mxu0
    %3952 = vmatprep.subr.bf16.mxu0 %v2457
    %3953 = vmatpush1.bf16.msra.mxu0 %v2456
    %3954 = vmatprep.subr.bf16.mxu0 %v2461
    %3955 = vmatpush1.bf16.msra.mxu0 %v2460
    %3956 = vmatprep.subr.bf16.mxu0 %v2465
    %3957 = vmatpush1.bf16.msra.mxu0 %v2464
    %3958 = vmatprep.subr.bf16.mxu0 %v2469
    %3959 = vmatpush1.bf16.msra.mxu0 %v2468
    %3960 = vmatprep.subr.bf16.mxu0 %v2473
    %3961 = vmatpush1.bf16.msra.mxu0 %v2472
    %3962 = vmatprep.subr.bf16.mxu0 %v2477
    %3963 = vmatpush1.bf16.msra.mxu0 %v2476
    %3964 = vmatprep.subr.bf16.mxu0 %v2481
    %3965 = vmatpush1.bf16.msra.mxu0 %v2480
    %3966 = vmatprep.subr.bf16.mxu0 %v2485
    %3967 = vmatpush1.bf16.msra.mxu0 %v2484
    %3968 = vmatprep.subr.bf16.mxu0 %v2489
    %3969 = vmatpush1.bf16.msra.mxu0 %v2488
    %3970 = vmatprep.subr.bf16.mxu0 %v2493
    %3971 = vmatpush1.bf16.msra.mxu0 %v2492
    %3972 = vmatprep.subr.bf16.mxu0 %v2497
    %3973 = vmatpush1.bf16.msra.mxu0 %v2496
    %3974 = vmatprep.subr.bf16.mxu0 %v2501
    %3975 = vmatpush1.bf16.msra.mxu0 %v2500
    %3976 = vmatprep.subr.bf16.mxu0 %v2505
    %3977 = vmatpush1.bf16.msra.mxu0 %v2504
    %3978 = vmatprep.subr.bf16.mxu0 %v2509
    %3979 = vmatpush1.bf16.msra.mxu0 %v2508
    %3980 = vmatprep.subr.bf16.mxu0 %v2513
    %3981 = vmatpush1.bf16.msra.mxu0 %v2512
    %3982 = vmatprep.subr.bf16.mxu0 %v2517
    %3983 = vmatpush1.bf16.msra.mxu0 %v2516
    %3984 = vmatprep.mubr.bf16.mxu0 %v49
    %3985 = vmatmul.mubr.bf16.gmra.mrb[0].mxu0 %v48
    %v3986 = vpop.f32.mrb[0].mxu0
    %v3987 = vadd.f32 %v3946, %v3986
    %v3988 = vpop.f32.mrb[0].mxu0
    %v3989 = vadd.f32 %v3948, %v3988
    %v3990 = vpop.f32.mrb[0].mxu0
    %v3991 = vpop.f32.mrb[0].mxu0
    %3992 = vdwg.mxu0
    %3993 = vmatprep.subr.bf16.mxu0 %v2521
    %3994 = vmatpush1.bf16.msra.mxu0 %v2520
    %3995 = vmatprep.subr.bf16.mxu0 %v2525
    %3996 = vmatpush1.bf16.msra.mxu0 %v2524
    %3997 = vmatprep.subr.bf16.mxu0 %v2529
    %3998 = vmatpush1.bf16.msra.mxu0 %v2528
    %3999 = vmatprep.subr.bf16.mxu0 %v2533
    %4000 = vmatpush1.bf16.msra.mxu0 %v2532
    %4001 = vmatprep.subr.bf16.mxu0 %v2537
    %4002 = vmatpush1.bf16.msra.mxu0 %v2536
    %4003 = vmatprep.subr.bf16.mxu0 %v2541
    %4004 = vmatpush1.bf16.msra.mxu0 %v2540
    %4005 = vmatprep.subr.bf16.mxu0 %v2545
    %4006 = vmatpush1.bf16.msra.mxu0 %v2544
    %4007 = vmatprep.subr.bf16.mxu0 %v2549
    %4008 = vmatpush1.bf16.msra.mxu0 %v2548
    %4009 = vmatprep.subr.bf16.mxu0 %v2553
    %4010 = vmatpush1.bf16.msra.mxu0 %v2552
    %4011 = vmatprep.subr.bf16.mxu0 %v2557
    %4012 = vmatpush1.bf16.msra.mxu0 %v2556
    %4013 = vmatprep.subr.bf16.mxu0 %v2561
    %4014 = vmatpush1.bf16.msra.mxu0 %v2560
    %4015 = vmatprep.subr.bf16.mxu0 %v2565
    %4016 = vmatpush1.bf16.msra.mxu0 %v2564
    %4017 = vmatprep.subr.bf16.mxu0 %v2569
    %4018 = vmatpush1.bf16.msra.mxu0 %v2568
    %4019 = vmatprep.subr.bf16.mxu0 %v2573
    %4020 = vmatpush1.bf16.msra.mxu0 %v2572
    %4021 = vmatprep.subr.bf16.mxu0 %v2577
    %4022 = vmatpush1.bf16.msra.mxu0 %v2576
    %4023 = vmatprep.subr.bf16.mxu0 %v2581
    %4024 = vmatpush1.bf16.msra.mxu0 %v2580
    %4025 = vmatprep.mubr.bf16.mxu0 %v51
    %4026 = vmatmul.mubr.bf16.gmra.mrb[0].mxu0 %v50
    %v4027 = vpop.f32.mrb[0].mxu0
    %v4028 = vadd.f32 %v3987, %v4027
    %v4029 = vpop.f32.mrb[0].mxu0
    %v4030 = vadd.f32 %v3989, %v4029
    %v4031 = vpop.f32.mrb[0].mxu0
    %v4032 = vpop.f32.mrb[0].mxu0
    %4033 = vdwg.mxu0
    %4034 = vmatprep.subr.bf16.mxu0 %v2585
    %4035 = vmatpush1.bf16.msra.mxu0 %v2584
    %4036 = vmatprep.subr.bf16.mxu0 %v2589
    %4037 = vmatpush1.bf16.msra.mxu0 %v2588
    %4038 = vmatprep.subr.bf16.mxu0 %v2593
    %4039 = vmatpush1.bf16.msra.mxu0 %v2592
    %4040 = vmatprep.subr.bf16.mxu0 %v2597
    %4041 = vmatpush1.bf16.msra.mxu0 %v2596
    %4042 = vmatprep.subr.bf16.mxu0 %v2601
    %4043 = vmatpush1.bf16.msra.mxu0 %v2600
    %4044 = vmatprep.subr.bf16.mxu0 %v2605
    %4045 = vmatpush1.bf16.msra.mxu0 %v2604
    %4046 = vmatprep.subr.bf16.mxu0 %v2609
    %4047 = vmatpush1.bf16.msra.mxu0 %v2608
    %4048 = vmatprep.subr.bf16.mxu0 %v2613
    %4049 = vmatpush1.bf16.msra.mxu0 %v2612
    %4050 = vmatprep.subr.bf16.mxu0 %v2617
    %4051 = vmatpush1.bf16.msra.mxu0 %v2616
    %4052 = vmatprep.subr.bf16.mxu0 %v2621
    %4053 = vmatpush1.bf16.msra.mxu0 %v2620
    %4054 = vmatprep.subr.bf16.mxu0 %v2625
    %4055 = vmatpush1.bf16.msra.mxu0 %v2624
    %4056 = vmatprep.subr.bf16.mxu0 %v2629
    %4057 = vmatpush1.bf16.msra.mxu0 %v2628
    %4058 = vmatprep.subr.bf16.mxu0 %v2633
    %4059 = vmatpush1.bf16.msra.mxu0 %v2632
    %4060 = vmatprep.subr.bf16.mxu0 %v2637
    %4061 = vmatpush1.bf16.msra.mxu0 %v2636
    %4062 = vmatprep.subr.bf16.mxu0 %v2641
    %4063 = vmatpush1.bf16.msra.mxu0 %v2640
    %4064 = vmatprep.subr.bf16.mxu0 %v2645
    %4065 = vmatpush1.bf16.msra.mxu0 %v2644
    %4066 = vmatprep.mubr.bf16.mxu0 %v53
    %4067 = vmatmul.mubr.bf16.gmra.mrb[0].mxu0 %v52
    %v4068 = vpop.f32.mrb[0].mxu0
    %v4069 = vadd.f32 %v4028, %v4068
    %v4070 = vpop.f32.mrb[0].mxu0
    %v4071 = vadd.f32 %v4030, %v4070
    %v4072 = vpop.f32.mrb[0].mxu0
    %v4073 = vpop.f32.mrb[0].mxu0
    %4074 = vdwg.mxu0
    %4075 = vmatprep.subr.bf16.mxu0 %v2649
    %4076 = vmatpush1.bf16.msra.mxu0 %v2648
    %4077 = vmatprep.subr.bf16.mxu0 %v2653
    %4078 = vmatpush1.bf16.msra.mxu0 %v2652
    %4079 = vmatprep.subr.bf16.mxu0 %v2657
    %4080 = vmatpush1.bf16.msra.mxu0 %v2656
    %4081 = vmatprep.subr.bf16.mxu0 %v2661
    %4082 = vmatpush1.bf16.msra.mxu0 %v2660
    %4083 = vmatprep.subr.bf16.mxu0 %v2665
    %4084 = vmatpush1.bf16.msra.mxu0 %v2664
    %4085 = vmatprep.subr.bf16.mxu0 %v2669
    %4086 = vmatpush1.bf16.msra.mxu0 %v2668
    %4087 = vmatprep.subr.bf16.mxu0 %v2673
    %4088 = vmatpush1.bf16.msra.mxu0 %v2672
    %4089 = vmatprep.subr.bf16.mxu0 %v2677
    %4090 = vmatpush1.bf16.msra.mxu0 %v2676
    %4091 = vmatprep.subr.bf16.mxu0 %v2681
    %4092 = vmatpush1.bf16.msra.mxu0 %v2680
    %4093 = vmatprep.subr.bf16.mxu0 %v2685
    %4094 = vmatpush1.bf16.msra.mxu0 %v2684
    %4095 = vmatprep.subr.bf16.mxu0 %v2689
    %4096 = vmatpush1.bf16.msra.mxu0 %v2688
    %4097 = vmatprep.subr.bf16.mxu0 %v2693
    %4098 = vmatpush1.bf16.msra.mxu0 %v2692
    %4099 = vmatprep.subr.bf16.mxu0 %v2697
    %4100 = vmatpush1.bf16.msra.mxu0 %v2696
    %4101 = vmatprep.subr.bf16.mxu0 %v2701
    %4102 = vmatpush1.bf16.msra.mxu0 %v2700
    %4103 = vmatprep.subr.bf16.mxu0 %v2705
    %4104 = vmatpush1.bf16.msra.mxu0 %v2704
    %4105 = vmatprep.subr.bf16.mxu0 %v2709
    %4106 = vmatpush1.bf16.msra.mxu0 %v2708
    %4107 = vmatprep.mubr.bf16.mxu0 %v55
    %4108 = vmatmul.mubr.bf16.gmra.mrb[0].mxu0 %v54
    %v4109 = vpop.f32.mrb[0].mxu0
    %v4110 = vadd.f32 %v4069, %v4109
    %v4111 = vpop.f32.mrb[0].mxu0
    %v4112 = vadd.f32 %v4071, %v4111
    %v4113 = vpop.f32.mrb[0].mxu0
    %v4114 = vpop.f32.mrb[0].mxu0
    %4115 = vdwg.mxu0
    %4116 = vmatprep.subr.bf16.mxu0 %v2713
    %4117 = vmatpush1.bf16.msra.mxu0 %v2712
    %4118 = vmatprep.subr.bf16.mxu0 %v2717
    %4119 = vmatpush1.bf16.msra.mxu0 %v2716
    %4120 = vmatprep.subr.bf16.mxu0 %v2721
    %4121 = vmatpush1.bf16.msra.mxu0 %v2720
    %4122 = vmatprep.subr.bf16.mxu0 %v2725
    %4123 = vmatpush1.bf16.msra.mxu0 %v2724
    %4124 = vmatprep.subr.bf16.mxu0 %v2729
    %4125 = vmatpush1.bf16.msra.mxu0 %v2728
    %4126 = vmatprep.subr.bf16.mxu0 %v2733
    %4127 = vmatpush1.bf16.msra.mxu0 %v2732
    %4128 = vmatprep.subr.bf16.mxu0 %v2737
    %4129 = vmatpush1.bf16.msra.mxu0 %v2736
    %4130 = vmatprep.subr.bf16.mxu0 %v2741
    %4131 = vmatpush1.bf16.msra.mxu0 %v2740
    %4132 = vmatprep.subr.bf16.mxu0 %v2745
    %4133 = vmatpush1.bf16.msra.mxu0 %v2744
    %4134 = vmatprep.subr.bf16.mxu0 %v2749
    %4135 = vmatpush1.bf16.msra.mxu0 %v2748
    %4136 = vmatprep.subr.bf16.mxu0 %v2753
    %4137 = vmatpush1.bf16.msra.mxu0 %v2752
    %4138 = vmatprep.subr.bf16.mxu0 %v2757
    %4139 = vmatpush1.bf16.msra.mxu0 %v2756
    %4140 = vmatprep.subr.bf16.mxu0 %v2761
    %4141 = vmatpush1.bf16.msra.mxu0 %v2760
    %4142 = vmatprep.subr.bf16.mxu0 %v2765
    %4143 = vmatpush1.bf16.msra.mxu0 %v2764
    %4144 = vmatprep.subr.bf16.mxu0 %v2769
    %4145 = vmatpush1.bf16.msra.mxu0 %v2768
    %4146 = vmatprep.subr.bf16.mxu0 %v2773
    %4147 = vmatpush1.bf16.msra.mxu0 %v2772
    %4148 = vmatprep.mubr.bf16.mxu0 %v57
    %4149 = vmatmul.mubr.bf16.gmra.mrb[0].mxu0 %v56
    %v4150 = vpop.f32.mrb[0].mxu0
    %v4151 = vadd.f32 %v4110, %v4150
    %v4152 = vpop.f32.mrb[0].mxu0
    %v4153 = vadd.f32 %v4112, %v4152
    %v4154 = vpop.f32.mrb[0].mxu0
    %v4155 = vpop.f32.mrb[0].mxu0
    %4156 = vdwg.mxu0
    %4157 = vmatprep.subr.bf16.mxu0 %v2777
    %4158 = vmatpush1.bf16.msra.mxu0 %v2776
    %4159 = vmatprep.subr.bf16.mxu0 %v2781
    %4160 = vmatpush1.bf16.msra.mxu0 %v2780
    %4161 = vmatprep.subr.bf16.mxu0 %v2785
    %4162 = vmatpush1.bf16.msra.mxu0 %v2784
    %4163 = vmatprep.subr.bf16.mxu0 %v2789
    %4164 = vmatpush1.bf16.msra.mxu0 %v2788
    %4165 = vmatprep.subr.bf16.mxu0 %v2793
    %4166 = vmatpush1.bf16.msra.mxu0 %v2792
    %4167 = vmatprep.subr.bf16.mxu0 %v2797
    %4168 = vmatpush1.bf16.msra.mxu0 %v2796
    %4169 = vmatprep.subr.bf16.mxu0 %v2801
    %4170 = vmatpush1.bf16.msra.mxu0 %v2800
    %4171 = vmatprep.subr.bf16.mxu0 %v2805
    %4172 = vmatpush1.bf16.msra.mxu0 %v2804
    %4173 = vmatprep.subr.bf16.mxu0 %v2809
    %4174 = vmatpush1.bf16.msra.mxu0 %v2808
    %4175 = vmatprep.subr.bf16.mxu0 %v2813
    %4176 = vmatpush1.bf16.msra.mxu0 %v2812
    %4177 = vmatprep.subr.bf16.mxu0 %v2817
    %4178 = vmatpush1.bf16.msra.mxu0 %v2816
    %4179 = vmatprep.subr.bf16.mxu0 %v2821
    %4180 = vmatpush1.bf16.msra.mxu0 %v2820
    %4181 = vmatprep.subr.bf16.mxu0 %v2825
    %4182 = vmatpush1.bf16.msra.mxu0 %v2824
    %4183 = vmatprep.subr.bf16.mxu0 %v2829
    %4184 = vmatpush1.bf16.msra.mxu0 %v2828
    %4185 = vmatprep.subr.bf16.mxu0 %v2833
    %4186 = vmatpush1.bf16.msra.mxu0 %v2832
    %4187 = vmatprep.subr.bf16.mxu0 %v2837
    %4188 = vmatpush1.bf16.msra.mxu0 %v2836
    %4189 = vmatprep.mubr.bf16.mxu0 %v59
    %4190 = vmatmul.mubr.bf16.gmra.mrb[0].mxu0 %v58
    %v4191 = vpop.f32.mrb[0].mxu0
    %v4192 = vadd.f32 %v4151, %v4191
    %v4193 = vpop.f32.mrb[0].mxu0
    %v4194 = vadd.f32 %v4153, %v4193
    %v4195 = vpop.f32.mrb[0].mxu0
    %v4196 = vpop.f32.mrb[0].mxu0
    %4197 = vdwg.mxu0
    %4198 = vmatprep.subr.bf16.mxu0 %v2841
    %4199 = vmatpush1.bf16.msra.mxu0 %v2840
    %4200 = vmatprep.subr.bf16.mxu0 %v2845
    %4201 = vmatpush1.bf16.msra.mxu0 %v2844
    %4202 = vmatprep.subr.bf16.mxu0 %v2849
    %4203 = vmatpush1.bf16.msra.mxu0 %v2848
    %4204 = vmatprep.subr.bf16.mxu0 %v2853
    %4205 = vmatpush1.bf16.msra.mxu0 %v2852
    %4206 = vmatprep.subr.bf16.mxu0 %v2857
    %4207 = vmatpush1.bf16.msra.mxu0 %v2856
    %4208 = vmatprep.subr.bf16.mxu0 %v2861
    %4209 = vmatpush1.bf16.msra.mxu0 %v2860
    %4210 = vmatprep.subr.bf16.mxu0 %v2865
    %4211 = vmatpush1.bf16.msra.mxu0 %v2864
    %4212 = vmatprep.subr.bf16.mxu0 %v2869
    %4213 = vmatpush1.bf16.msra.mxu0 %v2868
    %4214 = vmatprep.subr.bf16.mxu0 %v2873
    %4215 = vmatpush1.bf16.msra.mxu0 %v2872
    %4216 = vmatprep.subr.bf16.mxu0 %v2877
    %4217 = vmatpush1.bf16.msra.mxu0 %v2876
    %4218 = vmatprep.subr.bf16.mxu0 %v2881
    %4219 = vmatpush1.bf16.msra.mxu0 %v2880
    %4220 = vmatprep.subr.bf16.mxu0 %v2885
    %4221 = vmatpush1.bf16.msra.mxu0 %v2884
    %4222 = vmatprep.subr.bf16.mxu0 %v2889
    %4223 = vmatpush1.bf16.msra.mxu0 %v2888
    %4224 = vmatprep.subr.bf16.mxu0 %v2893
    %4225 = vmatpush1.bf16.msra.mxu0 %v2892
    %4226 = vmatprep.subr.bf16.mxu0 %v2897
    %4227 = vmatpush1.bf16.msra.mxu0 %v2896
    %4228 = vmatprep.subr.bf16.mxu0 %v2901
    %4229 = vmatpush1.bf16.msra.mxu0 %v2900
    %4230 = vmatprep.mubr.bf16.mxu0 %v61
    %4231 = vmatmul.mubr.bf16.gmra.mrb[0].mxu0 %v60
    %v4232 = vpop.f32.mrb[0].mxu0
    %v4233 = vadd.f32 %v4192, %v4232
    %v4234 = vpop.f32.mrb[0].mxu0
    %v4235 = vadd.f32 %v4194, %v4234
    %v4236 = vpop.f32.mrb[0].mxu0
    %v4237 = vpop.f32.mrb[0].mxu0
    %4238 = vdwg.mxu0
    %4239 = vmatprep.subr.bf16.mxu0 %v2905
    %4240 = vmatpush1.bf16.msra.mxu0 %v2904
    %4241 = vmatprep.subr.bf16.mxu0 %v2909
    %4242 = vmatpush1.bf16.msra.mxu0 %v2908
    %4243 = vmatprep.subr.bf16.mxu0 %v2913
    %4244 = vmatpush1.bf16.msra.mxu0 %v2912
    %4245 = vmatprep.subr.bf16.mxu0 %v2917
    %4246 = vmatpush1.bf16.msra.mxu0 %v2916
    %4247 = vmatprep.subr.bf16.mxu0 %v2921
    %4248 = vmatpush1.bf16.msra.mxu0 %v2920
    %4249 = vmatprep.subr.bf16.mxu0 %v2925
    %4250 = vmatpush1.bf16.msra.mxu0 %v2924
    %4251 = vmatprep.subr.bf16.mxu0 %v2929
    %4252 = vmatpush1.bf16.msra.mxu0 %v2928
    %4253 = vmatprep.subr.bf16.mxu0 %v2933
    %4254 = vmatpush1.bf16.msra.mxu0 %v2932
    %4255 = vmatprep.subr.bf16.mxu0 %v2937
    %4256 = vmatpush1.bf16.msra.mxu0 %v2936
    %4257 = vmatprep.subr.bf16.mxu0 %v2941
    %4258 = vmatpush1.bf16.msra.mxu0 %v2940
    %4259 = vmatprep.subr.bf16.mxu0 %v2945
    %4260 = vmatpush1.bf16.msra.mxu0 %v2944
    %4261 = vmatprep.subr.bf16.mxu0 %v2949
    %4262 = vmatpush1.bf16.msra.mxu0 %v2948
    %4263 = vmatprep.subr.bf16.mxu0 %v2953
    %4264 = vmatpush1.bf16.msra.mxu0 %v2952
    %4265 = vmatprep.subr.bf16.mxu0 %v2957
    %4266 = vmatpush1.bf16.msra.mxu0 %v2956
    %4267 = vmatprep.subr.bf16.mxu0 %v2961
    %4268 = vmatpush1.bf16.msra.mxu0 %v2960
    %4269 = vmatprep.subr.bf16.mxu0 %v2965
    %4270 = vmatpush1.bf16.msra.mxu0 %v2964
    %4271 = vmatprep.mubr.bf16.mxu0 %v63
    %4272 = vmatmul.mubr.bf16.gmra.mrb[0].mxu0 %v62
    %v4273 = vpop.f32.mrb[0].mxu0
    %v4274 = vadd.f32 %v4233, %v4273
    %v4275 = vpop.f32.mrb[0].mxu0
    %v4276 = vadd.f32 %v4235, %v4275
    %v4277 = vpop.f32.mrb[0].mxu0
    %v4278 = vpop.f32.mrb[0].mxu0
    %4279 = vdwg.mxu0
    %v4280 = vmax.f32 %v3905, 0.0
    %v4281 = vmax.f32 %v3907, 0.0
    %v4282 = vmax.f32 %v4274, 0.0
    %v4283 = vmax.f32 %v4276, 0.0
    %v4284 = vpack.c.bf16 %v4280, %v4280
    %v4285 = vpack.c.bf16 %v4281, %v4281
    %v4286 = vpack.c.bf16 %v4282, %v4282
    %v4287 = vpack.c.bf16 %v4283, %v4283
    %v4288 = vld [vmem:[%s3] sm:$0xf]
    %v4289 = vld [vmem:[%s3 + $0x4] sm:$0xf]
    %v4290 = vld [vmem:[%s3 + $0x8] sm:$0xf]
    %v4291 = vld [vmem:[%s3 + $0xc] sm:$0xf]
    %v4292 = vld [vmem:[%s3 + $0x10] sm:$0xf]
    %v4293 = vld [vmem:[%s3 + $0x14] sm:$0xf]
    %v4294 = vld [vmem:[%s3 + $0x18] sm:$0xf]
    %v4295 = vld [vmem:[%s3 + $0x1c] sm:$0xf]
    %v4296 = vld [vmem:[%s3 + $0x20] sm:$0xf]
    %v4297 = vld [vmem:[%s3 + $0x24] sm:$0xf]
    %v4298 = vld [vmem:[%s3 + $0x28] sm:$0xf]
    %v4299 = vld [vmem:[%s3 + $0x2c] sm:$0xf]
    %v4300 = vld [vmem:[%s3 + $0x30] sm:$0xf]
    %v4301 = vld [vmem:[%s3 + $0x34] sm:$0xf]
    %v4302 = vld [vmem:[%s3 + $0x38] sm:$0xf]
    %v4303 = vld [vmem:[%s3 + $0x3c] sm:$0xf]
    %v4304 = vld [vmem:[%s3 + $0x40] sm:$0xf]
    %v4305 = vld [vmem:[%s3 + $0x44] sm:$0xf]
    %v4306 = vld [vmem:[%s3 + $0x48] sm:$0xf]
    %v4307 = vld [vmem:[%s3 + $0x4c] sm:$0xf]
    %v4308 = vld [vmem:[%s3 + $0x50] sm:$0xf]
    %v4309 = vld [vmem:[%s3 + $0x54] sm:$0xf]
    %v4310 = vld [vmem:[%s3 + $0x58] sm:$0xf]
    %v4311 = vld [vmem:[%s3 + $0x5c] sm:$0xf]
    %v4312 = vld [vmem:[%s3 + $0x60] sm:$0xf]
    %v4313 = vld [vmem:[%s3 + $0x64] sm:$0xf]
    %v4314 = vld [vmem:[%s3 + $0x68] sm:$0xf]
    %v4315 = vld [vmem:[%s3 + $0x6c] sm:$0xf]
    %v4316 = vld [vmem:[%s3 + $0x70] sm:$0xf]
    %v4317 = vld [vmem:[%s3 + $0x74] sm:$0xf]
    %v4318 = vld [vmem:[%s3 + $0x78] sm:$0xf]
    %v4319 = vld [vmem:[%s3 + $0x7c] sm:$0xf]
    %v4320 = vld [vmem:[%s3 + $0x80] sm:$0xf]
    %v4321 = vld [vmem:[%s3 + $0x84] sm:$0xf]
    %v4322 = vld [vmem:[%s3 + $0x88] sm:$0xf]
    %v4323 = vld [vmem:[%s3 + $0x8c] sm:$0xf]
    %v4324 = vld [vmem:[%s3 + $0x90] sm:$0xf]
    %v4325 = vld [vmem:[%s3 + $0x94] sm:$0xf]
    %v4326 = vld [vmem:[%s3 + $0x98] sm:$0xf]
    %v4327 = vld [vmem:[%s3 + $0x9c] sm:$0xf]
    %v4328 = vld [vmem:[%s3 + $0xa0] sm:$0xf]
    %v4329 = vld [vmem:[%s3 + $0xa4] sm:$0xf]
    %v4330 = vld [vmem:[%s3 + $0xa8] sm:$0xf]
    %v4331 = vld [vmem:[%s3 + $0xac] sm:$0xf]
    %v4332 = vld [vmem:[%s3 + $0xb0] sm:$0xf]
    %v4333 = vld [vmem:[%s3 + $0xb4] sm:$0xf]
    %v4334 = vld [vmem:[%s3 + $0xb8] sm:$0xf]
    %v4335 = vld [vmem:[%s3 + $0xbc] sm:$0xf]
    %v4336 = vld [vmem:[%s3 + $0xc0] sm:$0xf]
    %v4337 = vld [vmem:[%s3 + $0xc4] sm:$0xf]
    %v4338 = vld [vmem:[%s3 + $0xc8] sm:$0xf]
    %v4339 = vld [vmem:[%s3 + $0xcc] sm:$0xf]
    %v4340 = vld [vmem:[%s3 + $0xd0] sm:$0xf]
    %v4341 = vld [vmem:[%s3 + $0xd4] sm:$0xf]
    %v4342 = vld [vmem:[%s3 + $0xd8] sm:$0xf]
    %v4343 = vld [vmem:[%s3 + $0xdc] sm:$0xf]
    %v4344 = vld [vmem:[%s3 + $0xe0] sm:$0xf]
    %v4345 = vld [vmem:[%s3 + $0xe4] sm:$0xf]
    %v4346 = vld [vmem:[%s3 + $0xe8] sm:$0xf]
    %v4347 = vld [vmem:[%s3 + $0xec] sm:$0xf]
    %v4348 = vld [vmem:[%s3 + $0xf0] sm:$0xf]
    %v4349 = vld [vmem:[%s3 + $0xf4] sm:$0xf]
    %v4350 = vld [vmem:[%s3 + $0xf8] sm:$0xf]
    %v4351 = vld [vmem:[%s3 + $0xfc] sm:$0xf]
    %v4352 = vld [vmem:[%s4] sm:$0x1]
    %v4354 = vlaneseq
    %v4355 = vshrl.u32 %v4354, 7
    %v4356 = vsub.s32 0, %v4355
    %v4357 = vrot.slane %v4352, %v4356
    %v4423 = vunpack.c.l.b16 %v4288
    %v4424 = vunpack.c.l.b16 %v4289
    %v4425 = vunpack.c.l.b16 %v4290
    %v4426 = vunpack.c.l.b16 %v4291
    %v4427 = vunpack.c.l.b16 %v4292
    %v4428 = vunpack.c.l.b16 %v4293
    %v4429 = vunpack.c.l.b16 %v4294
    %v4430 = vunpack.c.l.b16 %v4295
    %v4431 = vunpack.c.l.b16 %v4296
    %v4432 = vunpack.c.l.b16 %v4297
    %v4433 = vunpack.c.l.b16 %v4298
    %v4434 = vunpack.c.l.b16 %v4299
    %v4435 = vunpack.c.l.b16 %v4300
    %v4436 = vunpack.c.l.b16 %v4301
    %v4437 = vunpack.c.l.b16 %v4302
    %v4438 = vunpack.c.l.b16 %v4303
    %v4439 = vunpack.c.l.b16 %v4304
    %v4440 = vunpack.c.l.b16 %v4305
    %v4441 = vunpack.c.l.b16 %v4306
    %v4442 = vunpack.c.l.b16 %v4307
    %v4443 = vunpack.c.l.b16 %v4308
    %v4444 = vunpack.c.l.b16 %v4309
    %v4445 = vunpack.c.l.b16 %v4310
    %v4446 = vunpack.c.l.b16 %v4311
    %v4447 = vunpack.c.l.b16 %v4312
    %v4448 = vunpack.c.l.b16 %v4313
    %v4449 = vunpack.c.l.b16 %v4314
    %v4450 = vunpack.c.l.b16 %v4315
    %v4451 = vunpack.c.l.b16 %v4316
    %v4452 = vunpack.c.l.b16 %v4317
    %v4453 = vunpack.c.l.b16 %v4318
    %v4454 = vunpack.c.l.b16 %v4319
    %v4455 = vunpack.c.l.b16 %v4320
    %v4456 = vunpack.c.l.b16 %v4321
    %v4457 = vunpack.c.l.b16 %v4322
    %v4458 = vunpack.c.l.b16 %v4323
    %v4459 = vunpack.c.l.b16 %v4324
    %v4460 = vunpack.c.l.b16 %v4325
    %v4461 = vunpack.c.l.b16 %v4326
    %v4462 = vunpack.c.l.b16 %v4327
    %v4463 = vunpack.c.l.b16 %v4328
    %v4464 = vunpack.c.l.b16 %v4329
    %v4465 = vunpack.c.l.b16 %v4330
    %v4466 = vunpack.c.l.b16 %v4331
    %v4467 = vunpack.c.l.b16 %v4332
    %v4468 = vunpack.c.l.b16 %v4333
    %v4469 = vunpack.c.l.b16 %v4334
    %v4470 = vunpack.c.l.b16 %v4335
    %v4471 = vunpack.c.l.b16 %v4336
    %v4472 = vunpack.c.l.b16 %v4337
    %v4473 = vunpack.c.l.b16 %v4338
    %v4474 = vunpack.c.l.b16 %v4339
    %v4475 = vunpack.c.l.b16 %v4340
    %v4476 = vunpack.c.l.b16 %v4341
    %v4477 = vunpack.c.l.b16 %v4342
    %v4478 = vunpack.c.l.b16 %v4343
    %v4479 = vunpack.c.l.b16 %v4344
    %v4480 = vunpack.c.l.b16 %v4345
    %v4481 = vunpack.c.l.b16 %v4346
    %v4482 = vunpack.c.l.b16 %v4347
    %v4483 = vunpack.c.l.b16 %v4348
    %v4484 = vunpack.c.l.b16 %v4349
    %v4485 = vunpack.c.l.b16 %v4350
    %v4486 = vunpack.c.l.b16 %v4351
    %v4487 = vpack.c.b16 %v4424, %v4423
    %v4488 = vpack.c.b16 %v4426, %v4425
    %v4489 = vpack.c.b16 %v4428, %v4427
    %v4490 = vpack.c.b16 %v4430, %v4429
    %v4491 = vpack.c.b16 %v4432, %v4431
    %v4492 = vpack.c.b16 %v4434, %v4433
    %v4493 = vpack.c.b16 %v4436, %v4435
    %v4494 = vpack.c.b16 %v4438, %v4437
    %v4495 = vpack.c.b16 %v4440, %v4439
    %v4496 = vpack.c.b16 %v4442, %v4441
    %v4497 = vpack.c.b16 %v4444, %v4443
    %v4498 = vpack.c.b16 %v4446, %v4445
    %v4499 = vpack.c.b16 %v4448, %v4447
    %v4500 = vpack.c.b16 %v4450, %v4449
    %v4501 = vpack.c.b16 %v4452, %v4451
    %v4502 = vpack.c.b16 %v4454, %v4453
    %v4503 = vpack.c.b16 %v4456, %v4455
    %v4504 = vpack.c.b16 %v4458, %v4457
    %v4505 = vpack.c.b16 %v4460, %v4459
    %v4506 = vpack.c.b16 %v4462, %v4461
    %v4507 = vpack.c.b16 %v4464, %v4463
    %v4508 = vpack.c.b16 %v4466, %v4465
    %v4509 = vpack.c.b16 %v4468, %v4467
    %v4510 = vpack.c.b16 %v4470, %v4469
    %v4511 = vpack.c.b16 %v4472, %v4471
    %v4512 = vpack.c.b16 %v4474, %v4473
    %v4513 = vpack.c.b16 %v4476, %v4475
    %v4514 = vpack.c.b16 %v4478, %v4477
    %v4515 = vpack.c.b16 %v4480, %v4479
    %v4516 = vpack.c.b16 %v4482, %v4481
    %v4517 = vpack.c.b16 %v4484, %v4483
    %v4518 = vpack.c.b16 %v4486, %v4485
    %4551 = vmatprep.subr.bf16.mxu0 0
    %4552 = vmatpush1.bf16.msra.mxu0 %v4487
    %4553 = vmatprep.subr.bf16.mxu0 0
    %4554 = vmatpush1.bf16.msra.mxu0 %v4488
    %4555 = vmatprep.subr.bf16.mxu0 0
    %4556 = vmatpush1.bf16.msra.mxu0 %v4489
    %4557 = vmatprep.subr.bf16.mxu0 0
    %4558 = vmatpush1.bf16.msra.mxu0 %v4490
    %4559 = vmatprep.subr.bf16.mxu0 0
    %4560 = vmatpush1.bf16.msra.mxu0 %v4491
    %4561 = vmatprep.subr.bf16.mxu0 0
    %4562 = vmatpush1.bf16.msra.mxu0 %v4492
    %4563 = vmatprep.subr.bf16.mxu0 0
    %4564 = vmatpush1.bf16.msra.mxu0 %v4493
    %4565 = vmatprep.subr.bf16.mxu0 0
    %4566 = vmatpush1.bf16.msra.mxu0 %v4494
    %4567 = vmatprep.subr.bf16.mxu0 0
    %4568 = vmatpush1.bf16.msra.mxu0 %v4495
    %4569 = vmatprep.subr.bf16.mxu0 0
    %4570 = vmatpush1.bf16.msra.mxu0 %v4496
    %4571 = vmatprep.subr.bf16.mxu0 0
    %4572 = vmatpush1.bf16.msra.mxu0 %v4497
    %4573 = vmatprep.subr.bf16.mxu0 0
    %4574 = vmatpush1.bf16.msra.mxu0 %v4498
    %4575 = vmatprep.subr.bf16.mxu0 0
    %4576 = vmatpush1.bf16.msra.mxu0 %v4499
    %4577 = vmatprep.subr.bf16.mxu0 0
    %4578 = vmatpush1.bf16.msra.mxu0 %v4500
    %4579 = vmatprep.subr.bf16.mxu0 0
    %4580 = vmatpush1.bf16.msra.mxu0 %v4501
    %4581 = vmatprep.subr.bf16.mxu0 0
    %4582 = vmatpush1.bf16.msra.mxu0 %v4502
    %4583 = vmatprep.mubr.bf16.mxu0 %v4285
    %4584 = vmatmul.mubr.bf16.gmra.mrb[0].mxu0 %v4284
    %v4585 = vpop.f32.mrb[0].mxu0
    %v4586 = vadd.f32 %v4357, %v4585
    %v4587 = vpop.f32.mrb[0].mxu0
    %v4588 = vpop.f32.mrb[0].mxu0
    %v4589 = vpop.f32.mrb[0].mxu0
    %4590 = vdwg.mxu0
    %4591 = vmatprep.subr.bf16.mxu0 0
    %4592 = vmatpush1.bf16.msra.mxu0 %v4503
    %4593 = vmatprep.subr.bf16.mxu0 0
    %4594 = vmatpush1.bf16.msra.mxu0 %v4504
    %4595 = vmatprep.subr.bf16.mxu0 0
    %4596 = vmatpush1.bf16.msra.mxu0 %v4505
    %4597 = vmatprep.subr.bf16.mxu0 0
    %4598 = vmatpush1.bf16.msra.mxu0 %v4506
    %4599 = vmatprep.subr.bf16.mxu0 0
    %4600 = vmatpush1.bf16.msra.mxu0 %v4507
    %4601 = vmatprep.subr.bf16.mxu0 0
    %4602 = vmatpush1.bf16.msra.mxu0 %v4508
    %4603 = vmatprep.subr.bf16.mxu0 0
    %4604 = vmatpush1.bf16.msra.mxu0 %v4509
    %4605 = vmatprep.subr.bf16.mxu0 0
    %4606 = vmatpush1.bf16.msra.mxu0 %v4510
    %4607 = vmatprep.subr.bf16.mxu0 0
    %4608 = vmatpush1.bf16.msra.mxu0 %v4511
    %4609 = vmatprep.subr.bf16.mxu0 0
    %4610 = vmatpush1.bf16.msra.mxu0 %v4512
    %4611 = vmatprep.subr.bf16.mxu0 0
    %4612 = vmatpush1.bf16.msra.mxu0 %v4513
    %4613 = vmatprep.subr.bf16.mxu0 0
    %4614 = vmatpush1.bf16.msra.mxu0 %v4514
    %4615 = vmatprep.subr.bf16.mxu0 0
    %4616 = vmatpush1.bf16.msra.mxu0 %v4515
    %4617 = vmatprep.subr.bf16.mxu0 0
    %4618 = vmatpush1.bf16.msra.mxu0 %v4516
    %4619 = vmatprep.subr.bf16.mxu0 0
    %4620 = vmatpush1.bf16.msra.mxu0 %v4517
    %4621 = vmatprep.subr.bf16.mxu0 0
    %4622 = vmatpush1.bf16.msra.mxu0 %v4518
    %4623 = vmatprep.mubr.bf16.mxu0 %v4287
    %4624 = vmatmul.mubr.bf16.gmra.mrb[0].mxu0 %v4286
    %v4625 = vpop.f32.mrb[0].mxu0
    %v4626 = vadd.f32 %v4586, %v4625
    %v4627 = vpop.f32.mrb[0].mxu0
    %v4628 = vpop.f32.mrb[0].mxu0
    %v4629 = vpop.f32.mrb[0].mxu0
    %4630 = vdwg.mxu0
    %v4631 = vmax.f32 %v4626, 0.0
    %v4632 = vpack.c.bf16 %v4631, %v4631
    %v4633 = vld [vmem:[%s5] sm:$0xf]
    %v4634 = vld [vmem:[%s5 + $0x4] sm:$0xf]
    %v4635 = vld [vmem:[%s5 + $0x8] sm:$0xf]
    %v4636 = vld [vmem:[%s5 + $0xc] sm:$0xf]
    %v4637 = vld [vmem:[%s5 + $0x10] sm:$0xf]
    %v4638 = vld [vmem:[%s5 + $0x14] sm:$0xf]
    %v4639 = vld [vmem:[%s5 + $0x18] sm:$0xf]
    %v4640 = vld [vmem:[%s5 + $0x1c] sm:$0xf]
    %v4649 = vunpack.c.l.b16 %v4633
    %v4650 = vunpack.c.l.b16 %v4634
    %v4651 = vunpack.c.l.b16 %v4635
    %v4652 = vunpack.c.l.b16 %v4636
    %v4653 = vunpack.c.l.b16 %v4637
    %v4654 = vunpack.c.l.b16 %v4638
    %v4655 = vunpack.c.l.b16 %v4639
    %v4656 = vunpack.c.l.b16 %v4640
    %v4657 = vpack.c.b16 %v4650, %v4649
    %v4658 = vpack.c.b16 %v4652, %v4651
    %v4659 = vpack.c.b16 %v4654, %v4653
    %v4660 = vpack.c.b16 %v4656, %v4655
    %vm4665 = vcmask 523264
    %v4667 = vsel %vm4665, %v4632, 0
    %4669 = vmatprep.subr.bf16.mxu0 0
    %4670 = vmatpush1.bf16.msra.mxu0 %v4657
    %4671 = vmatprep.subr.bf16.mxu0 0
    %4672 = vmatpush1.bf16.msra.mxu0 %v4658
    %4673 = vmatprep.subr.bf16.mxu0 0
    %4674 = vmatpush1.bf16.msra.mxu0 %v4659
    %4675 = vmatprep.subr.bf16.mxu0 0
    %4676 = vmatpush1.bf16.msra.mxu0 %v4660
    %4677 = vmatprep.subr.bf16.mxu0 0
    %4678 = vmatpush1.bf16.msra.mxu0 0
    %4679 = vmatprep.subr.bf16.mxu0 0
    %4680 = vmatpush1.bf16.msra.mxu0 0
    %4681 = vmatprep.subr.bf16.mxu0 0
    %4682 = vmatpush1.bf16.msra.mxu0 0
    %4683 = vmatprep.subr.bf16.mxu0 0
    %4684 = vmatpush1.bf16.msra.mxu0 0
    %4685 = vmatprep.subr.bf16.mxu0 0
    %4686 = vmatpush1.bf16.msra.mxu0 0
    %4687 = vmatprep.subr.bf16.mxu0 0
    %4688 = vmatpush1.bf16.msra.mxu0 0
    %4689 = vmatprep.subr.bf16.mxu0 0
    %4690 = vmatpush1.bf16.msra.mxu0 0
    %4691 = vmatprep.subr.bf16.mxu0 0
    %4692 = vmatpush1.bf16.msra.mxu0 0
    %4693 = vmatprep.subr.bf16.mxu0 0
    %4694 = vmatpush1.bf16.msra.mxu0 0
    %4695 = vmatprep.subr.bf16.mxu0 0
    %4696 = vmatpush1.bf16.msra.mxu0 0
    %4697 = vmatprep.subr.bf16.mxu0 0
    %4698 = vmatpush1.bf16.msra.mxu0 0
    %4699 = vmatprep.subr.bf16.mxu0 0
    %4700 = vmatpush1.bf16.msra.mxu0 0
    %4701 = vmatprep.mubr.bf16.mxu0 0
    %4702 = vmatmul.mubr.bf16.gmra.mrb[0].mxu0 %v4667
    %v4703 = vpop.f32.mrb[0].mxu0
    %v4704 = vadd.f32 0.0, %v4703
    %v4705 = vpop.f32.mrb[0].mxu0
    %v4706 = vpop.f32.mrb[0].mxu0
    %v4707 = vpop.f32.mrb[0].mxu0
    %4708 = vdwg.mxu0
    %v4709 = vld [vmem:[%s6] sm:$0x1]
    %v4711 = vlaneseq
    %v4712 = vshrl.u32 %v4711, 7
    %v4713 = vsub.s32 0, %v4712
    %v4714 = vrot.slane %v4709, %v4713
    %v4716 = vadd.f32 %v4704, %v4714
    %vm4717 = vcmask 56320
    %4718 = vst.msk [vmem:[#allocation2] sm:$0xff] %vm4717, %v4716
    // Predicated region
    $region30: #{_lambda_.1} parent=1 // pred_check
      _
    $region31: #{_lambda_.1} parent=1 // pred_check_branch
      %4720 = sbr.rel (0) target = $region33
    $region32: #{_lambda_.1} parent=1 // pred_region
      %s4722 = ssub.s32 128, 128
      %4723 = vsyncadd [#allocation3], %s4722
      %s4725 = sshll.u32 [#allocation2], 4
      %s4726 = int_to_ptr.vmem [resolvable:$true] %s4725
      %4728 = dma.vmem_to_hbm [thread:$0]  %s4726, 128, %s7, [#allocation3]
    $region33: #{_lambda_.1} parent=1 // pred_fallthru
      _
    // Predicated region
    $region34: #{_lambda_.1} parent=1 // pred_check
      _
    $region35: #{_lambda_.1} parent=1 // pred_check_branch
      %4730 = sbr.rel (0) target = $region37
    $region36: #{_lambda_.1} parent=1 // pred_region
      %4731 = dma.done [#allocation3], 128
    $region37: #{_lambda_.1} parent=1 // pred_fallthru
      _
    %4732 = vsyncpa [#allocation3], 1

</llo_original>
